<compile_context>
chip_gen: v6e
topology: v6e:2x2x1
jax: 0.10.0
libtpu: 0.0.40
codegen_flags: <defaults>
</compile_context>

<pallas_src>
import functools

import numpy as np
import jax
import jax.numpy as jnp
from jax import lax
from jax.experimental import pallas as pl
from jax.experimental.pallas import tpu as pltpu

LANE = 128  # output-channel lane padding (lane-dense stores; zeros sliced off)


def _conv_out_size(h):
    # 3x3 conv, stride 2, pad 1
    return (h - 1) // 2 + 1


def _gather_matrix(n, h, w):
    """(9, N*Ho*Wo, N*H*W) 0/1 tap-gather matrices for a 3x3 stride-2 pad-1 conv.

    Row p of tap t selects the flattened NHWC input row read by tap t at output
    pixel p; all-zero rows encode the conv zero padding.  Built with numpy at
    trace time (shapes are static), becomes an XLA constant.
    """
    ho, wo = _conv_out_size(h), _conv_out_size(w)
    g = np.zeros((9, n * ho * wo, n * h * w), np.float32)
    for b in range(n):
        for i in range(ho):
            for j in range(wo):
                p = (b * ho + i) * wo + j
                for ky in range(3):
                    for kx in range(3):
                        hh, ww = 2 * i + ky - 1, 2 * j + kx - 1
                        if 0 <= hh < h and 0 <= ww < w:
                            g[ky * 3 + kx, p, (b * h + hh) * w + ww] = 1.0
    return g, ho, wo


# ----------------------------- Pallas kernel --------------------------------
def _fused_backbone_kernel(x_ref, *refs, couts):
    """Fused multi-stage 3x3/s2 conv+bias+ReLU backbone; one grid step does all.

    x_ref : (N*H*W, Cin0) bf16 -- flattened NHWC input rows.
    per stage s (in order): g_ref (9, M_out, M_in) bf16 constant 0/1 gathers,
                            w_ref (9*Cin, 128) bf16 tap-major weights,
                            b_ref (1, 128) f32 lane-padded bias.
    then one (M_out, 128) f32 output ref per stage (lane-dense stores).
    """
    n_stages = len(couts)
    stage_refs = [refs[3 * s:3 * s + 3] for s in range(n_stages)]
    out_refs = refs[3 * n_stages:]

    x = x_ref[...]                                        # (M_in, Cin) bf16
    for s in range(n_stages):
        g_ref, w_ref, b_ref = stage_refs[s]
        # im2col on the MXU: 9 exact 0/1 gathers (deep K = M_in), then the 9
        # (M_out, Cin) tap windows are lane-concatenated (XLU, otherwise idle)
        # into one (M_out, 9*Cin) LHS for a single K = 9*Cin conv matmul.
        taps = [jnp.dot(g_ref[t], x, preferred_element_type=jnp.float32)
                for t in range(9)]
        lhs = jnp.concatenate(taps, axis=-1).astype(jnp.bfloat16)
        acc = jnp.dot(lhs, w_ref[...], preferred_element_type=jnp.float32)
        y = jnp.maximum(acc + b_ref[...], 0.0)            # (M_out, 128) f32
        out_refs[s][...] = y                              # lane-dense store
        if s + 1 < n_stages:
            # Next stage consumes only the live channels, in bf16, straight
            # from vregs/VMEM (no HBM round trip, no padded-channel waste).
            x = y[:, :couts[s]].astype(jnp.bfloat16)


# ------------------------------- parameters ---------------------------------
def init_params(key, in_channels=3, stage_channels=(16, 32, 64)):
    """Raw per-stage conv weights (Cout, Cin, 3, 3) + bias, like the torch module."""
    params = []
    cin = in_channels
    for i, cout in enumerate(stage_channels):
        kw_, kb_ = jax.random.split(jax.random.fold_in(key, i))
        fan_in = cin * 9
        w = jax.random.normal(kw_, (cout, cin, 3, 3), jnp.float32) * (fan_in ** -0.5)
        b = jax.random.normal(kb_, (cout,), jnp.float32) * 0.01
        params.append((w, b))
        cin = cout
    return params


def pack_params(params):
    """Precompute kernel-ready weights ONCE (no per-call transpose/pad/cast)."""
    weights, biases, channels = [], [], []
    for w, b in params:
        cout, cin = int(w.shape[0]), int(w.shape[1])
        assert cout <= LANE, "stage width beyond one lane group not supported here"
        # (Cout, Cin, 3, 3) -> (ky, kx, cin, cout) -> (9*Cin, Cout), pad to 128 lanes.
        w2d = jnp.transpose(w, (2, 3, 1, 0)).reshape(9 * cin, cout)
        weights.append(jnp.pad(w2d, ((0, 0), (0, LANE - cout))).astype(jnp.bfloat16))
        biases.append(jnp.pad(b, (0, LANE - cout)).reshape(1, LANE).astype(jnp.float32))
        channels.append(cout)
    return tuple(weights), tuple(biases), tuple(channels)


# ------------------------------- forward ------------------------------------
def _full_block(arr):
    zeros = (0,) * arr.ndim
    return pl.BlockSpec(arr.shape, lambda i: zeros)


@functools.partial(jax.jit, static_argnames=("channels",))
def timm_wrapper_forward(x_nchw, weights, biases, *, channels):
    """Mirrors TIMMWrapper.forward: returns a tuple of multi-scale NCHW features."""
    N, cin0, H, W = x_nchw.shape
    n_stages = len(channels)

    # Single relayout of the tiny input: NCHW -> flattened NHWC rows, bf16.
    x2d = (jnp.transpose(x_nchw, (0, 2, 3, 1))
           .reshape(N * H * W, cin0).astype(jnp.bfloat16))

    # Trace-time constants: per-stage gather matrices + stage geometry.
    gmats, spatial = [], []
    h, w = H, W
    for _ in range(n_stages):
        g, ho, wo = _gather_matrix(N, h, w)
        gmats.append(jnp.asarray(g, dtype=jnp.bfloat16))
        spatial.append((ho, wo))
        h, w = ho, wo

    cins = (cin0,) + tuple(channels[:-1])
    m_out = [N * ho * wo for ho, wo in spatial]
    m_in = [N * H * W] + m_out[:-1]

    in_arrays = [x2d]
    for s in range(n_stages):
        in_arrays += [gmats[s], weights[s], biases[s]]
    in_specs = [_full_block(a) for a in in_arrays]

    out_shape = tuple(jax.ShapeDtypeStruct((m, LANE), jnp.float32) for m in m_out)
    out_specs = [pl.BlockSpec((m, LANE), lambda i: (0, 0)) for m in m_out]

    flops = 0
    for s in range(n_stages):
        flops += 2 * 9 * m_out[s] * m_in[s] * cins[s]          # gather matmuls
        flops += 2 * m_out[s] * (9 * cins[s]) * LANE           # conv matmul
    bytes_accessed = sum(int(np.prod(a.shape)) * a.dtype.itemsize for a in in_arrays)
    bytes_accessed += sum(m * LANE * 4 for m in m_out)

    kernel = functools.partial(_fused_backbone_kernel, couts=tuple(channels))
    outs = pl.pallas_call(
        kernel,
        out_shape=out_shape,
        grid_spec=pltpu.PrefetchScalarGridSpec(
            num_scalar_prefetch=0,
            grid=(1,),                     # fully fused: one step, all in VMEM
            in_specs=in_specs,
            out_specs=out_specs,
        ),
        compiler_params=pltpu.CompilerParams(
            dimension_semantics=("arbitrary",)),
        cost_estimate=pl.CostEstimate(flops=int(flops), transcendentals=0,
                                      bytes_accessed=int(bytes_accessed)),
    )(*in_arrays)

    # Cheap per-feature unpad / relayout to the module's NCHW outputs.
    feats = []
    for s in range(n_stages):
        ho, wo = spatial[s]
        f = outs[s].reshape(N, ho, wo, LANE)[..., :channels[s]]
        feats.append(jnp.transpose(f, (0, 3, 1, 2)))
    return tuple(feats)


# -------------------------------- reference ----------------------------------
def _ref_forward(x_nchw, params):
    """Pure-JAX reference with the same bf16-operand / f32-accumulate numerics."""
    x = jnp.transpose(x_nchw, (0, 2, 3, 1)).astype(jnp.float32)
    feats = []
    for (w, b) in params:
        w_hwio = jnp.transpose(w, (2, 3, 1, 0)).astype(jnp.bfloat16)
        y = lax.conv_general_dilated(
            x.astype(jnp.bfloat16), w_hwio, window_strides=(2, 2),
            padding=((1, 1), (1, 1)),
            dimension_numbers=("NHWC", "HWIO", "NHWC"),
            preferred_element_type=jnp.float32)
        y = jnp.maximum(y + b[None, None, None, :], 0.0)
        feats.append(jnp.transpose(y, (0, 3, 1, 2)))
        x = y
    return tuple(feats)


if __name__ == "__main__":
    key = jax.random.PRNGKey(0)
    kx, kp = jax.random.split(key)

    # Small input consistent with the module: NCHW, in_channels=3 (module default)
    x = jax.random.normal(kx, (2, 3, 16, 16), jnp.float32)
    params = init_params(kp, in_channels=3, stage_channels=(16, 32, 64))
    weights, biases, channels = pack_params(params)

    feats = timm_wrapper_forward(x, weights, biases, channels=channels)
    feats = jax.block_until_ready(feats)

    # sanity check against pure-JAX reference (same bf16 operand rounding)
    ref = _ref_forward(x, params)
    for f, r in zip(feats, ref):
        assert f.shape == r.shape, (f.shape, r.shape)
        scale = float(jnp.max(jnp.abs(r))) + 1e-6
        err = float(jnp.max(jnp.abs(f - r)))
        assert err < 2e-2 * scale + 1e-4, (err, scale)

    assert isinstance(feats, tuple) and len(feats) == 3
    assert feats[0].shape == (2, 16, 8, 8)
    assert feats[1].shape == (2, 32, 4, 4)
    assert feats[2].shape == (2, 64, 2, 2)

    print("KERNEL_OK")
</pallas_src>

<mosaic_0001>
module attributes {stable_mosaic.version = 11 : i64} {
  func.func @_fused_backbone_kernel(%arg0: i32, %arg1: memref<512x3xbf16, #tpu.memory_space<vmem>>, %arg2: memref<9x128x512xbf16, #tpu.memory_space<vmem>>, %arg3: memref<27x128xbf16, #tpu.memory_space<vmem>>, %arg4: memref<1x128xf32, #tpu.memory_space<vmem>>, %arg5: memref<9x32x128xbf16, #tpu.memory_space<vmem>>, %arg6: memref<144x128xbf16, #tpu.memory_space<vmem>>, %arg7: memref<1x128xf32, #tpu.memory_space<vmem>>, %arg8: memref<9x8x32xbf16, #tpu.memory_space<vmem>>, %arg9: memref<288x128xbf16, #tpu.memory_space<vmem>>, %arg10: memref<1x128xf32, #tpu.memory_space<vmem>>, %arg11: memref<128x128xf32, #tpu.memory_space<vmem>>, %arg12: memref<32x128xf32, #tpu.memory_space<vmem>>, %arg13: memref<8x128xf32, #tpu.memory_space<vmem>>) attributes {dimension_semantics = [#tpu.dimension_semantics<arbitrary>], iteration_bounds = array<i64: 1>, scalar_prefetch = 0 : i64, scratch_operands = 0 : i64, tpu.core_type = #tpu.core_type<tc>, window_params = [{pipeline_mode = #tpu.pipeline_mode<synchronous>, transform_indices = @transform_0, window_bounds = array<i64: 512, 3>}, {pipeline_mode = #tpu.pipeline_mode<synchronous>, transform_indices = @transform_1, window_bounds = array<i64: 9, 128, 512>}, {pipeline_mode = #tpu.pipeline_mode<synchronous>, transform_indices = @transform_2, window_bounds = array<i64: 27, 128>}, {pipeline_mode = #tpu.pipeline_mode<synchronous>, transform_indices = @transform_3, window_bounds = array<i64: 1, 128>}, {pipeline_mode = #tpu.pipeline_mode<synchronous>, transform_indices = @transform_4, window_bounds = array<i64: 9, 32, 128>}, {pipeline_mode = #tpu.pipeline_mode<synchronous>, transform_indices = @transform_5, window_bounds = array<i64: 144, 128>}, {pipeline_mode = #tpu.pipeline_mode<synchronous>, transform_indices = @transform_6, window_bounds = array<i64: 1, 128>}, {pipeline_mode = #tpu.pipeline_mode<synchronous>, transform_indices = @transform_7, window_bounds = array<i64: 9, 8, 32>}, {pipeline_mode = #tpu.pipeline_mode<synchronous>, transform_indices = @transform_8, window_bounds = array<i64: 288, 128>}, {pipeline_mode = #tpu.pipeline_mode<synchronous>, transform_indices = @transform_9, window_bounds = array<i64: 1, 128>}, {pipeline_mode = #tpu.pipeline_mode<synchronous>, transform_indices = @transform_10, window_bounds = array<i64: 128, 128>}, {pipeline_mode = #tpu.pipeline_mode<synchronous>, transform_indices = @transform_11, window_bounds = array<i64: 32, 128>}, {pipeline_mode = #tpu.pipeline_mode<synchronous>, transform_indices = @transform_12, window_bounds = array<i64: 8, 128>}]} {
    %c0 = arith.constant 0 : index
    %c0_0 = arith.constant 0 : index
    %0 = vector.load %arg1[%c0, %c0_0] : memref<512x3xbf16, #tpu.memory_space<vmem>>, vector<512x3xbf16>
    %c0_1 = arith.constant 0 : index
    %c0_2 = arith.constant 0 : index
    %c0_3 = arith.constant 0 : index
    %1 = vector.load %arg2[%c0_1, %c0_2, %c0_3] : memref<9x128x512xbf16, #tpu.memory_space<vmem>>, vector<1x128x512xbf16>
    %2 = vector.shape_cast %1 : vector<1x128x512xbf16> to vector<128x512xbf16>
    %cst = arith.constant dense<0.000000e+00> : vector<128x3xf32>
    %3 = tpu.matmul %2, %0, %cst {dimension_numbers = #tpu.dot_dimension_numbers<[1], [0], [0], [1], [0, 0, 1, 1], [], []>} : vector<128x512xbf16>, vector<512x3xbf16>, vector<128x3xf32> -> vector<128x3xf32>
    %c1 = arith.constant 1 : index
    %c0_4 = arith.constant 0 : index
    %c0_5 = arith.constant 0 : index
    %4 = vector.load %arg2[%c1, %c0_4, %c0_5] : memref<9x128x512xbf16, #tpu.memory_space<vmem>>, vector<1x128x512xbf16>
    %5 = vector.shape_cast %4 : vector<1x128x512xbf16> to vector<128x512xbf16>
    %cst_6 = arith.constant dense<0.000000e+00> : vector<128x3xf32>
    %6 = tpu.matmul %5, %0, %cst_6 {dimension_numbers = #tpu.dot_dimension_numbers<[1], [0], [0], [1], [0, 0, 1, 1], [], []>} : vector<128x512xbf16>, vector<512x3xbf16>, vector<128x3xf32> -> vector<128x3xf32>
    %c2 = arith.constant 2 : index
    %c0_7 = arith.constant 0 : index
    %c0_8 = arith.constant 0 : index
    %7 = vector.load %arg2[%c2, %c0_7, %c0_8] : memref<9x128x512xbf16, #tpu.memory_space<vmem>>, vector<1x128x512xbf16>
    %8 = vector.shape_cast %7 : vector<1x128x512xbf16> to vector<128x512xbf16>
    %cst_9 = arith.constant dense<0.000000e+00> : vector<128x3xf32>
    %9 = tpu.matmul %8, %0, %cst_9 {dimension_numbers = #tpu.dot_dimension_numbers<[1], [0], [0], [1], [0, 0, 1, 1], [], []>} : vector<128x512xbf16>, vector<512x3xbf16>, vector<128x3xf32> -> vector<128x3xf32>
    %c3 = arith.constant 3 : index
    %c0_10 = arith.constant 0 : index
    %c0_11 = arith.constant 0 : index
    %10 = vector.load %arg2[%c3, %c0_10, %c0_11] : memref<9x128x512xbf16, #tpu.memory_space<vmem>>, vector<1x128x512xbf16>
    %11 = vector.shape_cast %10 : vector<1x128x512xbf16> to vector<128x512xbf16>
    %cst_12 = arith.constant dense<0.000000e+00> : vector<128x3xf32>
    %12 = tpu.matmul %11, %0, %cst_12 {dimension_numbers = #tpu.dot_dimension_numbers<[1], [0], [0], [1], [0, 0, 1, 1], [], []>} : vector<128x512xbf16>, vector<512x3xbf16>, vector<128x3xf32> -> vector<128x3xf32>
    %c4 = arith.constant 4 : index
    %c0_13 = arith.constant 0 : index
    %c0_14 = arith.constant 0 : index
    %13 = vector.load %arg2[%c4, %c0_13, %c0_14] : memref<9x128x512xbf16, #tpu.memory_space<vmem>>, vector<1x128x512xbf16>
    %14 = vector.shape_cast %13 : vector<1x128x512xbf16> to vector<128x512xbf16>
    %cst_15 = arith.constant dense<0.000000e+00> : vector<128x3xf32>
    %15 = tpu.matmul %14, %0, %cst_15 {dimension_numbers = #tpu.dot_dimension_numbers<[1], [0], [0], [1], [0, 0, 1, 1], [], []>} : vector<128x512xbf16>, vector<512x3xbf16>, vector<128x3xf32> -> vector<128x3xf32>
    %c5 = arith.constant 5 : index
    %c0_16 = arith.constant 0 : index
    %c0_17 = arith.constant 0 : index
    %16 = vector.load %arg2[%c5, %c0_16, %c0_17] : memref<9x128x512xbf16, #tpu.memory_space<vmem>>, vector<1x128x512xbf16>
    %17 = vector.shape_cast %16 : vector<1x128x512xbf16> to vector<128x512xbf16>
    %cst_18 = arith.constant dense<0.000000e+00> : vector<128x3xf32>
    %18 = tpu.matmul %17, %0, %cst_18 {dimension_numbers = #tpu.dot_dimension_numbers<[1], [0], [0], [1], [0, 0, 1, 1], [], []>} : vector<128x512xbf16>, vector<512x3xbf16>, vector<128x3xf32> -> vector<128x3xf32>
    %c6 = arith.constant 6 : index
    %c0_19 = arith.constant 0 : index
    %c0_20 = arith.constant 0 : index
    %19 = vector.load %arg2[%c6, %c0_19, %c0_20] : memref<9x128x512xbf16, #tpu.memory_space<vmem>>, vector<1x128x512xbf16>
    %20 = vector.shape_cast %19 : vector<1x128x512xbf16> to vector<128x512xbf16>
    %cst_21 = arith.constant dense<0.000000e+00> : vector<128x3xf32>
    %21 = tpu.matmul %20, %0, %cst_21 {dimension_numbers = #tpu.dot_dimension_numbers<[1], [0], [0], [1], [0, 0, 1, 1], [], []>} : vector<128x512xbf16>, vector<512x3xbf16>, vector<128x3xf32> -> vector<128x3xf32>
    %c7 = arith.constant 7 : index
    %c0_22 = arith.constant 0 : index
    %c0_23 = arith.constant 0 : index
    %22 = vector.load %arg2[%c7, %c0_22, %c0_23] : memref<9x128x512xbf16, #tpu.memory_space<vmem>>, vector<1x128x512xbf16>
    %23 = vector.shape_cast %22 : vector<1x128x512xbf16> to vector<128x512xbf16>
    %cst_24 = arith.constant dense<0.000000e+00> : vector<128x3xf32>
    %24 = tpu.matmul %23, %0, %cst_24 {dimension_numbers = #tpu.dot_dimension_numbers<[1], [0], [0], [1], [0, 0, 1, 1], [], []>} : vector<128x512xbf16>, vector<512x3xbf16>, vector<128x3xf32> -> vector<128x3xf32>
    %c8 = arith.constant 8 : index
    %c0_25 = arith.constant 0 : index
    %c0_26 = arith.constant 0 : index
    %25 = vector.load %arg2[%c8, %c0_25, %c0_26] : memref<9x128x512xbf16, #tpu.memory_space<vmem>>, vector<1x128x512xbf16>
    %26 = vector.shape_cast %25 : vector<1x128x512xbf16> to vector<128x512xbf16>
    %cst_27 = arith.constant dense<0.000000e+00> : vector<128x3xf32>
    %27 = tpu.matmul %26, %0, %cst_27 {dimension_numbers = #tpu.dot_dimension_numbers<[1], [0], [0], [1], [0, 0, 1, 1], [], []>} : vector<128x512xbf16>, vector<512x3xbf16>, vector<128x3xf32> -> vector<128x3xf32>
    %28 = tpu.concatenate %3, %6, %9, %12, %15, %18, %21, %24, %27 in 1 : vector<128x3xf32>, vector<128x3xf32>, vector<128x3xf32>, vector<128x3xf32>, vector<128x3xf32>, vector<128x3xf32>, vector<128x3xf32>, vector<128x3xf32>, vector<128x3xf32> -> vector<128x27xf32>
    %29 = arith.truncf %28 : vector<128x27xf32> to vector<128x27xbf16>
    %c0_28 = arith.constant 0 : index
    %c0_29 = arith.constant 0 : index
    %30 = vector.load %arg3[%c0_28, %c0_29] : memref<27x128xbf16, #tpu.memory_space<vmem>>, vector<27x128xbf16>
    %cst_30 = arith.constant dense<0.000000e+00> : vector<128x128xf32>
    %31 = tpu.matmul %29, %30, %cst_30 {dimension_numbers = #tpu.dot_dimension_numbers<[1], [0], [0], [1], [0, 0, 1, 1], [], []>} : vector<128x27xbf16>, vector<27x128xbf16>, vector<128x128xf32> -> vector<128x128xf32>
    %c0_31 = arith.constant 0 : index
    %c0_32 = arith.constant 0 : index
    %32 = vector.load %arg4[%c0_31, %c0_32] : memref<1x128xf32, #tpu.memory_space<vmem>>, vector<1x128xf32>
    %33 = vector.broadcast %32 : vector<1x128xf32> to vector<128x128xf32>
    %34 = arith.addf %31, %33 : vector<128x128xf32>
    %cst_33 = arith.constant 0.000000e+00 : f32
    %35 = vector.broadcast %cst_33 : f32 to vector<128x128xf32>
    %36 = arith.maximumf %34, %35 : vector<128x128xf32>
    %c0_34 = arith.constant 0 : index
    %c0_35 = arith.constant 0 : index
    %37 = vector.load %arg11[%c0_34, %c0_35] : memref<128x128xf32, #tpu.memory_space<vmem>>, vector<128x128xf32>
    tpu.vector_store %arg11[%c0_34, %c0_35], %36 {strides = array<i32>} : memref<128x128xf32, #tpu.memory_space<vmem>>, vector<128x128xf32>,
    %38 = vector.extract_strided_slice %36 {offsets = [0, 0], sizes = [128, 16], strides = [1, 1]} : vector<128x128xf32> to vector<128x16xf32>
    %39 = arith.truncf %38 : vector<128x16xf32> to vector<128x16xbf16>
    %c0_36 = arith.constant 0 : index
    %c0_37 = arith.constant 0 : index
    %c0_38 = arith.constant 0 : index
    %40 = vector.load %arg5[%c0_36, %c0_37, %c0_38] : memref<9x32x128xbf16, #tpu.memory_space<vmem>>, vector<1x32x128xbf16>
    %41 = vector.shape_cast %40 : vector<1x32x128xbf16> to vector<32x128xbf16>
    %cst_39 = arith.constant dense<0.000000e+00> : vector<32x16xf32>
    %42 = tpu.matmul %41, %39, %cst_39 {dimension_numbers = #tpu.dot_dimension_numbers<[1], [0], [0], [1], [0, 0, 1, 1], [], []>} : vector<32x128xbf16>, vector<128x16xbf16>, vector<32x16xf32> -> vector<32x16xf32>
    %c1_40 = arith.constant 1 : index
    %c0_41 = arith.constant 0 : index
    %c0_42 = arith.constant 0 : index
    %43 = vector.load %arg5[%c1_40, %c0_41, %c0_42] : memref<9x32x128xbf16, #tpu.memory_space<vmem>>, vector<1x32x128xbf16>
    %44 = vector.shape_cast %43 : vector<1x32x128xbf16> to vector<32x128xbf16>
    %cst_43 = arith.constant dense<0.000000e+00> : vector<32x16xf32>
    %45 = tpu.matmul %44, %39, %cst_43 {dimension_numbers = #tpu.dot_dimension_numbers<[1], [0], [0], [1], [0, 0, 1, 1], [], []>} : vector<32x128xbf16>, vector<128x16xbf16>, vector<32x16xf32> -> vector<32x16xf32>
    %c2_44 = arith.constant 2 : index
    %c0_45 = arith.constant 0 : index
    %c0_46 = arith.constant 0 : index
    %46 = vector.load %arg5[%c2_44, %c0_45, %c0_46] : memref<9x32x128xbf16, #tpu.memory_space<vmem>>, vector<1x32x128xbf16>
    %47 = vector.shape_cast %46 : vector<1x32x128xbf16> to vector<32x128xbf16>
    %cst_47 = arith.constant dense<0.000000e+00> : vector<32x16xf32>
    %48 = tpu.matmul %47, %39, %cst_47 {dimension_numbers = #tpu.dot_dimension_numbers<[1], [0], [0], [1], [0, 0, 1, 1], [], []>} : vector<32x128xbf16>, vector<128x16xbf16>, vector<32x16xf32> -> vector<32x16xf32>
    %c3_48 = arith.constant 3 : index
    %c0_49 = arith.constant 0 : index
    %c0_50 = arith.constant 0 : index
    %49 = vector.load %arg5[%c3_48, %c0_49, %c0_50] : memref<9x32x128xbf16, #tpu.memory_space<vmem>>, vector<1x32x128xbf16>
    %50 = vector.shape_cast %49 : vector<1x32x128xbf16> to vector<32x128xbf16>
    %cst_51 = arith.constant dense<0.000000e+00> : vector<32x16xf32>
    %51 = tpu.matmul %50, %39, %cst_51 {dimension_numbers = #tpu.dot_dimension_numbers<[1], [0], [0], [1], [0, 0, 1, 1], [], []>} : vector<32x128xbf16>, vector<128x16xbf16>, vector<32x16xf32> -> vector<32x16xf32>
    %c4_52 = arith.constant 4 : index
    %c0_53 = arith.constant 0 : index
    %c0_54 = arith.constant 0 : index
    %52 = vector.load %arg5[%c4_52, %c0_53, %c0_54] : memref<9x32x128xbf16, #tpu.memory_space<vmem>>, vector<1x32x128xbf16>
    %53 = vector.shape_cast %52 : vector<1x32x128xbf16> to vector<32x128xbf16>
    %cst_55 = arith.constant dense<0.000000e+00> : vector<32x16xf32>
    %54 = tpu.matmul %53, %39, %cst_55 {dimension_numbers = #tpu.dot_dimension_numbers<[1], [0], [0], [1], [0, 0, 1, 1], [], []>} : vector<32x128xbf16>, vector<128x16xbf16>, vector<32x16xf32> -> vector<32x16xf32>
    %c5_56 = arith.constant 5 : index
    %c0_57 = arith.constant 0 : index
    %c0_58 = arith.constant 0 : index
    %55 = vector.load %arg5[%c5_56, %c0_57, %c0_58] : memref<9x32x128xbf16, #tpu.memory_space<vmem>>, vector<1x32x128xbf16>
    %56 = vector.shape_cast %55 : vector<1x32x128xbf16> to vector<32x128xbf16>
    %cst_59 = arith.constant dense<0.000000e+00> : vector<32x16xf32>
    %57 = tpu.matmul %56, %39, %cst_59 {dimension_numbers = #tpu.dot_dimension_numbers<[1], [0], [0], [1], [0, 0, 1, 1], [], []>} : vector<32x128xbf16>, vector<128x16xbf16>, vector<32x16xf32> -> vector<32x16xf32>
    %c6_60 = arith.constant 6 : index
    %c0_61 = arith.constant 0 : index
    %c0_62 = arith.constant 0 : index
    %58 = vector.load %arg5[%c6_60, %c0_61, %c0_62] : memref<9x32x128xbf16, #tpu.memory_space<vmem>>, vector<1x32x128xbf16>
    %59 = vector.shape_cast %58 : vector<1x32x128xbf16> to vector<32x128xbf16>
    %cst_63 = arith.constant dense<0.000000e+00> : vector<32x16xf32>
    %60 = tpu.matmul %59, %39, %cst_63 {dimension_numbers = #tpu.dot_dimension_numbers<[1], [0], [0], [1], [0, 0, 1, 1], [], []>} : vector<32x128xbf16>, vector<128x16xbf16>, vector<32x16xf32> -> vector<32x16xf32>
    %c7_64 = arith.constant 7 : index
    %c0_65 = arith.constant 0 : index
    %c0_66 = arith.constant 0 : index
    %61 = vector.load %arg5[%c7_64, %c0_65, %c0_66] : memref<9x32x128xbf16, #tpu.memory_space<vmem>>, vector<1x32x128xbf16>
    %62 = vector.shape_cast %61 : vector<1x32x128xbf16> to vector<32x128xbf16>
    %cst_67 = arith.constant dense<0.000000e+00> : vector<32x16xf32>
    %63 = tpu.matmul %62, %39, %cst_67 {dimension_numbers = #tpu.dot_dimension_numbers<[1], [0], [0], [1], [0, 0, 1, 1], [], []>} : vector<32x128xbf16>, vector<128x16xbf16>, vector<32x16xf32> -> vector<32x16xf32>
    %c8_68 = arith.constant 8 : index
    %c0_69 = arith.constant 0 : index
    %c0_70 = arith.constant 0 : index
    %64 = vector.load %arg5[%c8_68, %c0_69, %c0_70] : memref<9x32x128xbf16, #tpu.memory_space<vmem>>, vector<1x32x128xbf16>
    %65 = vector.shape_cast %64 : vector<1x32x128xbf16> to vector<32x128xbf16>
    %cst_71 = arith.constant dense<0.000000e+00> : vector<32x16xf32>
    %66 = tpu.matmul %65, %39, %cst_71 {dimension_numbers = #tpu.dot_dimension_numbers<[1], [0], [0], [1], [0, 0, 1, 1], [], []>} : vector<32x128xbf16>, vector<128x16xbf16>, vector<32x16xf32> -> vector<32x16xf32>
    %67 = tpu.concatenate %42, %45, %48, %51, %54, %57, %60, %63, %66 in 1 : vector<32x16xf32>, vector<32x16xf32>, vector<32x16xf32>, vector<32x16xf32>, vector<32x16xf32>, vector<32x16xf32>, vector<32x16xf32>, vector<32x16xf32>, vector<32x16xf32> -> vector<32x144xf32>
    %68 = arith.truncf %67 : vector<32x144xf32> to vector<32x144xbf16>
    %c0_72 = arith.constant 0 : index
    %c0_73 = arith.constant 0 : index
    %69 = vector.load %arg6[%c0_72, %c0_73] : memref<144x128xbf16, #tpu.memory_space<vmem>>, vector<144x128xbf16>
    %cst_74 = arith.constant dense<0.000000e+00> : vector<32x128xf32>
    %70 = tpu.matmul %68, %69, %cst_74 {dimension_numbers = #tpu.dot_dimension_numbers<[1], [0], [0], [1], [0, 0, 1, 1], [], []>} : vector<32x144xbf16>, vector<144x128xbf16>, vector<32x128xf32> -> vector<32x128xf32>
    %c0_75 = arith.constant 0 : index
    %c0_76 = arith.constant 0 : index
    %71 = vector.load %arg7[%c0_75, %c0_76] : memref<1x128xf32, #tpu.memory_space<vmem>>, vector<1x128xf32>
    %72 = vector.broadcast %71 : vector<1x128xf32> to vector<32x128xf32>
    %73 = arith.addf %70, %72 : vector<32x128xf32>
    %cst_77 = arith.constant 0.000000e+00 : f32
    %74 = vector.broadcast %cst_77 : f32 to vector<32x128xf32>
    %75 = arith.maximumf %73, %74 : vector<32x128xf32>
    %c0_78 = arith.constant 0 : index
    %c0_79 = arith.constant 0 : index
    %76 = vector.load %arg12[%c0_78, %c0_79] : memref<32x128xf32, #tpu.memory_space<vmem>>, vector<32x128xf32>
    tpu.vector_store %arg12[%c0_78, %c0_79], %75 {strides = array<i32>} : memref<32x128xf32, #tpu.memory_space<vmem>>, vector<32x128xf32>,
    %77 = vector.extract_strided_slice %75 {offsets = [0, 0], sizes = [32, 32], strides = [1, 1]} : vector<32x128xf32> to vector<32x32xf32>
    %78 = arith.truncf %77 : vector<32x32xf32> to vector<32x32xbf16>
    %c0_80 = arith.constant 0 : index
    %c0_81 = arith.constant 0 : index
    %c0_82 = arith.constant 0 : index
    %79 = vector.load %arg8[%c0_80, %c0_81, %c0_82] : memref<9x8x32xbf16, #tpu.memory_space<vmem>>, vector<1x8x32xbf16>
    %80 = vector.shape_cast %79 : vector<1x8x32xbf16> to vector<8x32xbf16>
    %cst_83 = arith.constant dense<0.000000e+00> : vector<8x32xf32>
    %81 = tpu.matmul %80, %78, %cst_83 {dimension_numbers = #tpu.dot_dimension_numbers<[1], [0], [0], [1], [0, 0, 1, 1], [], []>} : vector<8x32xbf16>, vector<32x32xbf16>, vector<8x32xf32> -> vector<8x32xf32>
    %c1_84 = arith.constant 1 : index
    %c0_85 = arith.constant 0 : index
    %c0_86 = arith.constant 0 : index
    %82 = vector.load %arg8[%c1_84, %c0_85, %c0_86] : memref<9x8x32xbf16, #tpu.memory_space<vmem>>, vector<1x8x32xbf16>
    %83 = vector.shape_cast %82 : vector<1x8x32xbf16> to vector<8x32xbf16>
    %cst_87 = arith.constant dense<0.000000e+00> : vector<8x32xf32>
    %84 = tpu.matmul %83, %78, %cst_87 {dimension_numbers = #tpu.dot_dimension_numbers<[1], [0], [0], [1], [0, 0, 1, 1], [], []>} : vector<8x32xbf16>, vector<32x32xbf16>, vector<8x32xf32> -> vector<8x32xf32>
    %c2_88 = arith.constant 2 : index
    %c0_89 = arith.constant 0 : index
    %c0_90 = arith.constant 0 : index
    %85 = vector.load %arg8[%c2_88, %c0_89, %c0_90] : memref<9x8x32xbf16, #tpu.memory_space<vmem>>, vector<1x8x32xbf16>
    %86 = vector.shape_cast %85 : vector<1x8x32xbf16> to vector<8x32xbf16>
    %cst_91 = arith.constant dense<0.000000e+00> : vector<8x32xf32>
    %87 = tpu.matmul %86, %78, %cst_91 {dimension_numbers = #tpu.dot_dimension_numbers<[1], [0], [0], [1], [0, 0, 1, 1], [], []>} : vector<8x32xbf16>, vector<32x32xbf16>, vector<8x32xf32> -> vector<8x32xf32>
    %c3_92 = arith.constant 3 : index
    %c0_93 = arith.constant 0 : index
    %c0_94 = arith.constant 0 : index
    %88 = vector.load %arg8[%c3_92, %c0_93, %c0_94] : memref<9x8x32xbf16, #tpu.memory_space<vmem>>, vector<1x8x32xbf16>
    %89 = vector.shape_cast %88 : vector<1x8x32xbf16> to vector<8x32xbf16>
    %cst_95 = arith.constant dense<0.000000e+00> : vector<8x32xf32>
    %90 = tpu.matmul %89, %78, %cst_95 {dimension_numbers = #tpu.dot_dimension_numbers<[1], [0], [0], [1], [0, 0, 1, 1], [], []>} : vector<8x32xbf16>, vector<32x32xbf16>, vector<8x32xf32> -> vector<8x32xf32>
    %c4_96 = arith.constant 4 : index
    %c0_97 = arith.constant 0 : index
    %c0_98 = arith.constant 0 : index
    %91 = vector.load %arg8[%c4_96, %c0_97, %c0_98] : memref<9x8x32xbf16, #tpu.memory_space<vmem>>, vector<1x8x32xbf16>
    %92 = vector.shape_cast %91 : vector<1x8x32xbf16> to vector<8x32xbf16>
    %cst_99 = arith.constant dense<0.000000e+00> : vector<8x32xf32>
    %93 = tpu.matmul %92, %78, %cst_99 {dimension_numbers = #tpu.dot_dimension_numbers<[1], [0], [0], [1], [0, 0, 1, 1], [], []>} : vector<8x32xbf16>, vector<32x32xbf16>, vector<8x32xf32> -> vector<8x32xf32>
    %c5_100 = arith.constant 5 : index
    %c0_101 = arith.constant 0 : index
    %c0_102 = arith.constant 0 : index
    %94 = vector.load %arg8[%c5_100, %c0_101, %c0_102] : memref<9x8x32xbf16, #tpu.memory_space<vmem>>, vector<1x8x32xbf16>
    %95 = vector.shape_cast %94 : vector<1x8x32xbf16> to vector<8x32xbf16>
    %cst_103 = arith.constant dense<0.000000e+00> : vector<8x32xf32>
    %96 = tpu.matmul %95, %78, %cst_103 {dimension_numbers = #tpu.dot_dimension_numbers<[1], [0], [0], [1], [0, 0, 1, 1], [], []>} : vector<8x32xbf16>, vector<32x32xbf16>, vector<8x32xf32> -> vector<8x32xf32>
    %c6_104 = arith.constant 6 : index
    %c0_105 = arith.constant 0 : index
    %c0_106 = arith.constant 0 : index
    %97 = vector.load %arg8[%c6_104, %c0_105, %c0_106] : memref<9x8x32xbf16, #tpu.memory_space<vmem>>, vector<1x8x32xbf16>
    %98 = vector.shape_cast %97 : vector<1x8x32xbf16> to vector<8x32xbf16>
    %cst_107 = arith.constant dense<0.000000e+00> : vector<8x32xf32>
    %99 = tpu.matmul %98, %78, %cst_107 {dimension_numbers = #tpu.dot_dimension_numbers<[1], [0], [0], [1], [0, 0, 1, 1], [], []>} : vector<8x32xbf16>, vector<32x32xbf16>, vector<8x32xf32> -> vector<8x32xf32>
    %c7_108 = arith.constant 7 : index
    %c0_109 = arith.constant 0 : index
    %c0_110 = arith.constant 0 : index
    %100 = vector.load %arg8[%c7_108, %c0_109, %c0_110] : memref<9x8x32xbf16, #tpu.memory_space<vmem>>, vector<1x8x32xbf16>
    %101 = vector.shape_cast %100 : vector<1x8x32xbf16> to vector<8x32xbf16>
    %cst_111 = arith.constant dense<0.000000e+00> : vector<8x32xf32>
    %102 = tpu.matmul %101, %78, %cst_111 {dimension_numbers = #tpu.dot_dimension_numbers<[1], [0], [0], [1], [0, 0, 1, 1], [], []>} : vector<8x32xbf16>, vector<32x32xbf16>, vector<8x32xf32> -> vector<8x32xf32>
    %c8_112 = arith.constant 8 : index
    %c0_113 = arith.constant 0 : index
    %c0_114 = arith.constant 0 : index
    %103 = vector.load %arg8[%c8_112, %c0_113, %c0_114] : memref<9x8x32xbf16, #tpu.memory_space<vmem>>, vector<1x8x32xbf16>
    %104 = vector.shape_cast %103 : vector<1x8x32xbf16> to vector<8x32xbf16>
    %cst_115 = arith.constant dense<0.000000e+00> : vector<8x32xf32>
    %105 = tpu.matmul %104, %78, %cst_115 {dimension_numbers = #tpu.dot_dimension_numbers<[1], [0], [0], [1], [0, 0, 1, 1], [], []>} : vector<8x32xbf16>, vector<32x32xbf16>, vector<8x32xf32> -> vector<8x32xf32>
    %106 = tpu.concatenate %81, %84, %87, %90, %93, %96, %99, %102, %105 in 1 : vector<8x32xf32>, vector<8x32xf32>, vector<8x32xf32>, vector<8x32xf32>, vector<8x32xf32>, vector<8x32xf32>, vector<8x32xf32>, vector<8x32xf32>, vector<8x32xf32> -> vector<8x288xf32>
    %107 = arith.truncf %106 : vector<8x288xf32> to vector<8x288xbf16>
    %c0_116 = arith.constant 0 : index
    %c0_117 = arith.constant 0 : index
    %108 = vector.load %arg9[%c0_116, %c0_117] : memref<288x128xbf16, #tpu.memory_space<vmem>>, vector<288x128xbf16>
    %cst_118 = arith.constant dense<0.000000e+00> : vector<8x128xf32>
    %109 = tpu.matmul %107, %108, %cst_118 {dimension_numbers = #tpu.dot_dimension_numbers<[1], [0], [0], [1], [0, 0, 1, 1], [], []>} : vector<8x288xbf16>, vector<288x128xbf16>, vector<8x128xf32> -> vector<8x128xf32>
    %c0_119 = arith.constant 0 : index
    %c0_120 = arith.constant 0 : index
    %110 = vector.load %arg10[%c0_119, %c0_120] : memref<1x128xf32, #tpu.memory_space<vmem>>, vector<1x128xf32>
    %111 = vector.broadcast %110 : vector<1x128xf32> to vector<8x128xf32>
    %112 = arith.addf %109, %111 : vector<8x128xf32>
    %cst_121 = arith.constant 0.000000e+00 : f32
    %113 = vector.broadcast %cst_121 : f32 to vector<8x128xf32>
    %114 = arith.maximumf %112, %113 : vector<8x128xf32>
    %c0_122 = arith.constant 0 : index
    %c0_123 = arith.constant 0 : index
    %115 = vector.load %arg13[%c0_122, %c0_123] : memref<8x128xf32, #tpu.memory_space<vmem>>, vector<8x128xf32>
    tpu.vector_store %arg13[%c0_122, %c0_123], %114 {strides = array<i32>} : memref<8x128xf32, #tpu.memory_space<vmem>>, vector<8x128xf32>,
    return
  }
  func.func @transform_0(%arg0: i32) -> (i32, i32) {
    %c0_i32 = arith.constant 0 : i32
    %c0_i32_0 = arith.constant 0 : i32
    %c0_i32_1 = arith.constant 0 : i32
    return %c0_i32, %c0_i32_0 : i32, i32
  }
  func.func @transform_1(%arg0: i32) -> (i32, i32, i32) {
    %c0_i32 = arith.constant 0 : i32
    %c0_i32_0 = arith.constant 0 : i32
    %c0_i32_1 = arith.constant 0 : i32
    %c0_i32_2 = arith.constant 0 : i32
    return %c0_i32, %c0_i32_0, %c0_i32_1 : i32, i32, i32
  }
  func.func @transform_2(%arg0: i32) -> (i32, i32) {
    %c0_i32 = arith.constant 0 : i32
    %c0_i32_0 = arith.constant 0 : i32
    %c0_i32_1 = arith.constant 0 : i32
    return %c0_i32, %c0_i32_0 : i32, i32
  }
  func.func @transform_3(%arg0: i32) -> (i32, i32) {
    %c0_i32 = arith.constant 0 : i32
    %c0_i32_0 = arith.constant 0 : i32
    %c0_i32_1 = arith.constant 0 : i32
    return %c0_i32, %c0_i32_0 : i32, i32
  }
  func.func @transform_4(%arg0: i32) -> (i32, i32, i32) {
    %c0_i32 = arith.constant 0 : i32
    %c0_i32_0 = arith.constant 0 : i32
    %c0_i32_1 = arith.constant 0 : i32
    %c0_i32_2 = arith.constant 0 : i32
    return %c0_i32, %c0_i32_0, %c0_i32_1 : i32, i32, i32
  }
  func.func @transform_5(%arg0: i32) -> (i32, i32) {
    %c0_i32 = arith.constant 0 : i32
    %c0_i32_0 = arith.constant 0 : i32
    %c0_i32_1 = arith.constant 0 : i32
    return %c0_i32, %c0_i32_0 : i32, i32
  }
  func.func @transform_6(%arg0: i32) -> (i32, i32) {
    %c0_i32 = arith.constant 0 : i32
    %c0_i32_0 = arith.constant 0 : i32
    %c0_i32_1 = arith.constant 0 : i32
    return %c0_i32, %c0_i32_0 : i32, i32
  }
  func.func @transform_7(%arg0: i32) -> (i32, i32, i32) {
    %c0_i32 = arith.constant 0 : i32
    %c0_i32_0 = arith.constant 0 : i32
    %c0_i32_1 = arith.constant 0 : i32
    %c0_i32_2 = arith.constant 0 : i32
    return %c0_i32, %c0_i32_0, %c0_i32_1 : i32, i32, i32
  }
  func.func @transform_8(%arg0: i32) -> (i32, i32) {
    %c0_i32 = arith.constant 0 : i32
    %c0_i32_0 = arith.constant 0 : i32
    %c0_i32_1 = arith.constant 0 : i32
    return %c0_i32, %c0_i32_0 : i32, i32
  }
  func.func @transform_9(%arg0: i32) -> (i32, i32) {
    %c0_i32 = arith.constant 0 : i32
    %c0_i32_0 = arith.constant 0 : i32
    %c0_i32_1 = arith.constant 0 : i32
    return %c0_i32, %c0_i32_0 : i32, i32
  }
  func.func @transform_10(%arg0: i32) -> (i32, i32) {
    %c0_i32 = arith.constant 0 : i32
    %c0_i32_0 = arith.constant 0 : i32
    %c0_i32_1 = arith.constant 0 : i32
    return %c0_i32, %c0_i32_0 : i32, i32
  }
  func.func @transform_11(%arg0: i32) -> (i32, i32) {
    %c0_i32 = arith.constant 0 : i32
    %c0_i32_0 = arith.constant 0 : i32
    %c0_i32_1 = arith.constant 0 : i32
    return %c0_i32, %c0_i32_0 : i32, i32
  }
  func.func @transform_12(%arg0: i32) -> (i32, i32) {
    %c0_i32 = arith.constant 0 : i32
    %c0_i32_0 = arith.constant 0 : i32
    %c0_i32_1 = arith.constant 0 : i32
    return %c0_i32, %c0_i32_0 : i32, i32
  }
}

</mosaic_0001>

<llo_original>
// kernel: timm_wrapper_forward.1
$region0: #{timm_wrapper_forward.1}
  #allocation0 [shape = 'u32[]', space=smem, size = 0x4, offset = 0x4, fixed_abs, tag = 'smem constant byte address 0x4 - core index']
  #allocation1 [shape = 'u32[144,128]{1,0:T(1,128)}', space=vmem, size = 0x12000, scoped, tag = 'internal scratch']
  %s0 = inlined_call_operand.vmem [shape: bf16[512,3], index: 0, kind: input, shape index: {}]
  %s1 = inlined_call_operand.hbm [shape: bf16[9,128,512], index: 1, kind: input, shape index: {}]
  %s2 = inlined_call_operand.hbm [shape: bf16[27,128], index: 2, kind: input, shape index: {}]
  %s3 = inlined_call_operand.hbm [shape: f32[1,128], index: 3, kind: input, shape index: {}]
  %s4 = inlined_call_operand.hbm [shape: bf16[9,32,128], index: 4, kind: input, shape index: {}]
  %s5 = inlined_call_operand.hbm [shape: bf16[144,128], index: 5, kind: input, shape index: {}]
  %s6 = inlined_call_operand.hbm [shape: f32[1,128], index: 6, kind: input, shape index: {}]
  %s7 = inlined_call_operand.hbm [shape: bf16[9,8,32], index: 7, kind: input, shape index: {}]
  %s8 = inlined_call_operand.hbm [shape: bf16[288,128], index: 8, kind: input, shape index: {}]
  %s9 = inlined_call_operand.hbm [shape: f32[1,128], index: 9, kind: input, shape index: {}]
  %s10 = inlined_call_operand.vmem [shape: f32[128,128], index: 10, kind: output, shape index: {0}]
  %s11 = inlined_call_operand.vmem [shape: f32[32,128], index: 11, kind: output, shape index: {1}]
  %s12 = inlined_call_operand.vmem [shape: f32[8,128], index: 12, kind: output, shape index: {2}]
  %13 = xla_tuple %s10, %s11, %s12
  %s14 = sld [smem:[#allocation0]]
  $region102: #{timm_wrapper_forward.1} parent=0
    _
  %s16 = ssub.s32 1, %s14
  %s17 = scalar_select 0, %s16, %s14
  $region1: #{timm_wrapper_forward.1} parent=0
    #allocation2 [shape = 'u8[1179648]{0}', space=vmem, size = 0x120000, scoped, tag = 'input window, operand 1, single buffered']
    #allocation3 [shape = 's32[1]{0}', space=sflag, size = 0x4, scoped, tag = 'scoped memory for timm_wrapper_forward.1']
    #allocation4 [shape = 'u8[8192]{0}', space=vmem, size = 0x2000, scoped, tag = 'input window, operand 2, single buffered']
    #allocation5 [shape = 's32[1]{0}', space=sflag, size = 0x4, scoped, tag = 'scoped memory for timm_wrapper_forward.1']
    #allocation6 [shape = 'u8[512]{0}', space=vmem, size = 0x400, scoped, tag = 'input window, operand 3, single buffered']
    #allocation7 [shape = 'u8[73728]{0}', space=vmem, size = 0x12000, scoped, tag = 'input window, operand 4, single buffered']
    #allocation8 [shape = 's32[1]{0}', space=sflag, size = 0x4, scoped, tag = 'scoped memory for timm_wrapper_forward.1']
    #allocation9 [shape = 'u8[36864]{0}', space=vmem, size = 0x9000, scoped, tag = 'input window, operand 5, single buffered']
    #allocation10 [shape = 'u8[512]{0}', space=vmem, size = 0x400, scoped, tag = 'input window, operand 6, single buffered']
    #allocation11 [shape = 's32[1]{0}', space=sflag, size = 0x4, scoped, tag = 'scoped memory for timm_wrapper_forward.1']
    #allocation12 [shape = 'u8[18432]{0}', space=vmem, size = 0x4800, scoped, tag = 'input window, operand 7, single buffered']
    #allocation13 [shape = 'u8[73728]{0}', space=vmem, size = 0x12000, scoped, tag = 'input window, operand 8, single buffered']
    #allocation14 [shape = 's32[1]{0}', space=sflag, size = 0x4, scoped, tag = 'scoped memory for timm_wrapper_forward.1']
    #allocation15 [shape = 'u8[512]{0}', space=vmem, size = 0x400, scoped, tag = 'input window, operand 9, single buffered']
    %18 = vsyncpa [#allocation3], 0
    %19 = vsyncpa [#allocation5], 0
    %20 = vsyncpa [#allocation8], 0
    %21 = vsyncpa [#allocation11], 0
    %22 = vsyncpa [#allocation14], 0
    // Predicated region
    $region2: #{timm_wrapper_forward.1} parent=1 // pred_check
      _
    $region3: #{timm_wrapper_forward.1} parent=1 // pred_check_branch
      %24 = sbr.rel (0) target = $region5
    $region4: #{timm_wrapper_forward.1} parent=1 // pred_region
      _
    $region5: #{timm_wrapper_forward.1} parent=1 // pred_fallthru
      _
    // Predicated region
    $region6: #{timm_wrapper_forward.1} parent=1 // pred_check
      _
    $region7: #{timm_wrapper_forward.1} parent=1 // pred_check_branch
      %26 = sbr.rel (0) target = $region9
    $region8: #{timm_wrapper_forward.1} parent=1 // pred_region
      %s28 = ssub.s32 36864, 36864
      %29 = vsyncadd [#allocation3], %s28
      %s30 = sshll.u32 [#allocation2], 4
      %s31 = int_to_ptr.vmem [resolvable:$true] %s30
      %36 = dma.hbm_to_vmem [thread:$0]  %s1, 36864, %s31, [#allocation3], 256, 256, 16
    $region9: #{timm_wrapper_forward.1} parent=1 // pred_fallthru
      _
    // Predicated region
    $region10: #{timm_wrapper_forward.1} parent=1 // pred_check
      _
    $region11: #{timm_wrapper_forward.1} parent=1 // pred_check_branch
      %38 = sbr.rel (0) target = $region13
    $region12: #{timm_wrapper_forward.1} parent=1 // pred_region
      %s40 = ssub.s32 256, 256
      %41 = vsyncadd [#allocation5], %s40
      %s42 = sshll.u32 [#allocation4], 4
      %s43 = int_to_ptr.vmem [resolvable:$true] %s42
      %48 = dma.hbm_to_vmem [thread:$0]  %s2, 256, %s43, [#allocation5], 64, 64, 4
    $region13: #{timm_wrapper_forward.1} parent=1 // pred_fallthru
      _
    // Predicated region
    $region14: #{timm_wrapper_forward.1} parent=1 // pred_check
      _
    $region15: #{timm_wrapper_forward.1} parent=1 // pred_check_branch
      %50 = sbr.rel (0) target = $region17
    $region16: #{timm_wrapper_forward.1} parent=1 // pred_region
      %s52 = ssub.s32 16, 16
      %53 = vsyncadd [#allocation5], %s52
      %s55 = sshll.u32 [#allocation6], 4
      %s56 = int_to_ptr.vmem [resolvable:$true] %s55
      %58 = dma.hbm_to_vmem [thread:$0]  %s3, 16, %s56, [#allocation5]
    $region17: #{timm_wrapper_forward.1} parent=1 // pred_fallthru
      _
    // Predicated region
    $region18: #{timm_wrapper_forward.1} parent=1 // pred_check
      _
    $region19: #{timm_wrapper_forward.1} parent=1 // pred_check_branch
      %60 = sbr.rel (0) target = $region21
    $region20: #{timm_wrapper_forward.1} parent=1 // pred_region
      %s62 = ssub.s32 2304, 2304
      %63 = vsyncadd [#allocation8], %s62
      %s64 = sshll.u32 [#allocation7], 4
      %s65 = int_to_ptr.vmem [resolvable:$true] %s64
      %70 = dma.hbm_to_vmem [thread:$0]  %s4, 2304, %s65, [#allocation8], 64, 64, 4
    $region21: #{timm_wrapper_forward.1} parent=1 // pred_fallthru
      _
    // Predicated region
    $region22: #{timm_wrapper_forward.1} parent=1 // pred_check
      _
    $region23: #{timm_wrapper_forward.1} parent=1 // pred_check_branch
      %72 = sbr.rel (0) target = $region25
    $region24: #{timm_wrapper_forward.1} parent=1 // pred_region
      %s74 = ssub.s32 1152, 1152
      %75 = vsyncadd [#allocation8], %s74
      %s76 = sshll.u32 [#allocation9], 4
      %s77 = int_to_ptr.vmem [resolvable:$true] %s76
      %82 = dma.hbm_to_vmem [thread:$0]  %s5, 1152, %s77, [#allocation8], 64, 64, 4
    $region25: #{timm_wrapper_forward.1} parent=1 // pred_fallthru
      _
    // Predicated region
    $region26: #{timm_wrapper_forward.1} parent=1 // pred_check
      _
    $region27: #{timm_wrapper_forward.1} parent=1 // pred_check_branch
      %84 = sbr.rel (0) target = $region29
    $region28: #{timm_wrapper_forward.1} parent=1 // pred_region
      %s86 = ssub.s32 16, 16
      %87 = vsyncadd [#allocation11], %s86
      %s89 = sshll.u32 [#allocation10], 4
      %s90 = int_to_ptr.vmem [resolvable:$true] %s89
      %92 = dma.hbm_to_vmem [thread:$0]  %s6, 16, %s90, [#allocation11]
    $region29: #{timm_wrapper_forward.1} parent=1 // pred_fallthru
      _
    // Predicated region
    $region30: #{timm_wrapper_forward.1} parent=1 // pred_check
      _
    $region31: #{timm_wrapper_forward.1} parent=1 // pred_check_branch
      %94 = sbr.rel (0) target = $region33
    $region32: #{timm_wrapper_forward.1} parent=1 // pred_region
      %s96 = ssub.s32 576, 576
      %97 = vsyncadd [#allocation11], %s96
      %s98 = sshll.u32 [#allocation12], 4
      %s99 = int_to_ptr.vmem [resolvable:$true] %s98
      %104 = dma.hbm_to_vmem [thread:$0]  %s7, 576, %s99, [#allocation11], 64, 64, 4
    $region33: #{timm_wrapper_forward.1} parent=1 // pred_fallthru
      _
    // Predicated region
    $region34: #{timm_wrapper_forward.1} parent=1 // pred_check
      _
    $region35: #{timm_wrapper_forward.1} parent=1 // pred_check_branch
      %106 = sbr.rel (0) target = $region37
    $region36: #{timm_wrapper_forward.1} parent=1 // pred_region
      %s108 = ssub.s32 2304, 2304
      %109 = vsyncadd [#allocation14], %s108
      %s110 = sshll.u32 [#allocation13], 4
      %s111 = int_to_ptr.vmem [resolvable:$true] %s110
      %116 = dma.hbm_to_vmem [thread:$0]  %s8, 2304, %s111, [#allocation14], 64, 64, 4
    $region37: #{timm_wrapper_forward.1} parent=1 // pred_fallthru
      _
    // Predicated region
    $region38: #{timm_wrapper_forward.1} parent=1 // pred_check
      _
    $region39: #{timm_wrapper_forward.1} parent=1 // pred_check_branch
      %118 = sbr.rel (0) target = $region41
    $region40: #{timm_wrapper_forward.1} parent=1 // pred_region
      %s120 = ssub.s32 16, 16
      %121 = vsyncadd [#allocation14], %s120
      %s123 = sshll.u32 [#allocation15], 4
      %s124 = int_to_ptr.vmem [resolvable:$true] %s123
      %126 = dma.hbm_to_vmem [thread:$0]  %s9, 16, %s124, [#allocation14]
    $region41: #{timm_wrapper_forward.1} parent=1 // pred_fallthru
      _
    // Predicated region
    $region42: #{timm_wrapper_forward.1} parent=1 // pred_check
      _
    $region43: #{timm_wrapper_forward.1} parent=1 // pred_check_branch
      %128 = sbr.rel (0) target = $region45
    $region44: #{timm_wrapper_forward.1} parent=1 // pred_region
      %129 = dma.done [#allocation3], 36864
    $region45: #{timm_wrapper_forward.1} parent=1 // pred_fallthru
      _
    // Predicated region
    $region46: #{timm_wrapper_forward.1} parent=1 // pred_check
      _
    $region47: #{timm_wrapper_forward.1} parent=1 // pred_check_branch
      %131 = sbr.rel (0) target = $region49
    $region48: #{timm_wrapper_forward.1} parent=1 // pred_region
      %132 = dma.done [#allocation5], 256
    $region49: #{timm_wrapper_forward.1} parent=1 // pred_fallthru
      _
    // Predicated region
    $region50: #{timm_wrapper_forward.1} parent=1 // pred_check
      _
    $region51: #{timm_wrapper_forward.1} parent=1 // pred_check_branch
      %134 = sbr.rel (0) target = $region53
    $region52: #{timm_wrapper_forward.1} parent=1 // pred_region
      %135 = dma.done [#allocation5], 16
    $region53: #{timm_wrapper_forward.1} parent=1 // pred_fallthru
      _
    // Predicated region
    $region54: #{timm_wrapper_forward.1} parent=1 // pred_check
      _
    $region55: #{timm_wrapper_forward.1} parent=1 // pred_check_branch
      %137 = sbr.rel (0) target = $region57
    $region56: #{timm_wrapper_forward.1} parent=1 // pred_region
      %138 = dma.done [#allocation8], 2304
    $region57: #{timm_wrapper_forward.1} parent=1 // pred_fallthru
      _
    // Predicated region
    $region58: #{timm_wrapper_forward.1} parent=1 // pred_check
      _
    $region59: #{timm_wrapper_forward.1} parent=1 // pred_check_branch
      %140 = sbr.rel (0) target = $region61
    $region60: #{timm_wrapper_forward.1} parent=1 // pred_region
      %141 = dma.done [#allocation8], 1152
    $region61: #{timm_wrapper_forward.1} parent=1 // pred_fallthru
      _
    // Predicated region
    $region62: #{timm_wrapper_forward.1} parent=1 // pred_check
      _
    $region63: #{timm_wrapper_forward.1} parent=1 // pred_check_branch
      %143 = sbr.rel (0) target = $region65
    $region64: #{timm_wrapper_forward.1} parent=1 // pred_region
      %144 = dma.done [#allocation11], 16
    $region65: #{timm_wrapper_forward.1} parent=1 // pred_fallthru
      _
    // Predicated region
    $region66: #{timm_wrapper_forward.1} parent=1 // pred_check
      _
    $region67: #{timm_wrapper_forward.1} parent=1 // pred_check_branch
      %146 = sbr.rel (0) target = $region69
    $region68: #{timm_wrapper_forward.1} parent=1 // pred_region
      %147 = dma.done [#allocation11], 576
    $region69: #{timm_wrapper_forward.1} parent=1 // pred_fallthru
      _
    // Predicated region
    $region70: #{timm_wrapper_forward.1} parent=1 // pred_check
      _
    $region71: #{timm_wrapper_forward.1} parent=1 // pred_check_branch
      %149 = sbr.rel (0) target = $region73
    $region72: #{timm_wrapper_forward.1} parent=1 // pred_region
      %150 = dma.done [#allocation14], 2304
    $region73: #{timm_wrapper_forward.1} parent=1 // pred_fallthru
      _
    // Predicated region
    $region74: #{timm_wrapper_forward.1} parent=1 // pred_check
      _
    $region75: #{timm_wrapper_forward.1} parent=1 // pred_check_branch
      %152 = sbr.rel (0) target = $region77
    $region76: #{timm_wrapper_forward.1} parent=1 // pred_region
      %153 = dma.done [#allocation14], 16
    $region77: #{timm_wrapper_forward.1} parent=1 // pred_fallthru
      _
    %v155 = vld [vmem:[%s0] sm:$0xf]
    %v156 = vld [vmem:[%s0 + $0x4] sm:$0xf]
    %v157 = vld [vmem:[%s0 + $0x8] sm:$0xf]
    %v158 = vld [vmem:[%s0 + $0xc] sm:$0xf]
    %v159 = vld [vmem:[%s0 + $0x10] sm:$0xf]
    %v160 = vld [vmem:[%s0 + $0x14] sm:$0xf]
    %v161 = vld [vmem:[%s0 + $0x18] sm:$0xf]
    %v162 = vld [vmem:[%s0 + $0x1c] sm:$0xf]
    %v163 = vld [vmem:[%s0 + $0x20] sm:$0xf]
    %v164 = vld [vmem:[%s0 + $0x24] sm:$0xf]
    %v165 = vld [vmem:[%s0 + $0x28] sm:$0xf]
    %v166 = vld [vmem:[%s0 + $0x2c] sm:$0xf]
    %v167 = vld [vmem:[%s0 + $0x30] sm:$0xf]
    %v168 = vld [vmem:[%s0 + $0x34] sm:$0xf]
    %v169 = vld [vmem:[%s0 + $0x38] sm:$0xf]
    %v170 = vld [vmem:[%s0 + $0x3c] sm:$0xf]
    %v171 = vld [vmem:[%s0 + $0x40] sm:$0xf]
    %v172 = vld [vmem:[%s0 + $0x44] sm:$0xf]
    %v173 = vld [vmem:[%s0 + $0x48] sm:$0xf]
    %v174 = vld [vmem:[%s0 + $0x4c] sm:$0xf]
    %v175 = vld [vmem:[%s0 + $0x50] sm:$0xf]
    %v176 = vld [vmem:[%s0 + $0x54] sm:$0xf]
    %v177 = vld [vmem:[%s0 + $0x58] sm:$0xf]
    %v178 = vld [vmem:[%s0 + $0x5c] sm:$0xf]
    %v179 = vld [vmem:[%s0 + $0x60] sm:$0xf]
    %v180 = vld [vmem:[%s0 + $0x64] sm:$0xf]
    %v181 = vld [vmem:[%s0 + $0x68] sm:$0xf]
    %v182 = vld [vmem:[%s0 + $0x6c] sm:$0xf]
    %v183 = vld [vmem:[%s0 + $0x70] sm:$0xf]
    %v184 = vld [vmem:[%s0 + $0x74] sm:$0xf]
    %v185 = vld [vmem:[%s0 + $0x78] sm:$0xf]
    %v186 = vld [vmem:[%s0 + $0x7c] sm:$0xf]
    %v187 = vld [vmem:[%s0 + $0x80] sm:$0xf]
    %v188 = vld [vmem:[%s0 + $0x84] sm:$0xf]
    %v189 = vld [vmem:[%s0 + $0x88] sm:$0xf]
    %v190 = vld [vmem:[%s0 + $0x8c] sm:$0xf]
    %v191 = vld [vmem:[%s0 + $0x90] sm:$0xf]
    %v192 = vld [vmem:[%s0 + $0x94] sm:$0xf]
    %v193 = vld [vmem:[%s0 + $0x98] sm:$0xf]
    %v194 = vld [vmem:[%s0 + $0x9c] sm:$0xf]
    %v195 = vld [vmem:[%s0 + $0xa0] sm:$0xf]
    %v196 = vld [vmem:[%s0 + $0xa4] sm:$0xf]
    %v197 = vld [vmem:[%s0 + $0xa8] sm:$0xf]
    %v198 = vld [vmem:[%s0 + $0xac] sm:$0xf]
    %v199 = vld [vmem:[%s0 + $0xb0] sm:$0xf]
    %v200 = vld [vmem:[%s0 + $0xb4] sm:$0xf]
    %v201 = vld [vmem:[%s0 + $0xb8] sm:$0xf]
    %v202 = vld [vmem:[%s0 + $0xbc] sm:$0xf]
    %v203 = vld [vmem:[%s0 + $0xc0] sm:$0xf]
    %v204 = vld [vmem:[%s0 + $0xc4] sm:$0xf]
    %v205 = vld [vmem:[%s0 + $0xc8] sm:$0xf]
    %v206 = vld [vmem:[%s0 + $0xcc] sm:$0xf]
    %v207 = vld [vmem:[%s0 + $0xd0] sm:$0xf]
    %v208 = vld [vmem:[%s0 + $0xd4] sm:$0xf]
    %v209 = vld [vmem:[%s0 + $0xd8] sm:$0xf]
    %v210 = vld [vmem:[%s0 + $0xdc] sm:$0xf]
    %v211 = vld [vmem:[%s0 + $0xe0] sm:$0xf]
    %v212 = vld [vmem:[%s0 + $0xe4] sm:$0xf]
    %v213 = vld [vmem:[%s0 + $0xe8] sm:$0xf]
    %v214 = vld [vmem:[%s0 + $0xec] sm:$0xf]
    %v215 = vld [vmem:[%s0 + $0xf0] sm:$0xf]
    %v216 = vld [vmem:[%s0 + $0xf4] sm:$0xf]
    %v217 = vld [vmem:[%s0 + $0xf8] sm:$0xf]
    %v218 = vld [vmem:[%s0 + $0xfc] sm:$0xf]
    %v219 = vld [vmem:[#allocation2] sm:$0xff]
    %v220 = vld [vmem:[#allocation2 + $0x8] sm:$0xff]
    %v221 = vld [vmem:[#allocation2 + $0x10] sm:$0xff]
    %v222 = vld [vmem:[#allocation2 + $0x18] sm:$0xff]
    %v223 = vld [vmem:[#allocation2 + $0x20] sm:$0xff]
    %v224 = vld [vmem:[#allocation2 + $0x28] sm:$0xff]
    %v225 = vld [vmem:[#allocation2 + $0x30] sm:$0xff]
    %v226 = vld [vmem:[#allocation2 + $0x38] sm:$0xff]
    %v227 = vld [vmem:[#allocation2 + $0x40] sm:$0xff]
    %v228 = vld [vmem:[#allocation2 + $0x48] sm:$0xff]
    %v229 = vld [vmem:[#allocation2 + $0x50] sm:$0xff]
    %v230 = vld [vmem:[#allocation2 + $0x58] sm:$0xff]
    %v231 = vld [vmem:[#allocation2 + $0x60] sm:$0xff]
    %v232 = vld [vmem:[#allocation2 + $0x68] sm:$0xff]
    %v233 = vld [vmem:[#allocation2 + $0x70] sm:$0xff]
    %v234 = vld [vmem:[#allocation2 + $0x78] sm:$0xff]
    %v235 = vld [vmem:[#allocation2 + $0x80] sm:$0xff]
    %v236 = vld [vmem:[#allocation2 + $0x88] sm:$0xff]
    %v237 = vld [vmem:[#allocation2 + $0x90] sm:$0xff]
    %v238 = vld [vmem:[#allocation2 + $0x98] sm:$0xff]
    %v239 = vld [vmem:[#allocation2 + $0xa0] sm:$0xff]
    %v240 = vld [vmem:[#allocation2 + $0xa8] sm:$0xff]
    %v241 = vld [vmem:[#allocation2 + $0xb0] sm:$0xff]
    %v242 = vld [vmem:[#allocation2 + $0xb8] sm:$0xff]
    %v243 = vld [vmem:[#allocation2 + $0xc0] sm:$0xff]
    %v244 = vld [vmem:[#allocation2 + $0xc8] sm:$0xff]
    %v245 = vld [vmem:[#allocation2 + $0xd0] sm:$0xff]
    %v246 = vld [vmem:[#allocation2 + $0xd8] sm:$0xff]
    %v247 = vld [vmem:[#allocation2 + $0xe0] sm:$0xff]
    %v248 = vld [vmem:[#allocation2 + $0xe8] sm:$0xff]
    %v249 = vld [vmem:[#allocation2 + $0xf0] sm:$0xff]
    %v250 = vld [vmem:[#allocation2 + $0xf8] sm:$0xff]
    %v283 = vunpack.c.l.b16 %v219
    %v284 = vunpack.c.h.b16 %v219
    %v285 = vunpack.c.l.b16 %v220
    %v286 = vunpack.c.h.b16 %v220
    %v287 = vunpack.c.l.b16 %v221
    %v288 = vunpack.c.h.b16 %v221
    %v289 = vunpack.c.l.b16 %v222
    %v290 = vunpack.c.h.b16 %v222
    %v291 = vunpack.c.l.b16 %v223
    %v292 = vunpack.c.h.b16 %v223
    %v293 = vunpack.c.l.b16 %v224
    %v294 = vunpack.c.h.b16 %v224
    %v295 = vunpack.c.l.b16 %v225
    %v296 = vunpack.c.h.b16 %v225
    %v297 = vunpack.c.l.b16 %v226
    %v298 = vunpack.c.h.b16 %v226
    %v299 = vunpack.c.l.b16 %v227
    %v300 = vunpack.c.h.b16 %v227
    %v301 = vunpack.c.l.b16 %v228
    %v302 = vunpack.c.h.b16 %v228
    %v303 = vunpack.c.l.b16 %v229
    %v304 = vunpack.c.h.b16 %v229
    %v305 = vunpack.c.l.b16 %v230
    %v306 = vunpack.c.h.b16 %v230
    %v307 = vunpack.c.l.b16 %v231
    %v308 = vunpack.c.h.b16 %v231
    %v309 = vunpack.c.l.b16 %v232
    %v310 = vunpack.c.h.b16 %v232
    %v311 = vunpack.c.l.b16 %v233
    %v312 = vunpack.c.h.b16 %v233
    %v313 = vunpack.c.l.b16 %v234
    %v314 = vunpack.c.h.b16 %v234
    %v315 = vunpack.c.l.b16 %v235
    %v316 = vunpack.c.h.b16 %v235
    %v317 = vunpack.c.l.b16 %v236
    %v318 = vunpack.c.h.b16 %v236
    %v319 = vunpack.c.l.b16 %v237
    %v320 = vunpack.c.h.b16 %v237
    %v321 = vunpack.c.l.b16 %v238
    %v322 = vunpack.c.h.b16 %v238
    %v323 = vunpack.c.l.b16 %v239
    %v324 = vunpack.c.h.b16 %v239
    %v325 = vunpack.c.l.b16 %v240
    %v326 = vunpack.c.h.b16 %v240
    %v327 = vunpack.c.l.b16 %v241
    %v328 = vunpack.c.h.b16 %v241
    %v329 = vunpack.c.l.b16 %v242
    %v330 = vunpack.c.h.b16 %v242
    %v331 = vunpack.c.l.b16 %v243
    %v332 = vunpack.c.h.b16 %v243
    %v333 = vunpack.c.l.b16 %v244
    %v334 = vunpack.c.h.b16 %v244
    %v335 = vunpack.c.l.b16 %v245
    %v336 = vunpack.c.h.b16 %v245
    %v337 = vunpack.c.l.b16 %v246
    %v338 = vunpack.c.h.b16 %v246
    %v339 = vunpack.c.l.b16 %v247
    %v340 = vunpack.c.h.b16 %v247
    %v341 = vunpack.c.l.b16 %v248
    %v342 = vunpack.c.h.b16 %v248
    %v343 = vunpack.c.l.b16 %v249
    %v344 = vunpack.c.h.b16 %v249
    %v345 = vunpack.c.l.b16 %v250
    %v346 = vunpack.c.h.b16 %v250
    %v347 = vpack.c.b16 %v287, %v283
    %v348 = vpack.c.b16 %v288, %v284
    %v349 = vpack.c.b16 %v289, %v285
    %v350 = vpack.c.b16 %v290, %v286
    %v351 = vpack.c.b16 %v295, %v291
    %v352 = vpack.c.b16 %v296, %v292
    %v353 = vpack.c.b16 %v297, %v293
    %v354 = vpack.c.b16 %v298, %v294
    %v355 = vpack.c.b16 %v303, %v299
    %v356 = vpack.c.b16 %v304, %v300
    %v357 = vpack.c.b16 %v305, %v301
    %v358 = vpack.c.b16 %v306, %v302
    %v359 = vpack.c.b16 %v311, %v307
    %v360 = vpack.c.b16 %v312, %v308
    %v361 = vpack.c.b16 %v313, %v309
    %v362 = vpack.c.b16 %v314, %v310
    %v363 = vpack.c.b16 %v319, %v315
    %v364 = vpack.c.b16 %v320, %v316
    %v365 = vpack.c.b16 %v321, %v317
    %v366 = vpack.c.b16 %v322, %v318
    %v367 = vpack.c.b16 %v327, %v323
    %v368 = vpack.c.b16 %v328, %v324
    %v369 = vpack.c.b16 %v329, %v325
    %v370 = vpack.c.b16 %v330, %v326
    %v371 = vpack.c.b16 %v335, %v331
    %v372 = vpack.c.b16 %v336, %v332
    %v373 = vpack.c.b16 %v337, %v333
    %v374 = vpack.c.b16 %v338, %v334
    %v375 = vpack.c.b16 %v343, %v339
    %v376 = vpack.c.b16 %v344, %v340
    %v377 = vpack.c.b16 %v345, %v341
    %v378 = vpack.c.b16 %v346, %v342
    %v475 = vunpack.c.l.b16 %v155
    %v476 = vunpack.c.l.b16 %v156
    %v477 = vunpack.c.l.b16 %v157
    %v478 = vunpack.c.l.b16 %v158
    %v479 = vunpack.c.l.b16 %v159
    %v480 = vunpack.c.l.b16 %v160
    %v481 = vunpack.c.l.b16 %v161
    %v482 = vunpack.c.l.b16 %v162
    %v483 = vunpack.c.l.b16 %v163
    %v484 = vunpack.c.l.b16 %v164
    %v485 = vunpack.c.l.b16 %v165
    %v486 = vunpack.c.l.b16 %v166
    %v487 = vunpack.c.l.b16 %v167
    %v488 = vunpack.c.l.b16 %v168
    %v489 = vunpack.c.l.b16 %v169
    %v490 = vunpack.c.l.b16 %v170
    %v491 = vunpack.c.l.b16 %v171
    %v492 = vunpack.c.l.b16 %v172
    %v493 = vunpack.c.l.b16 %v173
    %v494 = vunpack.c.l.b16 %v174
    %v495 = vunpack.c.l.b16 %v175
    %v496 = vunpack.c.l.b16 %v176
    %v497 = vunpack.c.l.b16 %v177
    %v498 = vunpack.c.l.b16 %v178
    %v499 = vunpack.c.l.b16 %v179
    %v500 = vunpack.c.l.b16 %v180
    %v501 = vunpack.c.l.b16 %v181
    %v502 = vunpack.c.l.b16 %v182
    %v503 = vunpack.c.l.b16 %v183
    %v504 = vunpack.c.l.b16 %v184
    %v505 = vunpack.c.l.b16 %v185
    %v506 = vunpack.c.l.b16 %v186
    %v507 = vunpack.c.l.b16 %v187
    %v508 = vunpack.c.l.b16 %v188
    %v509 = vunpack.c.l.b16 %v189
    %v510 = vunpack.c.l.b16 %v190
    %v511 = vunpack.c.l.b16 %v191
    %v512 = vunpack.c.l.b16 %v192
    %v513 = vunpack.c.l.b16 %v193
    %v514 = vunpack.c.l.b16 %v194
    %v515 = vunpack.c.l.b16 %v195
    %v516 = vunpack.c.l.b16 %v196
    %v517 = vunpack.c.l.b16 %v197
    %v518 = vunpack.c.l.b16 %v198
    %v519 = vunpack.c.l.b16 %v199
    %v520 = vunpack.c.l.b16 %v200
    %v521 = vunpack.c.l.b16 %v201
    %v522 = vunpack.c.l.b16 %v202
    %v523 = vunpack.c.l.b16 %v203
    %v524 = vunpack.c.l.b16 %v204
    %v525 = vunpack.c.l.b16 %v205
    %v526 = vunpack.c.l.b16 %v206
    %v527 = vunpack.c.l.b16 %v207
    %v528 = vunpack.c.l.b16 %v208
    %v529 = vunpack.c.l.b16 %v209
    %v530 = vunpack.c.l.b16 %v210
    %v531 = vunpack.c.l.b16 %v211
    %v532 = vunpack.c.l.b16 %v212
    %v533 = vunpack.c.l.b16 %v213
    %v534 = vunpack.c.l.b16 %v214
    %v535 = vunpack.c.l.b16 %v215
    %v536 = vunpack.c.l.b16 %v216
    %v537 = vunpack.c.l.b16 %v217
    %v538 = vunpack.c.l.b16 %v218
    %v539 = vpack.c.b16 %v476, %v475
    %v540 = vpack.c.b16 %v478, %v477
    %v541 = vpack.c.b16 %v480, %v479
    %v542 = vpack.c.b16 %v482, %v481
    %v543 = vpack.c.b16 %v484, %v483
    %v544 = vpack.c.b16 %v486, %v485
    %v545 = vpack.c.b16 %v488, %v487
    %v546 = vpack.c.b16 %v490, %v489
    %v547 = vpack.c.b16 %v492, %v491
    %v548 = vpack.c.b16 %v494, %v493
    %v549 = vpack.c.b16 %v496, %v495
    %v550 = vpack.c.b16 %v498, %v497
    %v551 = vpack.c.b16 %v500, %v499
    %v552 = vpack.c.b16 %v502, %v501
    %v553 = vpack.c.b16 %v504, %v503
    %v554 = vpack.c.b16 %v506, %v505
    %v555 = vpack.c.b16 %v508, %v507
    %v556 = vpack.c.b16 %v510, %v509
    %v557 = vpack.c.b16 %v512, %v511
    %v558 = vpack.c.b16 %v514, %v513
    %v559 = vpack.c.b16 %v516, %v515
    %v560 = vpack.c.b16 %v518, %v517
    %v561 = vpack.c.b16 %v520, %v519
    %v562 = vpack.c.b16 %v522, %v521
    %v563 = vpack.c.b16 %v524, %v523
    %v564 = vpack.c.b16 %v526, %v525
    %v565 = vpack.c.b16 %v528, %v527
    %v566 = vpack.c.b16 %v530, %v529
    %v567 = vpack.c.b16 %v532, %v531
    %v568 = vpack.c.b16 %v534, %v533
    %v569 = vpack.c.b16 %v536, %v535
    %v570 = vpack.c.b16 %v538, %v537
    %603 = vmatprep.subr.bf16.mxu0 0
    %604 = vmatpush1.bf16.msra.mxu0 %v546
    %605 = vmatprep.subr.bf16.mxu0 0
    %606 = vmatpush1.bf16.msra.mxu0 %v545
    %607 = vmatprep.subr.bf16.mxu0 0
    %608 = vmatpush1.bf16.msra.mxu0 %v544
    %609 = vmatprep.subr.bf16.mxu0 0
    %610 = vmatpush1.bf16.msra.mxu0 %v543
    %611 = vmatprep.subr.bf16.mxu0 0
    %612 = vmatpush1.bf16.msra.mxu0 %v542
    %613 = vmatprep.subr.bf16.mxu0 0
    %614 = vmatpush1.bf16.msra.mxu0 %v541
    %615 = vmatprep.subr.bf16.mxu0 0
    %616 = vmatpush1.bf16.msra.mxu0 %v540
    %617 = vmatprep.subr.bf16.mxu0 0
    %618 = vmatpush1.bf16.msra.mxu0 %v539
    %619 = vmatprep.subr.bf16.mxu0 0
    %620 = vmatpush2.bf16.msra.mxu0 %v554
    %621 = vmatprep.subr.bf16.mxu0 0
    %622 = vmatpush2.bf16.msra.mxu0 %v553
    %623 = vmatprep.subr.bf16.mxu0 0
    %624 = vmatpush2.bf16.msra.mxu0 %v552
    %625 = vmatprep.subr.bf16.mxu0 0
    %626 = vmatpush2.bf16.msra.mxu0 %v551
    %627 = vmatprep.subr.bf16.mxu0 0
    %628 = vmatpush2.bf16.msra.mxu0 %v550
    %629 = vmatprep.subr.bf16.mxu0 0
    %630 = vmatpush2.bf16.msra.mxu0 %v549
    %631 = vmatprep.subr.bf16.mxu0 0
    %632 = vmatpush2.bf16.msra.mxu0 %v548
    %633 = vmatprep.subr.bf16.mxu0 0
    %634 = vmatpush2.bf16.msra.mxu0 %v547
    %635 = vmatprep.mubr.bf16.mxu0 %v348
    %636 = vmatmul.mubr.bf16.gmra.mxu0 %v347
    %v637 = vpop.f32.mrf.mxu0
    %v638 = vadd.f32 0.0, %v637
    %v639 = vpop.f32.mrf.mxu0
    %v640 = vpop.f32.mrf.mxu0
    %v641 = vadd.f32 0.0, %v640
    %v642 = vpop.f32.mrf.mxu0
    %643 = vmatprep.mubr.bf16.mxu0 %v352
    %644 = vmatmul.mubr.bf16.gmra.mxu0 %v351
    %v645 = vpop.f32.mrf.mxu0
    %v646 = vadd.f32 0.0, %v645
    %v647 = vpop.f32.mrf.mxu0
    %v648 = vpop.f32.mrf.mxu0
    %v649 = vadd.f32 0.0, %v648
    %v650 = vpop.f32.mrf.mxu0
    %651 = vmatprep.mubr.bf16.mxu0 %v356
    %652 = vmatmul.mubr.bf16.gmra.mxu0 %v355
    %v653 = vpop.f32.mrf.mxu0
    %v654 = vadd.f32 0.0, %v653
    %v655 = vpop.f32.mrf.mxu0
    %v656 = vpop.f32.mrf.mxu0
    %v657 = vadd.f32 0.0, %v656
    %v658 = vpop.f32.mrf.mxu0
    %659 = vmatprep.mubr.bf16.mxu0 %v360
    %660 = vmatmul.mubr.bf16.gmra.mxu0 %v359
    %v661 = vpop.f32.mrf.mxu0
    %v662 = vadd.f32 0.0, %v661
    %v663 = vpop.f32.mrf.mxu0
    %v664 = vpop.f32.mrf.mxu0
    %v665 = vadd.f32 0.0, %v664
    %v666 = vpop.f32.mrf.mxu0
    %667 = vmatprep.mubr.bf16.mxu0 %v364
    %668 = vmatmul.mubr.bf16.gmra.mxu0 %v363
    %v669 = vpop.f32.mrf.mxu0
    %v670 = vadd.f32 0.0, %v669
    %v671 = vpop.f32.mrf.mxu0
    %v672 = vpop.f32.mrf.mxu0
    %v673 = vadd.f32 0.0, %v672
    %v674 = vpop.f32.mrf.mxu0
    %675 = vmatprep.mubr.bf16.mxu0 %v368
    %676 = vmatmul.mubr.bf16.gmra.mxu0 %v367
    %v677 = vpop.f32.mrf.mxu0
    %v678 = vadd.f32 0.0, %v677
    %v679 = vpop.f32.mrf.mxu0
    %v680 = vpop.f32.mrf.mxu0
    %v681 = vadd.f32 0.0, %v680
    %v682 = vpop.f32.mrf.mxu0
    %683 = vmatprep.mubr.bf16.mxu0 %v372
    %684 = vmatmul.mubr.bf16.gmra.mxu0 %v371
    %v685 = vpop.f32.mrf.mxu0
    %v686 = vadd.f32 0.0, %v685
    %v687 = vpop.f32.mrf.mxu0
    %v688 = vpop.f32.mrf.mxu0
    %v689 = vadd.f32 0.0, %v688
    %v690 = vpop.f32.mrf.mxu0
    %691 = vmatprep.mubr.bf16.mxu0 %v376
    %692 = vmatmul.mubr.bf16.gmra.mxu0 %v375
    %v693 = vpop.f32.mrf.mxu0
    %v694 = vadd.f32 0.0, %v693
    %v695 = vpop.f32.mrf.mxu0
    %v696 = vpop.f32.mrf.mxu0
    %v697 = vadd.f32 0.0, %v696
    %v698 = vpop.f32.mrf.mxu0
    %699 = vdwg.mxu0
    %700 = vmatprep.subr.bf16.mxu0 0
    %701 = vmatpush1.bf16.msra.mxu0 %v562
    %702 = vmatprep.subr.bf16.mxu0 0
    %703 = vmatpush1.bf16.msra.mxu0 %v561
    %704 = vmatprep.subr.bf16.mxu0 0
    %705 = vmatpush1.bf16.msra.mxu0 %v560
    %706 = vmatprep.subr.bf16.mxu0 0
    %707 = vmatpush1.bf16.msra.mxu0 %v559
    %708 = vmatprep.subr.bf16.mxu0 0
    %709 = vmatpush1.bf16.msra.mxu0 %v558
    %710 = vmatprep.subr.bf16.mxu0 0
    %711 = vmatpush1.bf16.msra.mxu0 %v557
    %712 = vmatprep.subr.bf16.mxu0 0
    %713 = vmatpush1.bf16.msra.mxu0 %v556
    %714 = vmatprep.subr.bf16.mxu0 0
    %715 = vmatpush1.bf16.msra.mxu0 %v555
    %716 = vmatprep.subr.bf16.mxu0 0
    %717 = vmatpush2.bf16.msra.mxu0 %v570
    %718 = vmatprep.subr.bf16.mxu0 0
    %719 = vmatpush2.bf16.msra.mxu0 %v569
    %720 = vmatprep.subr.bf16.mxu0 0
    %721 = vmatpush2.bf16.msra.mxu0 %v568
    %722 = vmatprep.subr.bf16.mxu0 0
    %723 = vmatpush2.bf16.msra.mxu0 %v567
    %724 = vmatprep.subr.bf16.mxu0 0
    %725 = vmatpush2.bf16.msra.mxu0 %v566
    %726 = vmatprep.subr.bf16.mxu0 0
    %727 = vmatpush2.bf16.msra.mxu0 %v565
    %728 = vmatprep.subr.bf16.mxu0 0
    %729 = vmatpush2.bf16.msra.mxu0 %v564
    %730 = vmatprep.subr.bf16.mxu0 0
    %731 = vmatpush2.bf16.msra.mxu0 %v563
    %732 = vmatprep.mubr.bf16.mxu0 %v350
    %733 = vmatmul.mubr.bf16.gmra.mxu0 %v349
    %v734 = vpop.f32.mrf.mxu0
    %v735 = vadd.f32 %v638, %v734
    %v736 = vpop.f32.mrf.mxu0
    %v737 = vpop.f32.mrf.mxu0
    %v738 = vadd.f32 %v641, %v737
    %v739 = vpop.f32.mrf.mxu0
    %740 = vmatprep.mubr.bf16.mxu0 %v354
    %741 = vmatmul.mubr.bf16.gmra.mxu0 %v353
    %v742 = vpop.f32.mrf.mxu0
    %v743 = vadd.f32 %v646, %v742
    %v744 = vpop.f32.mrf.mxu0
    %v745 = vpop.f32.mrf.mxu0
    %v746 = vadd.f32 %v649, %v745
    %v747 = vpop.f32.mrf.mxu0
    %748 = vmatprep.mubr.bf16.mxu0 %v358
    %749 = vmatmul.mubr.bf16.gmra.mxu0 %v357
    %v750 = vpop.f32.mrf.mxu0
    %v751 = vadd.f32 %v654, %v750
    %v752 = vpop.f32.mrf.mxu0
    %v753 = vpop.f32.mrf.mxu0
    %v754 = vadd.f32 %v657, %v753
    %v755 = vpop.f32.mrf.mxu0
    %756 = vmatprep.mubr.bf16.mxu0 %v362
    %757 = vmatmul.mubr.bf16.gmra.mxu0 %v361
    %v758 = vpop.f32.mrf.mxu0
    %v759 = vadd.f32 %v662, %v758
    %v760 = vpop.f32.mrf.mxu0
    %v761 = vpop.f32.mrf.mxu0
    %v762 = vadd.f32 %v665, %v761
    %v763 = vpop.f32.mrf.mxu0
    %764 = vmatprep.mubr.bf16.mxu0 %v366
    %765 = vmatmul.mubr.bf16.gmra.mxu0 %v365
    %v766 = vpop.f32.mrf.mxu0
    %v767 = vadd.f32 %v670, %v766
    %v768 = vpop.f32.mrf.mxu0
    %v769 = vpop.f32.mrf.mxu0
    %v770 = vadd.f32 %v673, %v769
    %v771 = vpop.f32.mrf.mxu0
    %772 = vmatprep.mubr.bf16.mxu0 %v370
    %773 = vmatmul.mubr.bf16.gmra.mxu0 %v369
    %v774 = vpop.f32.mrf.mxu0
    %v775 = vadd.f32 %v678, %v774
    %v776 = vpop.f32.mrf.mxu0
    %v777 = vpop.f32.mrf.mxu0
    %v778 = vadd.f32 %v681, %v777
    %v779 = vpop.f32.mrf.mxu0
    %780 = vmatprep.mubr.bf16.mxu0 %v374
    %781 = vmatmul.mubr.bf16.gmra.mxu0 %v373
    %v782 = vpop.f32.mrf.mxu0
    %v783 = vadd.f32 %v686, %v782
    %v784 = vpop.f32.mrf.mxu0
    %v785 = vpop.f32.mrf.mxu0
    %v786 = vadd.f32 %v689, %v785
    %v787 = vpop.f32.mrf.mxu0
    %788 = vmatprep.mubr.bf16.mxu0 %v378
    %789 = vmatmul.mubr.bf16.gmra.mxu0 %v377
    %v790 = vpop.f32.mrf.mxu0
    %v791 = vadd.f32 %v694, %v790
    %v792 = vpop.f32.mrf.mxu0
    %v793 = vpop.f32.mrf.mxu0
    %v794 = vadd.f32 %v697, %v793
    %v795 = vpop.f32.mrf.mxu0
    %796 = vdwg.mxu0
    %s797 = scalar_lea.vmem [#allocation2], 256
    %v798 = vld [vmem:[%s797] sm:$0xff]
    %v799 = vld [vmem:[%s797 + $0x8] sm:$0xff]
    %v800 = vld [vmem:[%s797 + $0x10] sm:$0xff]
    %v801 = vld [vmem:[%s797 + $0x18] sm:$0xff]
    %v802 = vld [vmem:[%s797 + $0x20] sm:$0xff]
    %v803 = vld [vmem:[%s797 + $0x28] sm:$0xff]
    %v804 = vld [vmem:[%s797 + $0x30] sm:$0xff]
    %v805 = vld [vmem:[%s797 + $0x38] sm:$0xff]
    %v806 = vld [vmem:[%s797 + $0x40] sm:$0xff]
    %v807 = vld [vmem:[%s797 + $0x48] sm:$0xff]
    %v808 = vld [vmem:[%s797 + $0x50] sm:$0xff]
    %v809 = vld [vmem:[%s797 + $0x58] sm:$0xff]
    %v810 = vld [vmem:[%s797 + $0x60] sm:$0xff]
    %v811 = vld [vmem:[%s797 + $0x68] sm:$0xff]
    %v812 = vld [vmem:[%s797 + $0x70] sm:$0xff]
    %v813 = vld [vmem:[%s797 + $0x78] sm:$0xff]
    %v814 = vld [vmem:[%s797 + $0x80] sm:$0xff]
    %v815 = vld [vmem:[%s797 + $0x88] sm:$0xff]
    %v816 = vld [vmem:[%s797 + $0x90] sm:$0xff]
    %v817 = vld [vmem:[%s797 + $0x98] sm:$0xff]
    %v818 = vld [vmem:[%s797 + $0xa0] sm:$0xff]
    %v819 = vld [vmem:[%s797 + $0xa8] sm:$0xff]
    %v820 = vld [vmem:[%s797 + $0xb0] sm:$0xff]
    %v821 = vld [vmem:[%s797 + $0xb8] sm:$0xff]
    %v822 = vld [vmem:[%s797 + $0xc0] sm:$0xff]
    %v823 = vld [vmem:[%s797 + $0xc8] sm:$0xff]
    %v824 = vld [vmem:[%s797 + $0xd0] sm:$0xff]
    %v825 = vld [vmem:[%s797 + $0xd8] sm:$0xff]
    %v826 = vld [vmem:[%s797 + $0xe0] sm:$0xff]
    %v827 = vld [vmem:[%s797 + $0xe8] sm:$0xff]
    %v828 = vld [vmem:[%s797 + $0xf0] sm:$0xff]
    %v829 = vld [vmem:[%s797 + $0xf8] sm:$0xff]
    %v862 = vunpack.c.l.b16 %v798
    %v863 = vunpack.c.h.b16 %v798
    %v864 = vunpack.c.l.b16 %v799
    %v865 = vunpack.c.h.b16 %v799
    %v866 = vunpack.c.l.b16 %v800
    %v867 = vunpack.c.h.b16 %v800
    %v868 = vunpack.c.l.b16 %v801
    %v869 = vunpack.c.h.b16 %v801
    %v870 = vunpack.c.l.b16 %v802
    %v871 = vunpack.c.h.b16 %v802
    %v872 = vunpack.c.l.b16 %v803
    %v873 = vunpack.c.h.b16 %v803
    %v874 = vunpack.c.l.b16 %v804
    %v875 = vunpack.c.h.b16 %v804
    %v876 = vunpack.c.l.b16 %v805
    %v877 = vunpack.c.h.b16 %v805
    %v878 = vunpack.c.l.b16 %v806
    %v879 = vunpack.c.h.b16 %v806
    %v880 = vunpack.c.l.b16 %v807
    %v881 = vunpack.c.h.b16 %v807
    %v882 = vunpack.c.l.b16 %v808
    %v883 = vunpack.c.h.b16 %v808
    %v884 = vunpack.c.l.b16 %v809
    %v885 = vunpack.c.h.b16 %v809
    %v886 = vunpack.c.l.b16 %v810
    %v887 = vunpack.c.h.b16 %v810
    %v888 = vunpack.c.l.b16 %v811
    %v889 = vunpack.c.h.b16 %v811
    %v890 = vunpack.c.l.b16 %v812
    %v891 = vunpack.c.h.b16 %v812
    %v892 = vunpack.c.l.b16 %v813
    %v893 = vunpack.c.h.b16 %v813
    %v894 = vunpack.c.l.b16 %v814
    %v895 = vunpack.c.h.b16 %v814
    %v896 = vunpack.c.l.b16 %v815
    %v897 = vunpack.c.h.b16 %v815
    %v898 = vunpack.c.l.b16 %v816
    %v899 = vunpack.c.h.b16 %v816
    %v900 = vunpack.c.l.b16 %v817
    %v901 = vunpack.c.h.b16 %v817
    %v902 = vunpack.c.l.b16 %v818
    %v903 = vunpack.c.h.b16 %v818
    %v904 = vunpack.c.l.b16 %v819
    %v905 = vunpack.c.h.b16 %v819
    %v906 = vunpack.c.l.b16 %v820
    %v907 = vunpack.c.h.b16 %v820
    %v908 = vunpack.c.l.b16 %v821
    %v909 = vunpack.c.h.b16 %v821
    %v910 = vunpack.c.l.b16 %v822
    %v911 = vunpack.c.h.b16 %v822
    %v912 = vunpack.c.l.b16 %v823
    %v913 = vunpack.c.h.b16 %v823
    %v914 = vunpack.c.l.b16 %v824
    %v915 = vunpack.c.h.b16 %v824
    %v916 = vunpack.c.l.b16 %v825
    %v917 = vunpack.c.h.b16 %v825
    %v918 = vunpack.c.l.b16 %v826
    %v919 = vunpack.c.h.b16 %v826
    %v920 = vunpack.c.l.b16 %v827
    %v921 = vunpack.c.h.b16 %v827
    %v922 = vunpack.c.l.b16 %v828
    %v923 = vunpack.c.h.b16 %v828
    %v924 = vunpack.c.l.b16 %v829
    %v925 = vunpack.c.h.b16 %v829
    %v926 = vpack.c.b16 %v866, %v862
    %v927 = vpack.c.b16 %v867, %v863
    %v928 = vpack.c.b16 %v868, %v864
    %v929 = vpack.c.b16 %v869, %v865
    %v930 = vpack.c.b16 %v874, %v870
    %v931 = vpack.c.b16 %v875, %v871
    %v932 = vpack.c.b16 %v876, %v872
    %v933 = vpack.c.b16 %v877, %v873
    %v934 = vpack.c.b16 %v882, %v878
    %v935 = vpack.c.b16 %v883, %v879
    %v936 = vpack.c.b16 %v884, %v880
    %v937 = vpack.c.b16 %v885, %v881
    %v938 = vpack.c.b16 %v890, %v886
    %v939 = vpack.c.b16 %v891, %v887
    %v940 = vpack.c.b16 %v892, %v888
    %v941 = vpack.c.b16 %v893, %v889
    %v942 = vpack.c.b16 %v898, %v894
    %v943 = vpack.c.b16 %v899, %v895
    %v944 = vpack.c.b16 %v900, %v896
    %v945 = vpack.c.b16 %v901, %v897
    %v946 = vpack.c.b16 %v906, %v902
    %v947 = vpack.c.b16 %v907, %v903
    %v948 = vpack.c.b16 %v908, %v904
    %v949 = vpack.c.b16 %v909, %v905
    %v950 = vpack.c.b16 %v914, %v910
    %v951 = vpack.c.b16 %v915, %v911
    %v952 = vpack.c.b16 %v916, %v912
    %v953 = vpack.c.b16 %v917, %v913
    %v954 = vpack.c.b16 %v922, %v918
    %v955 = vpack.c.b16 %v923, %v919
    %v956 = vpack.c.b16 %v924, %v920
    %v957 = vpack.c.b16 %v925, %v921
    %990 = vmatprep.subr.bf16.mxu0 0
    %991 = vmatpush1.bf16.msra.mxu0 %v546
    %992 = vmatprep.subr.bf16.mxu0 0
    %993 = vmatpush1.bf16.msra.mxu0 %v545
    %994 = vmatprep.subr.bf16.mxu0 0
    %995 = vmatpush1.bf16.msra.mxu0 %v544
    %996 = vmatprep.subr.bf16.mxu0 0
    %997 = vmatpush1.bf16.msra.mxu0 %v543
    %998 = vmatprep.subr.bf16.mxu0 0
    %999 = vmatpush1.bf16.msra.mxu0 %v542
    %1000 = vmatprep.subr.bf16.mxu0 0
    %1001 = vmatpush1.bf16.msra.mxu0 %v541
    %1002 = vmatprep.subr.bf16.mxu0 0
    %1003 = vmatpush1.bf16.msra.mxu0 %v540
    %1004 = vmatprep.subr.bf16.mxu0 0
    %1005 = vmatpush1.bf16.msra.mxu0 %v539
    %1006 = vmatprep.subr.bf16.mxu0 0
    %1007 = vmatpush2.bf16.msra.mxu0 %v554
    %1008 = vmatprep.subr.bf16.mxu0 0
    %1009 = vmatpush2.bf16.msra.mxu0 %v553
    %1010 = vmatprep.subr.bf16.mxu0 0
    %1011 = vmatpush2.bf16.msra.mxu0 %v552
    %1012 = vmatprep.subr.bf16.mxu0 0
    %1013 = vmatpush2.bf16.msra.mxu0 %v551
    %1014 = vmatprep.subr.bf16.mxu0 0
    %1015 = vmatpush2.bf16.msra.mxu0 %v550
    %1016 = vmatprep.subr.bf16.mxu0 0
    %1017 = vmatpush2.bf16.msra.mxu0 %v549
    %1018 = vmatprep.subr.bf16.mxu0 0
    %1019 = vmatpush2.bf16.msra.mxu0 %v548
    %1020 = vmatprep.subr.bf16.mxu0 0
    %1021 = vmatpush2.bf16.msra.mxu0 %v547
    %1022 = vmatprep.mubr.bf16.mxu0 %v927
    %1023 = vmatmul.mubr.bf16.gmra.mxu0 %v926
    %v1024 = vpop.f32.mrf.mxu0
    %v1025 = vadd.f32 0.0, %v1024
    %v1026 = vpop.f32.mrf.mxu0
    %v1027 = vpop.f32.mrf.mxu0
    %v1028 = vadd.f32 0.0, %v1027
    %v1029 = vpop.f32.mrf.mxu0
    %1030 = vmatprep.mubr.bf16.mxu0 %v931
    %1031 = vmatmul.mubr.bf16.gmra.mxu0 %v930
    %v1032 = vpop.f32.mrf.mxu0
    %v1033 = vadd.f32 0.0, %v1032
    %v1034 = vpop.f32.mrf.mxu0
    %v1035 = vpop.f32.mrf.mxu0
    %v1036 = vadd.f32 0.0, %v1035
    %v1037 = vpop.f32.mrf.mxu0
    %1038 = vmatprep.mubr.bf16.mxu0 %v935
    %1039 = vmatmul.mubr.bf16.gmra.mxu0 %v934
    %v1040 = vpop.f32.mrf.mxu0
    %v1041 = vadd.f32 0.0, %v1040
    %v1042 = vpop.f32.mrf.mxu0
    %v1043 = vpop.f32.mrf.mxu0
    %v1044 = vadd.f32 0.0, %v1043
    %v1045 = vpop.f32.mrf.mxu0
    %1046 = vmatprep.mubr.bf16.mxu0 %v939
    %1047 = vmatmul.mubr.bf16.gmra.mxu0 %v938
    %v1048 = vpop.f32.mrf.mxu0
    %v1049 = vadd.f32 0.0, %v1048
    %v1050 = vpop.f32.mrf.mxu0
    %v1051 = vpop.f32.mrf.mxu0
    %v1052 = vadd.f32 0.0, %v1051
    %v1053 = vpop.f32.mrf.mxu0
    %1054 = vmatprep.mubr.bf16.mxu0 %v943
    %1055 = vmatmul.mubr.bf16.gmra.mxu0 %v942
    %v1056 = vpop.f32.mrf.mxu0
    %v1057 = vadd.f32 0.0, %v1056
    %v1058 = vpop.f32.mrf.mxu0
    %v1059 = vpop.f32.mrf.mxu0
    %v1060 = vadd.f32 0.0, %v1059
    %v1061 = vpop.f32.mrf.mxu0
    %1062 = vmatprep.mubr.bf16.mxu0 %v947
    %1063 = vmatmul.mubr.bf16.gmra.mxu0 %v946
    %v1064 = vpop.f32.mrf.mxu0
    %v1065 = vadd.f32 0.0, %v1064
    %v1066 = vpop.f32.mrf.mxu0
    %v1067 = vpop.f32.mrf.mxu0
    %v1068 = vadd.f32 0.0, %v1067
    %v1069 = vpop.f32.mrf.mxu0
    %1070 = vmatprep.mubr.bf16.mxu0 %v951
    %1071 = vmatmul.mubr.bf16.gmra.mxu0 %v950
    %v1072 = vpop.f32.mrf.mxu0
    %v1073 = vadd.f32 0.0, %v1072
    %v1074 = vpop.f32.mrf.mxu0
    %v1075 = vpop.f32.mrf.mxu0
    %v1076 = vadd.f32 0.0, %v1075
    %v1077 = vpop.f32.mrf.mxu0
    %1078 = vmatprep.mubr.bf16.mxu0 %v955
    %1079 = vmatmul.mubr.bf16.gmra.mxu0 %v954
    %v1080 = vpop.f32.mrf.mxu0
    %v1081 = vadd.f32 0.0, %v1080
    %v1082 = vpop.f32.mrf.mxu0
    %v1083 = vpop.f32.mrf.mxu0
    %v1084 = vadd.f32 0.0, %v1083
    %v1085 = vpop.f32.mrf.mxu0
    %1086 = vdwg.mxu0
    %1087 = vmatprep.subr.bf16.mxu0 0
    %1088 = vmatpush1.bf16.msra.mxu0 %v562
    %1089 = vmatprep.subr.bf16.mxu0 0
    %1090 = vmatpush1.bf16.msra.mxu0 %v561
    %1091 = vmatprep.subr.bf16.mxu0 0
    %1092 = vmatpush1.bf16.msra.mxu0 %v560
    %1093 = vmatprep.subr.bf16.mxu0 0
    %1094 = vmatpush1.bf16.msra.mxu0 %v559
    %1095 = vmatprep.subr.bf16.mxu0 0
    %1096 = vmatpush1.bf16.msra.mxu0 %v558
    %1097 = vmatprep.subr.bf16.mxu0 0
    %1098 = vmatpush1.bf16.msra.mxu0 %v557
    %1099 = vmatprep.subr.bf16.mxu0 0
    %1100 = vmatpush1.bf16.msra.mxu0 %v556
    %1101 = vmatprep.subr.bf16.mxu0 0
    %1102 = vmatpush1.bf16.msra.mxu0 %v555
    %1103 = vmatprep.subr.bf16.mxu0 0
    %1104 = vmatpush2.bf16.msra.mxu0 %v570
    %1105 = vmatprep.subr.bf16.mxu0 0
    %1106 = vmatpush2.bf16.msra.mxu0 %v569
    %1107 = vmatprep.subr.bf16.mxu0 0
    %1108 = vmatpush2.bf16.msra.mxu0 %v568
    %1109 = vmatprep.subr.bf16.mxu0 0
    %1110 = vmatpush2.bf16.msra.mxu0 %v567
    %1111 = vmatprep.subr.bf16.mxu0 0
    %1112 = vmatpush2.bf16.msra.mxu0 %v566
    %1113 = vmatprep.subr.bf16.mxu0 0
    %1114 = vmatpush2.bf16.msra.mxu0 %v565
    %1115 = vmatprep.subr.bf16.mxu0 0
    %1116 = vmatpush2.bf16.msra.mxu0 %v564
    %1117 = vmatprep.subr.bf16.mxu0 0
    %1118 = vmatpush2.bf16.msra.mxu0 %v563
    %1119 = vmatprep.mubr.bf16.mxu0 %v929
    %1120 = vmatmul.mubr.bf16.gmra.mxu0 %v928
    %v1121 = vpop.f32.mrf.mxu0
    %v1122 = vadd.f32 %v1025, %v1121
    %v1123 = vpop.f32.mrf.mxu0
    %v1124 = vpop.f32.mrf.mxu0
    %v1125 = vadd.f32 %v1028, %v1124
    %v1126 = vpop.f32.mrf.mxu0
    %1127 = vmatprep.mubr.bf16.mxu0 %v933
    %1128 = vmatmul.mubr.bf16.gmra.mxu0 %v932
    %v1129 = vpop.f32.mrf.mxu0
    %v1130 = vadd.f32 %v1033, %v1129
    %v1131 = vpop.f32.mrf.mxu0
    %v1132 = vpop.f32.mrf.mxu0
    %v1133 = vadd.f32 %v1036, %v1132
    %v1134 = vpop.f32.mrf.mxu0
    %1135 = vmatprep.mubr.bf16.mxu0 %v937
    %1136 = vmatmul.mubr.bf16.gmra.mxu0 %v936
    %v1137 = vpop.f32.mrf.mxu0
    %v1138 = vadd.f32 %v1041, %v1137
    %v1139 = vpop.f32.mrf.mxu0
    %v1140 = vpop.f32.mrf.mxu0
    %v1141 = vadd.f32 %v1044, %v1140
    %v1142 = vpop.f32.mrf.mxu0
    %1143 = vmatprep.mubr.bf16.mxu0 %v941
    %1144 = vmatmul.mubr.bf16.gmra.mxu0 %v940
    %v1145 = vpop.f32.mrf.mxu0
    %v1146 = vadd.f32 %v1049, %v1145
    %v1147 = vpop.f32.mrf.mxu0
    %v1148 = vpop.f32.mrf.mxu0
    %v1149 = vadd.f32 %v1052, %v1148
    %v1150 = vpop.f32.mrf.mxu0
    %1151 = vmatprep.mubr.bf16.mxu0 %v945
    %1152 = vmatmul.mubr.bf16.gmra.mxu0 %v944
    %v1153 = vpop.f32.mrf.mxu0
    %v1154 = vadd.f32 %v1057, %v1153
    %v1155 = vpop.f32.mrf.mxu0
    %v1156 = vpop.f32.mrf.mxu0
    %v1157 = vadd.f32 %v1060, %v1156
    %v1158 = vpop.f32.mrf.mxu0
    %1159 = vmatprep.mubr.bf16.mxu0 %v949
    %1160 = vmatmul.mubr.bf16.gmra.mxu0 %v948
    %v1161 = vpop.f32.mrf.mxu0
    %v1162 = vadd.f32 %v1065, %v1161
    %v1163 = vpop.f32.mrf.mxu0
    %v1164 = vpop.f32.mrf.mxu0
    %v1165 = vadd.f32 %v1068, %v1164
    %v1166 = vpop.f32.mrf.mxu0
    %1167 = vmatprep.mubr.bf16.mxu0 %v953
    %1168 = vmatmul.mubr.bf16.gmra.mxu0 %v952
    %v1169 = vpop.f32.mrf.mxu0
    %v1170 = vadd.f32 %v1073, %v1169
    %v1171 = vpop.f32.mrf.mxu0
    %v1172 = vpop.f32.mrf.mxu0
    %v1173 = vadd.f32 %v1076, %v1172
    %v1174 = vpop.f32.mrf.mxu0
    %1175 = vmatprep.mubr.bf16.mxu0 %v957
    %1176 = vmatmul.mubr.bf16.gmra.mxu0 %v956
    %v1177 = vpop.f32.mrf.mxu0
    %v1178 = vadd.f32 %v1081, %v1177
    %v1179 = vpop.f32.mrf.mxu0
    %v1180 = vpop.f32.mrf.mxu0
    %v1181 = vadd.f32 %v1084, %v1180
    %v1182 = vpop.f32.mrf.mxu0
    %1183 = vdwg.mxu0
    %s1184 = scalar_lea.vmem [#allocation2], 512
    %v1185 = vld [vmem:[%s1184] sm:$0xff]
    %v1186 = vld [vmem:[%s1184 + $0x8] sm:$0xff]
    %v1187 = vld [vmem:[%s1184 + $0x10] sm:$0xff]
    %v1188 = vld [vmem:[%s1184 + $0x18] sm:$0xff]
    %v1189 = vld [vmem:[%s1184 + $0x20] sm:$0xff]
    %v1190 = vld [vmem:[%s1184 + $0x28] sm:$0xff]
    %v1191 = vld [vmem:[%s1184 + $0x30] sm:$0xff]
    %v1192 = vld [vmem:[%s1184 + $0x38] sm:$0xff]
    %v1193 = vld [vmem:[%s1184 + $0x40] sm:$0xff]
    %v1194 = vld [vmem:[%s1184 + $0x48] sm:$0xff]
    %v1195 = vld [vmem:[%s1184 + $0x50] sm:$0xff]
    %v1196 = vld [vmem:[%s1184 + $0x58] sm:$0xff]
    %v1197 = vld [vmem:[%s1184 + $0x60] sm:$0xff]
    %v1198 = vld [vmem:[%s1184 + $0x68] sm:$0xff]
    %v1199 = vld [vmem:[%s1184 + $0x70] sm:$0xff]
    %v1200 = vld [vmem:[%s1184 + $0x78] sm:$0xff]
    %v1201 = vld [vmem:[%s1184 + $0x80] sm:$0xff]
    %v1202 = vld [vmem:[%s1184 + $0x88] sm:$0xff]
    %v1203 = vld [vmem:[%s1184 + $0x90] sm:$0xff]
    %v1204 = vld [vmem:[%s1184 + $0x98] sm:$0xff]
    %v1205 = vld [vmem:[%s1184 + $0xa0] sm:$0xff]
    %v1206 = vld [vmem:[%s1184 + $0xa8] sm:$0xff]
    %v1207 = vld [vmem:[%s1184 + $0xb0] sm:$0xff]
    %v1208 = vld [vmem:[%s1184 + $0xb8] sm:$0xff]
    %v1209 = vld [vmem:[%s1184 + $0xc0] sm:$0xff]
    %v1210 = vld [vmem:[%s1184 + $0xc8] sm:$0xff]
    %v1211 = vld [vmem:[%s1184 + $0xd0] sm:$0xff]
    %v1212 = vld [vmem:[%s1184 + $0xd8] sm:$0xff]
    %v1213 = vld [vmem:[%s1184 + $0xe0] sm:$0xff]
    %v1214 = vld [vmem:[%s1184 + $0xe8] sm:$0xff]
    %v1215 = vld [vmem:[%s1184 + $0xf0] sm:$0xff]
    %v1216 = vld [vmem:[%s1184 + $0xf8] sm:$0xff]
    %v1249 = vunpack.c.l.b16 %v1185
    %v1250 = vunpack.c.h.b16 %v1185
    %v1251 = vunpack.c.l.b16 %v1186
    %v1252 = vunpack.c.h.b16 %v1186
    %v1253 = vunpack.c.l.b16 %v1187
    %v1254 = vunpack.c.h.b16 %v1187
    %v1255 = vunpack.c.l.b16 %v1188
    %v1256 = vunpack.c.h.b16 %v1188
    %v1257 = vunpack.c.l.b16 %v1189
    %v1258 = vunpack.c.h.b16 %v1189
    %v1259 = vunpack.c.l.b16 %v1190
    %v1260 = vunpack.c.h.b16 %v1190
    %v1261 = vunpack.c.l.b16 %v1191
    %v1262 = vunpack.c.h.b16 %v1191
    %v1263 = vunpack.c.l.b16 %v1192
    %v1264 = vunpack.c.h.b16 %v1192
    %v1265 = vunpack.c.l.b16 %v1193
    %v1266 = vunpack.c.h.b16 %v1193
    %v1267 = vunpack.c.l.b16 %v1194
    %v1268 = vunpack.c.h.b16 %v1194
    %v1269 = vunpack.c.l.b16 %v1195
    %v1270 = vunpack.c.h.b16 %v1195
    %v1271 = vunpack.c.l.b16 %v1196
    %v1272 = vunpack.c.h.b16 %v1196
    %v1273 = vunpack.c.l.b16 %v1197
    %v1274 = vunpack.c.h.b16 %v1197
    %v1275 = vunpack.c.l.b16 %v1198
    %v1276 = vunpack.c.h.b16 %v1198
    %v1277 = vunpack.c.l.b16 %v1199
    %v1278 = vunpack.c.h.b16 %v1199
    %v1279 = vunpack.c.l.b16 %v1200
    %v1280 = vunpack.c.h.b16 %v1200
    %v1281 = vunpack.c.l.b16 %v1201
    %v1282 = vunpack.c.h.b16 %v1201
    %v1283 = vunpack.c.l.b16 %v1202
    %v1284 = vunpack.c.h.b16 %v1202
    %v1285 = vunpack.c.l.b16 %v1203
    %v1286 = vunpack.c.h.b16 %v1203
    %v1287 = vunpack.c.l.b16 %v1204
    %v1288 = vunpack.c.h.b16 %v1204
    %v1289 = vunpack.c.l.b16 %v1205
    %v1290 = vunpack.c.h.b16 %v1205
    %v1291 = vunpack.c.l.b16 %v1206
    %v1292 = vunpack.c.h.b16 %v1206
    %v1293 = vunpack.c.l.b16 %v1207
    %v1294 = vunpack.c.h.b16 %v1207
    %v1295 = vunpack.c.l.b16 %v1208
    %v1296 = vunpack.c.h.b16 %v1208
    %v1297 = vunpack.c.l.b16 %v1209
    %v1298 = vunpack.c.h.b16 %v1209
    %v1299 = vunpack.c.l.b16 %v1210
    %v1300 = vunpack.c.h.b16 %v1210
    %v1301 = vunpack.c.l.b16 %v1211
    %v1302 = vunpack.c.h.b16 %v1211
    %v1303 = vunpack.c.l.b16 %v1212
    %v1304 = vunpack.c.h.b16 %v1212
    %v1305 = vunpack.c.l.b16 %v1213
    %v1306 = vunpack.c.h.b16 %v1213
    %v1307 = vunpack.c.l.b16 %v1214
    %v1308 = vunpack.c.h.b16 %v1214
    %v1309 = vunpack.c.l.b16 %v1215
    %v1310 = vunpack.c.h.b16 %v1215
    %v1311 = vunpack.c.l.b16 %v1216
    %v1312 = vunpack.c.h.b16 %v1216
    %v1313 = vpack.c.b16 %v1253, %v1249
    %v1314 = vpack.c.b16 %v1254, %v1250
    %v1315 = vpack.c.b16 %v1255, %v1251
    %v1316 = vpack.c.b16 %v1256, %v1252
    %v1317 = vpack.c.b16 %v1261, %v1257
    %v1318 = vpack.c.b16 %v1262, %v1258
    %v1319 = vpack.c.b16 %v1263, %v1259
    %v1320 = vpack.c.b16 %v1264, %v1260
    %v1321 = vpack.c.b16 %v1269, %v1265
    %v1322 = vpack.c.b16 %v1270, %v1266
    %v1323 = vpack.c.b16 %v1271, %v1267
    %v1324 = vpack.c.b16 %v1272, %v1268
    %v1325 = vpack.c.b16 %v1277, %v1273
    %v1326 = vpack.c.b16 %v1278, %v1274
    %v1327 = vpack.c.b16 %v1279, %v1275
    %v1328 = vpack.c.b16 %v1280, %v1276
    %v1329 = vpack.c.b16 %v1285, %v1281
    %v1330 = vpack.c.b16 %v1286, %v1282
    %v1331 = vpack.c.b16 %v1287, %v1283
    %v1332 = vpack.c.b16 %v1288, %v1284
    %v1333 = vpack.c.b16 %v1293, %v1289
    %v1334 = vpack.c.b16 %v1294, %v1290
    %v1335 = vpack.c.b16 %v1295, %v1291
    %v1336 = vpack.c.b16 %v1296, %v1292
    %v1337 = vpack.c.b16 %v1301, %v1297
    %v1338 = vpack.c.b16 %v1302, %v1298
    %v1339 = vpack.c.b16 %v1303, %v1299
    %v1340 = vpack.c.b16 %v1304, %v1300
    %v1341 = vpack.c.b16 %v1309, %v1305
    %v1342 = vpack.c.b16 %v1310, %v1306
    %v1343 = vpack.c.b16 %v1311, %v1307
    %v1344 = vpack.c.b16 %v1312, %v1308
    %1377 = vmatprep.subr.bf16.mxu0 0
    %1378 = vmatpush1.bf16.msra.mxu0 %v546
    %1379 = vmatprep.subr.bf16.mxu0 0
    %1380 = vmatpush1.bf16.msra.mxu0 %v545
    %1381 = vmatprep.subr.bf16.mxu0 0
    %1382 = vmatpush1.bf16.msra.mxu0 %v544
    %1383 = vmatprep.subr.bf16.mxu0 0
    %1384 = vmatpush1.bf16.msra.mxu0 %v543
    %1385 = vmatprep.subr.bf16.mxu0 0
    %1386 = vmatpush1.bf16.msra.mxu0 %v542
    %1387 = vmatprep.subr.bf16.mxu0 0
    %1388 = vmatpush1.bf16.msra.mxu0 %v541
    %1389 = vmatprep.subr.bf16.mxu0 0
    %1390 = vmatpush1.bf16.msra.mxu0 %v540
    %1391 = vmatprep.subr.bf16.mxu0 0
    %1392 = vmatpush1.bf16.msra.mxu0 %v539
    %1393 = vmatprep.subr.bf16.mxu0 0
    %1394 = vmatpush2.bf16.msra.mxu0 %v554
    %1395 = vmatprep.subr.bf16.mxu0 0
    %1396 = vmatpush2.bf16.msra.mxu0 %v553
    %1397 = vmatprep.subr.bf16.mxu0 0
    %1398 = vmatpush2.bf16.msra.mxu0 %v552
    %1399 = vmatprep.subr.bf16.mxu0 0
    %1400 = vmatpush2.bf16.msra.mxu0 %v551
    %1401 = vmatprep.subr.bf16.mxu0 0
    %1402 = vmatpush2.bf16.msra.mxu0 %v550
    %1403 = vmatprep.subr.bf16.mxu0 0
    %1404 = vmatpush2.bf16.msra.mxu0 %v549
    %1405 = vmatprep.subr.bf16.mxu0 0
    %1406 = vmatpush2.bf16.msra.mxu0 %v548
    %1407 = vmatprep.subr.bf16.mxu0 0
    %1408 = vmatpush2.bf16.msra.mxu0 %v547
    %1409 = vmatprep.mubr.bf16.mxu0 %v1314
    %1410 = vmatmul.mubr.bf16.gmra.mxu0 %v1313
    %v1411 = vpop.f32.mrf.mxu0
    %v1412 = vadd.f32 0.0, %v1411
    %v1413 = vpop.f32.mrf.mxu0
    %v1414 = vpop.f32.mrf.mxu0
    %v1415 = vadd.f32 0.0, %v1414
    %v1416 = vpop.f32.mrf.mxu0
    %1417 = vmatprep.mubr.bf16.mxu0 %v1318
    %1418 = vmatmul.mubr.bf16.gmra.mxu0 %v1317
    %v1419 = vpop.f32.mrf.mxu0
    %v1420 = vadd.f32 0.0, %v1419
    %v1421 = vpop.f32.mrf.mxu0
    %v1422 = vpop.f32.mrf.mxu0
    %v1423 = vadd.f32 0.0, %v1422
    %v1424 = vpop.f32.mrf.mxu0
    %1425 = vmatprep.mubr.bf16.mxu0 %v1322
    %1426 = vmatmul.mubr.bf16.gmra.mxu0 %v1321
    %v1427 = vpop.f32.mrf.mxu0
    %v1428 = vadd.f32 0.0, %v1427
    %v1429 = vpop.f32.mrf.mxu0
    %v1430 = vpop.f32.mrf.mxu0
    %v1431 = vadd.f32 0.0, %v1430
    %v1432 = vpop.f32.mrf.mxu0
    %1433 = vmatprep.mubr.bf16.mxu0 %v1326
    %1434 = vmatmul.mubr.bf16.gmra.mxu0 %v1325
    %v1435 = vpop.f32.mrf.mxu0
    %v1436 = vadd.f32 0.0, %v1435
    %v1437 = vpop.f32.mrf.mxu0
    %v1438 = vpop.f32.mrf.mxu0
    %v1439 = vadd.f32 0.0, %v1438
    %v1440 = vpop.f32.mrf.mxu0
    %1441 = vmatprep.mubr.bf16.mxu0 %v1330
    %1442 = vmatmul.mubr.bf16.gmra.mxu0 %v1329
    %v1443 = vpop.f32.mrf.mxu0
    %v1444 = vadd.f32 0.0, %v1443
    %v1445 = vpop.f32.mrf.mxu0
    %v1446 = vpop.f32.mrf.mxu0
    %v1447 = vadd.f32 0.0, %v1446
    %v1448 = vpop.f32.mrf.mxu0
    %1449 = vmatprep.mubr.bf16.mxu0 %v1334
    %1450 = vmatmul.mubr.bf16.gmra.mxu0 %v1333
    %v1451 = vpop.f32.mrf.mxu0
    %v1452 = vadd.f32 0.0, %v1451
    %v1453 = vpop.f32.mrf.mxu0
    %v1454 = vpop.f32.mrf.mxu0
    %v1455 = vadd.f32 0.0, %v1454
    %v1456 = vpop.f32.mrf.mxu0
    %1457 = vmatprep.mubr.bf16.mxu0 %v1338
    %1458 = vmatmul.mubr.bf16.gmra.mxu0 %v1337
    %v1459 = vpop.f32.mrf.mxu0
    %v1460 = vadd.f32 0.0, %v1459
    %v1461 = vpop.f32.mrf.mxu0
    %v1462 = vpop.f32.mrf.mxu0
    %v1463 = vadd.f32 0.0, %v1462
    %v1464 = vpop.f32.mrf.mxu0
    %1465 = vmatprep.mubr.bf16.mxu0 %v1342
    %1466 = vmatmul.mubr.bf16.gmra.mxu0 %v1341
    %v1467 = vpop.f32.mrf.mxu0
    %v1468 = vadd.f32 0.0, %v1467
    %v1469 = vpop.f32.mrf.mxu0
    %v1470 = vpop.f32.mrf.mxu0
    %v1471 = vadd.f32 0.0, %v1470
    %v1472 = vpop.f32.mrf.mxu0
    %1473 = vdwg.mxu0
    %1474 = vmatprep.subr.bf16.mxu0 0
    %1475 = vmatpush1.bf16.msra.mxu0 %v562
    %1476 = vmatprep.subr.bf16.mxu0 0
    %1477 = vmatpush1.bf16.msra.mxu0 %v561
    %1478 = vmatprep.subr.bf16.mxu0 0
    %1479 = vmatpush1.bf16.msra.mxu0 %v560
    %1480 = vmatprep.subr.bf16.mxu0 0
    %1481 = vmatpush1.bf16.msra.mxu0 %v559
    %1482 = vmatprep.subr.bf16.mxu0 0
    %1483 = vmatpush1.bf16.msra.mxu0 %v558
    %1484 = vmatprep.subr.bf16.mxu0 0
    %1485 = vmatpush1.bf16.msra.mxu0 %v557
    %1486 = vmatprep.subr.bf16.mxu0 0
    %1487 = vmatpush1.bf16.msra.mxu0 %v556
    %1488 = vmatprep.subr.bf16.mxu0 0
    %1489 = vmatpush1.bf16.msra.mxu0 %v555
    %1490 = vmatprep.subr.bf16.mxu0 0
    %1491 = vmatpush2.bf16.msra.mxu0 %v570
    %1492 = vmatprep.subr.bf16.mxu0 0
    %1493 = vmatpush2.bf16.msra.mxu0 %v569
    %1494 = vmatprep.subr.bf16.mxu0 0
    %1495 = vmatpush2.bf16.msra.mxu0 %v568
    %1496 = vmatprep.subr.bf16.mxu0 0
    %1497 = vmatpush2.bf16.msra.mxu0 %v567
    %1498 = vmatprep.subr.bf16.mxu0 0
    %1499 = vmatpush2.bf16.msra.mxu0 %v566
    %1500 = vmatprep.subr.bf16.mxu0 0
    %1501 = vmatpush2.bf16.msra.mxu0 %v565
    %1502 = vmatprep.subr.bf16.mxu0 0
    %1503 = vmatpush2.bf16.msra.mxu0 %v564
    %1504 = vmatprep.subr.bf16.mxu0 0
    %1505 = vmatpush2.bf16.msra.mxu0 %v563
    %1506 = vmatprep.mubr.bf16.mxu0 %v1316
    %1507 = vmatmul.mubr.bf16.gmra.mxu0 %v1315
    %v1508 = vpop.f32.mrf.mxu0
    %v1509 = vadd.f32 %v1412, %v1508
    %v1510 = vpop.f32.mrf.mxu0
    %v1511 = vpop.f32.mrf.mxu0
    %v1512 = vadd.f32 %v1415, %v1511
    %v1513 = vpop.f32.mrf.mxu0
    %1514 = vmatprep.mubr.bf16.mxu0 %v1320
    %1515 = vmatmul.mubr.bf16.gmra.mxu0 %v1319
    %v1516 = vpop.f32.mrf.mxu0
    %v1517 = vadd.f32 %v1420, %v1516
    %v1518 = vpop.f32.mrf.mxu0
    %v1519 = vpop.f32.mrf.mxu0
    %v1520 = vadd.f32 %v1423, %v1519
    %v1521 = vpop.f32.mrf.mxu0
    %1522 = vmatprep.mubr.bf16.mxu0 %v1324
    %1523 = vmatmul.mubr.bf16.gmra.mxu0 %v1323
    %v1524 = vpop.f32.mrf.mxu0
    %v1525 = vadd.f32 %v1428, %v1524
    %v1526 = vpop.f32.mrf.mxu0
    %v1527 = vpop.f32.mrf.mxu0
    %v1528 = vadd.f32 %v1431, %v1527
    %v1529 = vpop.f32.mrf.mxu0
    %1530 = vmatprep.mubr.bf16.mxu0 %v1328
    %1531 = vmatmul.mubr.bf16.gmra.mxu0 %v1327
    %v1532 = vpop.f32.mrf.mxu0
    %v1533 = vadd.f32 %v1436, %v1532
    %v1534 = vpop.f32.mrf.mxu0
    %v1535 = vpop.f32.mrf.mxu0
    %v1536 = vadd.f32 %v1439, %v1535
    %v1537 = vpop.f32.mrf.mxu0
    %1538 = vmatprep.mubr.bf16.mxu0 %v1332
    %1539 = vmatmul.mubr.bf16.gmra.mxu0 %v1331
    %v1540 = vpop.f32.mrf.mxu0
    %v1541 = vadd.f32 %v1444, %v1540
    %v1542 = vpop.f32.mrf.mxu0
    %v1543 = vpop.f32.mrf.mxu0
    %v1544 = vadd.f32 %v1447, %v1543
    %v1545 = vpop.f32.mrf.mxu0
    %1546 = vmatprep.mubr.bf16.mxu0 %v1336
    %1547 = vmatmul.mubr.bf16.gmra.mxu0 %v1335
    %v1548 = vpop.f32.mrf.mxu0
    %v1549 = vadd.f32 %v1452, %v1548
    %v1550 = vpop.f32.mrf.mxu0
    %v1551 = vpop.f32.mrf.mxu0
    %v1552 = vadd.f32 %v1455, %v1551
    %v1553 = vpop.f32.mrf.mxu0
    %1554 = vmatprep.mubr.bf16.mxu0 %v1340
    %1555 = vmatmul.mubr.bf16.gmra.mxu0 %v1339
    %v1556 = vpop.f32.mrf.mxu0
    %v1557 = vadd.f32 %v1460, %v1556
    %v1558 = vpop.f32.mrf.mxu0
    %v1559 = vpop.f32.mrf.mxu0
    %v1560 = vadd.f32 %v1463, %v1559
    %v1561 = vpop.f32.mrf.mxu0
    %1562 = vmatprep.mubr.bf16.mxu0 %v1344
    %1563 = vmatmul.mubr.bf16.gmra.mxu0 %v1343
    %v1564 = vpop.f32.mrf.mxu0
    %v1565 = vadd.f32 %v1468, %v1564
    %v1566 = vpop.f32.mrf.mxu0
    %v1567 = vpop.f32.mrf.mxu0
    %v1568 = vadd.f32 %v1471, %v1567
    %v1569 = vpop.f32.mrf.mxu0
    %1570 = vdwg.mxu0
    %s1571 = scalar_lea.vmem [#allocation2], 768
    %v1572 = vld [vmem:[%s1571] sm:$0xff]
    %v1573 = vld [vmem:[%s1571 + $0x8] sm:$0xff]
    %v1574 = vld [vmem:[%s1571 + $0x10] sm:$0xff]
    %v1575 = vld [vmem:[%s1571 + $0x18] sm:$0xff]
    %v1576 = vld [vmem:[%s1571 + $0x20] sm:$0xff]
    %v1577 = vld [vmem:[%s1571 + $0x28] sm:$0xff]
    %v1578 = vld [vmem:[%s1571 + $0x30] sm:$0xff]
    %v1579 = vld [vmem:[%s1571 + $0x38] sm:$0xff]
    %v1580 = vld [vmem:[%s1571 + $0x40] sm:$0xff]
    %v1581 = vld [vmem:[%s1571 + $0x48] sm:$0xff]
    %v1582 = vld [vmem:[%s1571 + $0x50] sm:$0xff]
    %v1583 = vld [vmem:[%s1571 + $0x58] sm:$0xff]
    %v1584 = vld [vmem:[%s1571 + $0x60] sm:$0xff]
    %v1585 = vld [vmem:[%s1571 + $0x68] sm:$0xff]
    %v1586 = vld [vmem:[%s1571 + $0x70] sm:$0xff]
    %v1587 = vld [vmem:[%s1571 + $0x78] sm:$0xff]
    %v1588 = vld [vmem:[%s1571 + $0x80] sm:$0xff]
    %v1589 = vld [vmem:[%s1571 + $0x88] sm:$0xff]
    %v1590 = vld [vmem:[%s1571 + $0x90] sm:$0xff]
    %v1591 = vld [vmem:[%s1571 + $0x98] sm:$0xff]
    %v1592 = vld [vmem:[%s1571 + $0xa0] sm:$0xff]
    %v1593 = vld [vmem:[%s1571 + $0xa8] sm:$0xff]
    %v1594 = vld [vmem:[%s1571 + $0xb0] sm:$0xff]
    %v1595 = vld [vmem:[%s1571 + $0xb8] sm:$0xff]
    %v1596 = vld [vmem:[%s1571 + $0xc0] sm:$0xff]
    %v1597 = vld [vmem:[%s1571 + $0xc8] sm:$0xff]
    %v1598 = vld [vmem:[%s1571 + $0xd0] sm:$0xff]
    %v1599 = vld [vmem:[%s1571 + $0xd8] sm:$0xff]
    %v1600 = vld [vmem:[%s1571 + $0xe0] sm:$0xff]
    %v1601 = vld [vmem:[%s1571 + $0xe8] sm:$0xff]
    %v1602 = vld [vmem:[%s1571 + $0xf0] sm:$0xff]
    %v1603 = vld [vmem:[%s1571 + $0xf8] sm:$0xff]
    %v1636 = vunpack.c.l.b16 %v1572
    %v1637 = vunpack.c.h.b16 %v1572
    %v1638 = vunpack.c.l.b16 %v1573
    %v1639 = vunpack.c.h.b16 %v1573
    %v1640 = vunpack.c.l.b16 %v1574
    %v1641 = vunpack.c.h.b16 %v1574
    %v1642 = vunpack.c.l.b16 %v1575
    %v1643 = vunpack.c.h.b16 %v1575
    %v1644 = vunpack.c.l.b16 %v1576
    %v1645 = vunpack.c.h.b16 %v1576
    %v1646 = vunpack.c.l.b16 %v1577
    %v1647 = vunpack.c.h.b16 %v1577
    %v1648 = vunpack.c.l.b16 %v1578
    %v1649 = vunpack.c.h.b16 %v1578
    %v1650 = vunpack.c.l.b16 %v1579
    %v1651 = vunpack.c.h.b16 %v1579
    %v1652 = vunpack.c.l.b16 %v1580
    %v1653 = vunpack.c.h.b16 %v1580
    %v1654 = vunpack.c.l.b16 %v1581
    %v1655 = vunpack.c.h.b16 %v1581
    %v1656 = vunpack.c.l.b16 %v1582
    %v1657 = vunpack.c.h.b16 %v1582
    %v1658 = vunpack.c.l.b16 %v1583
    %v1659 = vunpack.c.h.b16 %v1583
    %v1660 = vunpack.c.l.b16 %v1584
    %v1661 = vunpack.c.h.b16 %v1584
    %v1662 = vunpack.c.l.b16 %v1585
    %v1663 = vunpack.c.h.b16 %v1585
    %v1664 = vunpack.c.l.b16 %v1586
    %v1665 = vunpack.c.h.b16 %v1586
    %v1666 = vunpack.c.l.b16 %v1587
    %v1667 = vunpack.c.h.b16 %v1587
    %v1668 = vunpack.c.l.b16 %v1588
    %v1669 = vunpack.c.h.b16 %v1588
    %v1670 = vunpack.c.l.b16 %v1589
    %v1671 = vunpack.c.h.b16 %v1589
    %v1672 = vunpack.c.l.b16 %v1590
    %v1673 = vunpack.c.h.b16 %v1590
    %v1674 = vunpack.c.l.b16 %v1591
    %v1675 = vunpack.c.h.b16 %v1591
    %v1676 = vunpack.c.l.b16 %v1592
    %v1677 = vunpack.c.h.b16 %v1592
    %v1678 = vunpack.c.l.b16 %v1593
    %v1679 = vunpack.c.h.b16 %v1593
    %v1680 = vunpack.c.l.b16 %v1594
    %v1681 = vunpack.c.h.b16 %v1594
    %v1682 = vunpack.c.l.b16 %v1595
    %v1683 = vunpack.c.h.b16 %v1595
    %v1684 = vunpack.c.l.b16 %v1596
    %v1685 = vunpack.c.h.b16 %v1596
    %v1686 = vunpack.c.l.b16 %v1597
    %v1687 = vunpack.c.h.b16 %v1597
    %v1688 = vunpack.c.l.b16 %v1598
    %v1689 = vunpack.c.h.b16 %v1598
    %v1690 = vunpack.c.l.b16 %v1599
    %v1691 = vunpack.c.h.b16 %v1599
    %v1692 = vunpack.c.l.b16 %v1600
    %v1693 = vunpack.c.h.b16 %v1600
    %v1694 = vunpack.c.l.b16 %v1601
    %v1695 = vunpack.c.h.b16 %v1601
    %v1696 = vunpack.c.l.b16 %v1602
    %v1697 = vunpack.c.h.b16 %v1602
    %v1698 = vunpack.c.l.b16 %v1603
    %v1699 = vunpack.c.h.b16 %v1603
    %v1700 = vpack.c.b16 %v1640, %v1636
    %v1701 = vpack.c.b16 %v1641, %v1637
    %v1702 = vpack.c.b16 %v1642, %v1638
    %v1703 = vpack.c.b16 %v1643, %v1639
    %v1704 = vpack.c.b16 %v1648, %v1644
    %v1705 = vpack.c.b16 %v1649, %v1645
    %v1706 = vpack.c.b16 %v1650, %v1646
    %v1707 = vpack.c.b16 %v1651, %v1647
    %v1708 = vpack.c.b16 %v1656, %v1652
    %v1709 = vpack.c.b16 %v1657, %v1653
    %v1710 = vpack.c.b16 %v1658, %v1654
    %v1711 = vpack.c.b16 %v1659, %v1655
    %v1712 = vpack.c.b16 %v1664, %v1660
    %v1713 = vpack.c.b16 %v1665, %v1661
    %v1714 = vpack.c.b16 %v1666, %v1662
    %v1715 = vpack.c.b16 %v1667, %v1663
    %v1716 = vpack.c.b16 %v1672, %v1668
    %v1717 = vpack.c.b16 %v1673, %v1669
    %v1718 = vpack.c.b16 %v1674, %v1670
    %v1719 = vpack.c.b16 %v1675, %v1671
    %v1720 = vpack.c.b16 %v1680, %v1676
    %v1721 = vpack.c.b16 %v1681, %v1677
    %v1722 = vpack.c.b16 %v1682, %v1678
    %v1723 = vpack.c.b16 %v1683, %v1679
    %v1724 = vpack.c.b16 %v1688, %v1684
    %v1725 = vpack.c.b16 %v1689, %v1685
    %v1726 = vpack.c.b16 %v1690, %v1686
    %v1727 = vpack.c.b16 %v1691, %v1687
    %v1728 = vpack.c.b16 %v1696, %v1692
    %v1729 = vpack.c.b16 %v1697, %v1693
    %v1730 = vpack.c.b16 %v1698, %v1694
    %v1731 = vpack.c.b16 %v1699, %v1695
    %1764 = vmatprep.subr.bf16.mxu0 0
    %1765 = vmatpush1.bf16.msra.mxu0 %v546
    %1766 = vmatprep.subr.bf16.mxu0 0
    %1767 = vmatpush1.bf16.msra.mxu0 %v545
    %1768 = vmatprep.subr.bf16.mxu0 0
    %1769 = vmatpush1.bf16.msra.mxu0 %v544
    %1770 = vmatprep.subr.bf16.mxu0 0
    %1771 = vmatpush1.bf16.msra.mxu0 %v543
    %1772 = vmatprep.subr.bf16.mxu0 0
    %1773 = vmatpush1.bf16.msra.mxu0 %v542
    %1774 = vmatprep.subr.bf16.mxu0 0
    %1775 = vmatpush1.bf16.msra.mxu0 %v541
    %1776 = vmatprep.subr.bf16.mxu0 0
    %1777 = vmatpush1.bf16.msra.mxu0 %v540
    %1778 = vmatprep.subr.bf16.mxu0 0
    %1779 = vmatpush1.bf16.msra.mxu0 %v539
    %1780 = vmatprep.subr.bf16.mxu0 0
    %1781 = vmatpush2.bf16.msra.mxu0 %v554
    %1782 = vmatprep.subr.bf16.mxu0 0
    %1783 = vmatpush2.bf16.msra.mxu0 %v553
    %1784 = vmatprep.subr.bf16.mxu0 0
    %1785 = vmatpush2.bf16.msra.mxu0 %v552
    %1786 = vmatprep.subr.bf16.mxu0 0
    %1787 = vmatpush2.bf16.msra.mxu0 %v551
    %1788 = vmatprep.subr.bf16.mxu0 0
    %1789 = vmatpush2.bf16.msra.mxu0 %v550
    %1790 = vmatprep.subr.bf16.mxu0 0
    %1791 = vmatpush2.bf16.msra.mxu0 %v549
    %1792 = vmatprep.subr.bf16.mxu0 0
    %1793 = vmatpush2.bf16.msra.mxu0 %v548
    %1794 = vmatprep.subr.bf16.mxu0 0
    %1795 = vmatpush2.bf16.msra.mxu0 %v547
    %1796 = vmatprep.mubr.bf16.mxu0 %v1701
    %1797 = vmatmul.mubr.bf16.gmra.mxu0 %v1700
    %v1798 = vpop.f32.mrf.mxu0
    %v1799 = vadd.f32 0.0, %v1798
    %v1800 = vpop.f32.mrf.mxu0
    %v1801 = vpop.f32.mrf.mxu0
    %v1802 = vadd.f32 0.0, %v1801
    %v1803 = vpop.f32.mrf.mxu0
    %1804 = vmatprep.mubr.bf16.mxu0 %v1705
    %1805 = vmatmul.mubr.bf16.gmra.mxu0 %v1704
    %v1806 = vpop.f32.mrf.mxu0
    %v1807 = vadd.f32 0.0, %v1806
    %v1808 = vpop.f32.mrf.mxu0
    %v1809 = vpop.f32.mrf.mxu0
    %v1810 = vadd.f32 0.0, %v1809
    %v1811 = vpop.f32.mrf.mxu0
    %1812 = vmatprep.mubr.bf16.mxu0 %v1709
    %1813 = vmatmul.mubr.bf16.gmra.mxu0 %v1708
    %v1814 = vpop.f32.mrf.mxu0
    %v1815 = vadd.f32 0.0, %v1814
    %v1816 = vpop.f32.mrf.mxu0
    %v1817 = vpop.f32.mrf.mxu0
    %v1818 = vadd.f32 0.0, %v1817
    %v1819 = vpop.f32.mrf.mxu0
    %1820 = vmatprep.mubr.bf16.mxu0 %v1713
    %1821 = vmatmul.mubr.bf16.gmra.mxu0 %v1712
    %v1822 = vpop.f32.mrf.mxu0
    %v1823 = vadd.f32 0.0, %v1822
    %v1824 = vpop.f32.mrf.mxu0
    %v1825 = vpop.f32.mrf.mxu0
    %v1826 = vadd.f32 0.0, %v1825
    %v1827 = vpop.f32.mrf.mxu0
    %1828 = vmatprep.mubr.bf16.mxu0 %v1717
    %1829 = vmatmul.mubr.bf16.gmra.mxu0 %v1716
    %v1830 = vpop.f32.mrf.mxu0
    %v1831 = vadd.f32 0.0, %v1830
    %v1832 = vpop.f32.mrf.mxu0
    %v1833 = vpop.f32.mrf.mxu0
    %v1834 = vadd.f32 0.0, %v1833
    %v1835 = vpop.f32.mrf.mxu0
    %1836 = vmatprep.mubr.bf16.mxu0 %v1721
    %1837 = vmatmul.mubr.bf16.gmra.mxu0 %v1720
    %v1838 = vpop.f32.mrf.mxu0
    %v1839 = vadd.f32 0.0, %v1838
    %v1840 = vpop.f32.mrf.mxu0
    %v1841 = vpop.f32.mrf.mxu0
    %v1842 = vadd.f32 0.0, %v1841
    %v1843 = vpop.f32.mrf.mxu0
    %1844 = vmatprep.mubr.bf16.mxu0 %v1725
    %1845 = vmatmul.mubr.bf16.gmra.mxu0 %v1724
    %v1846 = vpop.f32.mrf.mxu0
    %v1847 = vadd.f32 0.0, %v1846
    %v1848 = vpop.f32.mrf.mxu0
    %v1849 = vpop.f32.mrf.mxu0
    %v1850 = vadd.f32 0.0, %v1849
    %v1851 = vpop.f32.mrf.mxu0
    %1852 = vmatprep.mubr.bf16.mxu0 %v1729
    %1853 = vmatmul.mubr.bf16.gmra.mxu0 %v1728
    %v1854 = vpop.f32.mrf.mxu0
    %v1855 = vadd.f32 0.0, %v1854
    %v1856 = vpop.f32.mrf.mxu0
    %v1857 = vpop.f32.mrf.mxu0
    %v1858 = vadd.f32 0.0, %v1857
    %v1859 = vpop.f32.mrf.mxu0
    %1860 = vdwg.mxu0
    %1861 = vmatprep.subr.bf16.mxu0 0
    %1862 = vmatpush1.bf16.msra.mxu0 %v562
    %1863 = vmatprep.subr.bf16.mxu0 0
    %1864 = vmatpush1.bf16.msra.mxu0 %v561
    %1865 = vmatprep.subr.bf16.mxu0 0
    %1866 = vmatpush1.bf16.msra.mxu0 %v560
    %1867 = vmatprep.subr.bf16.mxu0 0
    %1868 = vmatpush1.bf16.msra.mxu0 %v559
    %1869 = vmatprep.subr.bf16.mxu0 0
    %1870 = vmatpush1.bf16.msra.mxu0 %v558
    %1871 = vmatprep.subr.bf16.mxu0 0
    %1872 = vmatpush1.bf16.msra.mxu0 %v557
    %1873 = vmatprep.subr.bf16.mxu0 0
    %1874 = vmatpush1.bf16.msra.mxu0 %v556
    %1875 = vmatprep.subr.bf16.mxu0 0
    %1876 = vmatpush1.bf16.msra.mxu0 %v555
    %1877 = vmatprep.subr.bf16.mxu0 0
    %1878 = vmatpush2.bf16.msra.mxu0 %v570
    %1879 = vmatprep.subr.bf16.mxu0 0
    %1880 = vmatpush2.bf16.msra.mxu0 %v569
    %1881 = vmatprep.subr.bf16.mxu0 0
    %1882 = vmatpush2.bf16.msra.mxu0 %v568
    %1883 = vmatprep.subr.bf16.mxu0 0
    %1884 = vmatpush2.bf16.msra.mxu0 %v567
    %1885 = vmatprep.subr.bf16.mxu0 0
    %1886 = vmatpush2.bf16.msra.mxu0 %v566
    %1887 = vmatprep.subr.bf16.mxu0 0
    %1888 = vmatpush2.bf16.msra.mxu0 %v565
    %1889 = vmatprep.subr.bf16.mxu0 0
    %1890 = vmatpush2.bf16.msra.mxu0 %v564
    %1891 = vmatprep.subr.bf16.mxu0 0
    %1892 = vmatpush2.bf16.msra.mxu0 %v563
    %1893 = vmatprep.mubr.bf16.mxu0 %v1703
    %1894 = vmatmul.mubr.bf16.gmra.mxu0 %v1702
    %v1895 = vpop.f32.mrf.mxu0
    %v1896 = vadd.f32 %v1799, %v1895
    %v1897 = vpop.f32.mrf.mxu0
    %v1898 = vpop.f32.mrf.mxu0
    %v1899 = vadd.f32 %v1802, %v1898
    %v1900 = vpop.f32.mrf.mxu0
    %1901 = vmatprep.mubr.bf16.mxu0 %v1707
    %1902 = vmatmul.mubr.bf16.gmra.mxu0 %v1706
    %v1903 = vpop.f32.mrf.mxu0
    %v1904 = vadd.f32 %v1807, %v1903
    %v1905 = vpop.f32.mrf.mxu0
    %v1906 = vpop.f32.mrf.mxu0
    %v1907 = vadd.f32 %v1810, %v1906
    %v1908 = vpop.f32.mrf.mxu0
    %1909 = vmatprep.mubr.bf16.mxu0 %v1711
    %1910 = vmatmul.mubr.bf16.gmra.mxu0 %v1710
    %v1911 = vpop.f32.mrf.mxu0
    %v1912 = vadd.f32 %v1815, %v1911
    %v1913 = vpop.f32.mrf.mxu0
    %v1914 = vpop.f32.mrf.mxu0
    %v1915 = vadd.f32 %v1818, %v1914
    %v1916 = vpop.f32.mrf.mxu0
    %1917 = vmatprep.mubr.bf16.mxu0 %v1715
    %1918 = vmatmul.mubr.bf16.gmra.mxu0 %v1714
    %v1919 = vpop.f32.mrf.mxu0
    %v1920 = vadd.f32 %v1823, %v1919
    %v1921 = vpop.f32.mrf.mxu0
    %v1922 = vpop.f32.mrf.mxu0
    %v1923 = vadd.f32 %v1826, %v1922
    %v1924 = vpop.f32.mrf.mxu0
    %1925 = vmatprep.mubr.bf16.mxu0 %v1719
    %1926 = vmatmul.mubr.bf16.gmra.mxu0 %v1718
    %v1927 = vpop.f32.mrf.mxu0
    %v1928 = vadd.f32 %v1831, %v1927
    %v1929 = vpop.f32.mrf.mxu0
    %v1930 = vpop.f32.mrf.mxu0
    %v1931 = vadd.f32 %v1834, %v1930
    %v1932 = vpop.f32.mrf.mxu0
    %1933 = vmatprep.mubr.bf16.mxu0 %v1723
    %1934 = vmatmul.mubr.bf16.gmra.mxu0 %v1722
    %v1935 = vpop.f32.mrf.mxu0
    %v1936 = vadd.f32 %v1839, %v1935
    %v1937 = vpop.f32.mrf.mxu0
    %v1938 = vpop.f32.mrf.mxu0
    %v1939 = vadd.f32 %v1842, %v1938
    %v1940 = vpop.f32.mrf.mxu0
    %1941 = vmatprep.mubr.bf16.mxu0 %v1727
    %1942 = vmatmul.mubr.bf16.gmra.mxu0 %v1726
    %v1943 = vpop.f32.mrf.mxu0
    %v1944 = vadd.f32 %v1847, %v1943
    %v1945 = vpop.f32.mrf.mxu0
    %v1946 = vpop.f32.mrf.mxu0
    %v1947 = vadd.f32 %v1850, %v1946
    %v1948 = vpop.f32.mrf.mxu0
    %1949 = vmatprep.mubr.bf16.mxu0 %v1731
    %1950 = vmatmul.mubr.bf16.gmra.mxu0 %v1730
    %v1951 = vpop.f32.mrf.mxu0
    %v1952 = vadd.f32 %v1855, %v1951
    %v1953 = vpop.f32.mrf.mxu0
    %v1954 = vpop.f32.mrf.mxu0
    %v1955 = vadd.f32 %v1858, %v1954
    %v1956 = vpop.f32.mrf.mxu0
    %1957 = vdwg.mxu0
    %s1958 = scalar_lea.vmem [#allocation2], 1024
    %v1959 = vld [vmem:[%s1958] sm:$0xff]
    %v1960 = vld [vmem:[%s1958 + $0x8] sm:$0xff]
    %v1961 = vld [vmem:[%s1958 + $0x10] sm:$0xff]
    %v1962 = vld [vmem:[%s1958 + $0x18] sm:$0xff]
    %v1963 = vld [vmem:[%s1958 + $0x20] sm:$0xff]
    %v1964 = vld [vmem:[%s1958 + $0x28] sm:$0xff]
    %v1965 = vld [vmem:[%s1958 + $0x30] sm:$0xff]
    %v1966 = vld [vmem:[%s1958 + $0x38] sm:$0xff]
    %v1967 = vld [vmem:[%s1958 + $0x40] sm:$0xff]
    %v1968 = vld [vmem:[%s1958 + $0x48] sm:$0xff]
    %v1969 = vld [vmem:[%s1958 + $0x50] sm:$0xff]
    %v1970 = vld [vmem:[%s1958 + $0x58] sm:$0xff]
    %v1971 = vld [vmem:[%s1958 + $0x60] sm:$0xff]
    %v1972 = vld [vmem:[%s1958 + $0x68] sm:$0xff]
    %v1973 = vld [vmem:[%s1958 + $0x70] sm:$0xff]
    %v1974 = vld [vmem:[%s1958 + $0x78] sm:$0xff]
    %v1975 = vld [vmem:[%s1958 + $0x80] sm:$0xff]
    %v1976 = vld [vmem:[%s1958 + $0x88] sm:$0xff]
    %v1977 = vld [vmem:[%s1958 + $0x90] sm:$0xff]
    %v1978 = vld [vmem:[%s1958 + $0x98] sm:$0xff]
    %v1979 = vld [vmem:[%s1958 + $0xa0] sm:$0xff]
    %v1980 = vld [vmem:[%s1958 + $0xa8] sm:$0xff]
    %v1981 = vld [vmem:[%s1958 + $0xb0] sm:$0xff]
    %v1982 = vld [vmem:[%s1958 + $0xb8] sm:$0xff]
    %v1983 = vld [vmem:[%s1958 + $0xc0] sm:$0xff]
    %v1984 = vld [vmem:[%s1958 + $0xc8] sm:$0xff]
    %v1985 = vld [vmem:[%s1958 + $0xd0] sm:$0xff]
    %v1986 = vld [vmem:[%s1958 + $0xd8] sm:$0xff]
    %v1987 = vld [vmem:[%s1958 + $0xe0] sm:$0xff]
    %v1988 = vld [vmem:[%s1958 + $0xe8] sm:$0xff]
    %v1989 = vld [vmem:[%s1958 + $0xf0] sm:$0xff]
    %v1990 = vld [vmem:[%s1958 + $0xf8] sm:$0xff]
    %v2023 = vunpack.c.l.b16 %v1959
    %v2024 = vunpack.c.h.b16 %v1959
    %v2025 = vunpack.c.l.b16 %v1960
    %v2026 = vunpack.c.h.b16 %v1960
    %v2027 = vunpack.c.l.b16 %v1961
    %v2028 = vunpack.c.h.b16 %v1961
    %v2029 = vunpack.c.l.b16 %v1962
    %v2030 = vunpack.c.h.b16 %v1962
    %v2031 = vunpack.c.l.b16 %v1963
    %v2032 = vunpack.c.h.b16 %v1963
    %v2033 = vunpack.c.l.b16 %v1964
    %v2034 = vunpack.c.h.b16 %v1964
    %v2035 = vunpack.c.l.b16 %v1965
    %v2036 = vunpack.c.h.b16 %v1965
    %v2037 = vunpack.c.l.b16 %v1966
    %v2038 = vunpack.c.h.b16 %v1966
    %v2039 = vunpack.c.l.b16 %v1967
    %v2040 = vunpack.c.h.b16 %v1967
    %v2041 = vunpack.c.l.b16 %v1968
    %v2042 = vunpack.c.h.b16 %v1968
    %v2043 = vunpack.c.l.b16 %v1969
    %v2044 = vunpack.c.h.b16 %v1969
    %v2045 = vunpack.c.l.b16 %v1970
    %v2046 = vunpack.c.h.b16 %v1970
    %v2047 = vunpack.c.l.b16 %v1971
    %v2048 = vunpack.c.h.b16 %v1971
    %v2049 = vunpack.c.l.b16 %v1972
    %v2050 = vunpack.c.h.b16 %v1972
    %v2051 = vunpack.c.l.b16 %v1973
    %v2052 = vunpack.c.h.b16 %v1973
    %v2053 = vunpack.c.l.b16 %v1974
    %v2054 = vunpack.c.h.b16 %v1974
    %v2055 = vunpack.c.l.b16 %v1975
    %v2056 = vunpack.c.h.b16 %v1975
    %v2057 = vunpack.c.l.b16 %v1976
    %v2058 = vunpack.c.h.b16 %v1976
    %v2059 = vunpack.c.l.b16 %v1977
    %v2060 = vunpack.c.h.b16 %v1977
    %v2061 = vunpack.c.l.b16 %v1978
    %v2062 = vunpack.c.h.b16 %v1978
    %v2063 = vunpack.c.l.b16 %v1979
    %v2064 = vunpack.c.h.b16 %v1979
    %v2065 = vunpack.c.l.b16 %v1980
    %v2066 = vunpack.c.h.b16 %v1980
    %v2067 = vunpack.c.l.b16 %v1981
    %v2068 = vunpack.c.h.b16 %v1981
    %v2069 = vunpack.c.l.b16 %v1982
    %v2070 = vunpack.c.h.b16 %v1982
    %v2071 = vunpack.c.l.b16 %v1983
    %v2072 = vunpack.c.h.b16 %v1983
    %v2073 = vunpack.c.l.b16 %v1984
    %v2074 = vunpack.c.h.b16 %v1984
    %v2075 = vunpack.c.l.b16 %v1985
    %v2076 = vunpack.c.h.b16 %v1985
    %v2077 = vunpack.c.l.b16 %v1986
    %v2078 = vunpack.c.h.b16 %v1986
    %v2079 = vunpack.c.l.b16 %v1987
    %v2080 = vunpack.c.h.b16 %v1987
    %v2081 = vunpack.c.l.b16 %v1988
    %v2082 = vunpack.c.h.b16 %v1988
    %v2083 = vunpack.c.l.b16 %v1989
    %v2084 = vunpack.c.h.b16 %v1989
    %v2085 = vunpack.c.l.b16 %v1990
    %v2086 = vunpack.c.h.b16 %v1990
    %v2087 = vpack.c.b16 %v2027, %v2023
    %v2088 = vpack.c.b16 %v2028, %v2024
    %v2089 = vpack.c.b16 %v2029, %v2025
    %v2090 = vpack.c.b16 %v2030, %v2026
    %v2091 = vpack.c.b16 %v2035, %v2031
    %v2092 = vpack.c.b16 %v2036, %v2032
    %v2093 = vpack.c.b16 %v2037, %v2033
    %v2094 = vpack.c.b16 %v2038, %v2034
    %v2095 = vpack.c.b16 %v2043, %v2039
    %v2096 = vpack.c.b16 %v2044, %v2040
    %v2097 = vpack.c.b16 %v2045, %v2041
    %v2098 = vpack.c.b16 %v2046, %v2042
    %v2099 = vpack.c.b16 %v2051, %v2047
    %v2100 = vpack.c.b16 %v2052, %v2048
    %v2101 = vpack.c.b16 %v2053, %v2049
    %v2102 = vpack.c.b16 %v2054, %v2050
    %v2103 = vpack.c.b16 %v2059, %v2055
    %v2104 = vpack.c.b16 %v2060, %v2056
    %v2105 = vpack.c.b16 %v2061, %v2057
    %v2106 = vpack.c.b16 %v2062, %v2058
    %v2107 = vpack.c.b16 %v2067, %v2063
    %v2108 = vpack.c.b16 %v2068, %v2064
    %v2109 = vpack.c.b16 %v2069, %v2065
    %v2110 = vpack.c.b16 %v2070, %v2066
    %v2111 = vpack.c.b16 %v2075, %v2071
    %v2112 = vpack.c.b16 %v2076, %v2072
    %v2113 = vpack.c.b16 %v2077, %v2073
    %v2114 = vpack.c.b16 %v2078, %v2074
    %v2115 = vpack.c.b16 %v2083, %v2079
    %v2116 = vpack.c.b16 %v2084, %v2080
    %v2117 = vpack.c.b16 %v2085, %v2081
    %v2118 = vpack.c.b16 %v2086, %v2082
    %2151 = vmatprep.subr.bf16.mxu0 0
    %2152 = vmatpush1.bf16.msra.mxu0 %v546
    %2153 = vmatprep.subr.bf16.mxu0 0
    %2154 = vmatpush1.bf16.msra.mxu0 %v545
    %2155 = vmatprep.subr.bf16.mxu0 0
    %2156 = vmatpush1.bf16.msra.mxu0 %v544
    %2157 = vmatprep.subr.bf16.mxu0 0
    %2158 = vmatpush1.bf16.msra.mxu0 %v543
    %2159 = vmatprep.subr.bf16.mxu0 0
    %2160 = vmatpush1.bf16.msra.mxu0 %v542
    %2161 = vmatprep.subr.bf16.mxu0 0
    %2162 = vmatpush1.bf16.msra.mxu0 %v541
    %2163 = vmatprep.subr.bf16.mxu0 0
    %2164 = vmatpush1.bf16.msra.mxu0 %v540
    %2165 = vmatprep.subr.bf16.mxu0 0
    %2166 = vmatpush1.bf16.msra.mxu0 %v539
    %2167 = vmatprep.subr.bf16.mxu0 0
    %2168 = vmatpush2.bf16.msra.mxu0 %v554
    %2169 = vmatprep.subr.bf16.mxu0 0
    %2170 = vmatpush2.bf16.msra.mxu0 %v553
    %2171 = vmatprep.subr.bf16.mxu0 0
    %2172 = vmatpush2.bf16.msra.mxu0 %v552
    %2173 = vmatprep.subr.bf16.mxu0 0
    %2174 = vmatpush2.bf16.msra.mxu0 %v551
    %2175 = vmatprep.subr.bf16.mxu0 0
    %2176 = vmatpush2.bf16.msra.mxu0 %v550
    %2177 = vmatprep.subr.bf16.mxu0 0
    %2178 = vmatpush2.bf16.msra.mxu0 %v549
    %2179 = vmatprep.subr.bf16.mxu0 0
    %2180 = vmatpush2.bf16.msra.mxu0 %v548
    %2181 = vmatprep.subr.bf16.mxu0 0
    %2182 = vmatpush2.bf16.msra.mxu0 %v547
    %2183 = vmatprep.mubr.bf16.mxu0 %v2088
    %2184 = vmatmul.mubr.bf16.gmra.mxu0 %v2087
    %v2185 = vpop.f32.mrf.mxu0
    %v2186 = vadd.f32 0.0, %v2185
    %v2187 = vpop.f32.mrf.mxu0
    %v2188 = vpop.f32.mrf.mxu0
    %v2189 = vadd.f32 0.0, %v2188
    %v2190 = vpop.f32.mrf.mxu0
    %2191 = vmatprep.mubr.bf16.mxu0 %v2092
    %2192 = vmatmul.mubr.bf16.gmra.mxu0 %v2091
    %v2193 = vpop.f32.mrf.mxu0
    %v2194 = vadd.f32 0.0, %v2193
    %v2195 = vpop.f32.mrf.mxu0
    %v2196 = vpop.f32.mrf.mxu0
    %v2197 = vadd.f32 0.0, %v2196
    %v2198 = vpop.f32.mrf.mxu0
    %2199 = vmatprep.mubr.bf16.mxu0 %v2096
    %2200 = vmatmul.mubr.bf16.gmra.mxu0 %v2095
    %v2201 = vpop.f32.mrf.mxu0
    %v2202 = vadd.f32 0.0, %v2201
    %v2203 = vpop.f32.mrf.mxu0
    %v2204 = vpop.f32.mrf.mxu0
    %v2205 = vadd.f32 0.0, %v2204
    %v2206 = vpop.f32.mrf.mxu0
    %2207 = vmatprep.mubr.bf16.mxu0 %v2100
    %2208 = vmatmul.mubr.bf16.gmra.mxu0 %v2099
    %v2209 = vpop.f32.mrf.mxu0
    %v2210 = vadd.f32 0.0, %v2209
    %v2211 = vpop.f32.mrf.mxu0
    %v2212 = vpop.f32.mrf.mxu0
    %v2213 = vadd.f32 0.0, %v2212
    %v2214 = vpop.f32.mrf.mxu0
    %2215 = vmatprep.mubr.bf16.mxu0 %v2104
    %2216 = vmatmul.mubr.bf16.gmra.mxu0 %v2103
    %v2217 = vpop.f32.mrf.mxu0
    %v2218 = vadd.f32 0.0, %v2217
    %v2219 = vpop.f32.mrf.mxu0
    %v2220 = vpop.f32.mrf.mxu0
    %v2221 = vadd.f32 0.0, %v2220
    %v2222 = vpop.f32.mrf.mxu0
    %2223 = vmatprep.mubr.bf16.mxu0 %v2108
    %2224 = vmatmul.mubr.bf16.gmra.mxu0 %v2107
    %v2225 = vpop.f32.mrf.mxu0
    %v2226 = vadd.f32 0.0, %v2225
    %v2227 = vpop.f32.mrf.mxu0
    %v2228 = vpop.f32.mrf.mxu0
    %v2229 = vadd.f32 0.0, %v2228
    %v2230 = vpop.f32.mrf.mxu0
    %2231 = vmatprep.mubr.bf16.mxu0 %v2112
    %2232 = vmatmul.mubr.bf16.gmra.mxu0 %v2111
    %v2233 = vpop.f32.mrf.mxu0
    %v2234 = vadd.f32 0.0, %v2233
    %v2235 = vpop.f32.mrf.mxu0
    %v2236 = vpop.f32.mrf.mxu0
    %v2237 = vadd.f32 0.0, %v2236
    %v2238 = vpop.f32.mrf.mxu0
    %2239 = vmatprep.mubr.bf16.mxu0 %v2116
    %2240 = vmatmul.mubr.bf16.gmra.mxu0 %v2115
    %v2241 = vpop.f32.mrf.mxu0
    %v2242 = vadd.f32 0.0, %v2241
    %v2243 = vpop.f32.mrf.mxu0
    %v2244 = vpop.f32.mrf.mxu0
    %v2245 = vadd.f32 0.0, %v2244
    %v2246 = vpop.f32.mrf.mxu0
    %2247 = vdwg.mxu0
    %2248 = vmatprep.subr.bf16.mxu0 0
    %2249 = vmatpush1.bf16.msra.mxu0 %v562
    %2250 = vmatprep.subr.bf16.mxu0 0
    %2251 = vmatpush1.bf16.msra.mxu0 %v561
    %2252 = vmatprep.subr.bf16.mxu0 0
    %2253 = vmatpush1.bf16.msra.mxu0 %v560
    %2254 = vmatprep.subr.bf16.mxu0 0
    %2255 = vmatpush1.bf16.msra.mxu0 %v559
    %2256 = vmatprep.subr.bf16.mxu0 0
    %2257 = vmatpush1.bf16.msra.mxu0 %v558
    %2258 = vmatprep.subr.bf16.mxu0 0
    %2259 = vmatpush1.bf16.msra.mxu0 %v557
    %2260 = vmatprep.subr.bf16.mxu0 0
    %2261 = vmatpush1.bf16.msra.mxu0 %v556
    %2262 = vmatprep.subr.bf16.mxu0 0
    %2263 = vmatpush1.bf16.msra.mxu0 %v555
    %2264 = vmatprep.subr.bf16.mxu0 0
    %2265 = vmatpush2.bf16.msra.mxu0 %v570
    %2266 = vmatprep.subr.bf16.mxu0 0
    %2267 = vmatpush2.bf16.msra.mxu0 %v569
    %2268 = vmatprep.subr.bf16.mxu0 0
    %2269 = vmatpush2.bf16.msra.mxu0 %v568
    %2270 = vmatprep.subr.bf16.mxu0 0
    %2271 = vmatpush2.bf16.msra.mxu0 %v567
    %2272 = vmatprep.subr.bf16.mxu0 0
    %2273 = vmatpush2.bf16.msra.mxu0 %v566
    %2274 = vmatprep.subr.bf16.mxu0 0
    %2275 = vmatpush2.bf16.msra.mxu0 %v565
    %2276 = vmatprep.subr.bf16.mxu0 0
    %2277 = vmatpush2.bf16.msra.mxu0 %v564
    %2278 = vmatprep.subr.bf16.mxu0 0
    %2279 = vmatpush2.bf16.msra.mxu0 %v563
    %2280 = vmatprep.mubr.bf16.mxu0 %v2090
    %2281 = vmatmul.mubr.bf16.gmra.mxu0 %v2089
    %v2282 = vpop.f32.mrf.mxu0
    %v2283 = vadd.f32 %v2186, %v2282
    %v2284 = vpop.f32.mrf.mxu0
    %v2285 = vpop.f32.mrf.mxu0
    %v2286 = vadd.f32 %v2189, %v2285
    %v2287 = vpop.f32.mrf.mxu0
    %2288 = vmatprep.mubr.bf16.mxu0 %v2094
    %2289 = vmatmul.mubr.bf16.gmra.mxu0 %v2093
    %v2290 = vpop.f32.mrf.mxu0
    %v2291 = vadd.f32 %v2194, %v2290
    %v2292 = vpop.f32.mrf.mxu0
    %v2293 = vpop.f32.mrf.mxu0
    %v2294 = vadd.f32 %v2197, %v2293
    %v2295 = vpop.f32.mrf.mxu0
    %2296 = vmatprep.mubr.bf16.mxu0 %v2098
    %2297 = vmatmul.mubr.bf16.gmra.mxu0 %v2097
    %v2298 = vpop.f32.mrf.mxu0
    %v2299 = vadd.f32 %v2202, %v2298
    %v2300 = vpop.f32.mrf.mxu0
    %v2301 = vpop.f32.mrf.mxu0
    %v2302 = vadd.f32 %v2205, %v2301
    %v2303 = vpop.f32.mrf.mxu0
    %2304 = vmatprep.mubr.bf16.mxu0 %v2102
    %2305 = vmatmul.mubr.bf16.gmra.mxu0 %v2101
    %v2306 = vpop.f32.mrf.mxu0
    %v2307 = vadd.f32 %v2210, %v2306
    %v2308 = vpop.f32.mrf.mxu0
    %v2309 = vpop.f32.mrf.mxu0
    %v2310 = vadd.f32 %v2213, %v2309
    %v2311 = vpop.f32.mrf.mxu0
    %2312 = vmatprep.mubr.bf16.mxu0 %v2106
    %2313 = vmatmul.mubr.bf16.gmra.mxu0 %v2105
    %v2314 = vpop.f32.mrf.mxu0
    %v2315 = vadd.f32 %v2218, %v2314
    %v2316 = vpop.f32.mrf.mxu0
    %v2317 = vpop.f32.mrf.mxu0
    %v2318 = vadd.f32 %v2221, %v2317
    %v2319 = vpop.f32.mrf.mxu0
    %2320 = vmatprep.mubr.bf16.mxu0 %v2110
    %2321 = vmatmul.mubr.bf16.gmra.mxu0 %v2109
    %v2322 = vpop.f32.mrf.mxu0
    %v2323 = vadd.f32 %v2226, %v2322
    %v2324 = vpop.f32.mrf.mxu0
    %v2325 = vpop.f32.mrf.mxu0
    %v2326 = vadd.f32 %v2229, %v2325
    %v2327 = vpop.f32.mrf.mxu0
    %2328 = vmatprep.mubr.bf16.mxu0 %v2114
    %2329 = vmatmul.mubr.bf16.gmra.mxu0 %v2113
    %v2330 = vpop.f32.mrf.mxu0
    %v2331 = vadd.f32 %v2234, %v2330
    %v2332 = vpop.f32.mrf.mxu0
    %v2333 = vpop.f32.mrf.mxu0
    %v2334 = vadd.f32 %v2237, %v2333
    %v2335 = vpop.f32.mrf.mxu0
    %2336 = vmatprep.mubr.bf16.mxu0 %v2118
    %2337 = vmatmul.mubr.bf16.gmra.mxu0 %v2117
    %v2338 = vpop.f32.mrf.mxu0
    %v2339 = vadd.f32 %v2242, %v2338
    %v2340 = vpop.f32.mrf.mxu0
    %v2341 = vpop.f32.mrf.mxu0
    %v2342 = vadd.f32 %v2245, %v2341
    %v2343 = vpop.f32.mrf.mxu0
    %2344 = vdwg.mxu0
    %s2345 = scalar_lea.vmem [#allocation2], 1280
    %v2346 = vld [vmem:[%s2345] sm:$0xff]
    %v2347 = vld [vmem:[%s2345 + $0x8] sm:$0xff]
    %v2348 = vld [vmem:[%s2345 + $0x10] sm:$0xff]
    %v2349 = vld [vmem:[%s2345 + $0x18] sm:$0xff]
    %v2350 = vld [vmem:[%s2345 + $0x20] sm:$0xff]
    %v2351 = vld [vmem:[%s2345 + $0x28] sm:$0xff]
    %v2352 = vld [vmem:[%s2345 + $0x30] sm:$0xff]
    %v2353 = vld [vmem:[%s2345 + $0x38] sm:$0xff]
    %v2354 = vld [vmem:[%s2345 + $0x40] sm:$0xff]
    %v2355 = vld [vmem:[%s2345 + $0x48] sm:$0xff]
    %v2356 = vld [vmem:[%s2345 + $0x50] sm:$0xff]
    %v2357 = vld [vmem:[%s2345 + $0x58] sm:$0xff]
    %v2358 = vld [vmem:[%s2345 + $0x60] sm:$0xff]
    %v2359 = vld [vmem:[%s2345 + $0x68] sm:$0xff]
    %v2360 = vld [vmem:[%s2345 + $0x70] sm:$0xff]
    %v2361 = vld [vmem:[%s2345 + $0x78] sm:$0xff]
    %v2362 = vld [vmem:[%s2345 + $0x80] sm:$0xff]
    %v2363 = vld [vmem:[%s2345 + $0x88] sm:$0xff]
    %v2364 = vld [vmem:[%s2345 + $0x90] sm:$0xff]
    %v2365 = vld [vmem:[%s2345 + $0x98] sm:$0xff]
    %v2366 = vld [vmem:[%s2345 + $0xa0] sm:$0xff]
    %v2367 = vld [vmem:[%s2345 + $0xa8] sm:$0xff]
    %v2368 = vld [vmem:[%s2345 + $0xb0] sm:$0xff]
    %v2369 = vld [vmem:[%s2345 + $0xb8] sm:$0xff]
    %v2370 = vld [vmem:[%s2345 + $0xc0] sm:$0xff]
    %v2371 = vld [vmem:[%s2345 + $0xc8] sm:$0xff]
    %v2372 = vld [vmem:[%s2345 + $0xd0] sm:$0xff]
    %v2373 = vld [vmem:[%s2345 + $0xd8] sm:$0xff]
    %v2374 = vld [vmem:[%s2345 + $0xe0] sm:$0xff]
    %v2375 = vld [vmem:[%s2345 + $0xe8] sm:$0xff]
    %v2376 = vld [vmem:[%s2345 + $0xf0] sm:$0xff]
    %v2377 = vld [vmem:[%s2345 + $0xf8] sm:$0xff]
    %v2410 = vunpack.c.l.b16 %v2346
    %v2411 = vunpack.c.h.b16 %v2346
    %v2412 = vunpack.c.l.b16 %v2347
    %v2413 = vunpack.c.h.b16 %v2347
    %v2414 = vunpack.c.l.b16 %v2348
    %v2415 = vunpack.c.h.b16 %v2348
    %v2416 = vunpack.c.l.b16 %v2349
    %v2417 = vunpack.c.h.b16 %v2349
    %v2418 = vunpack.c.l.b16 %v2350
    %v2419 = vunpack.c.h.b16 %v2350
    %v2420 = vunpack.c.l.b16 %v2351
    %v2421 = vunpack.c.h.b16 %v2351
    %v2422 = vunpack.c.l.b16 %v2352
    %v2423 = vunpack.c.h.b16 %v2352
    %v2424 = vunpack.c.l.b16 %v2353
    %v2425 = vunpack.c.h.b16 %v2353
    %v2426 = vunpack.c.l.b16 %v2354
    %v2427 = vunpack.c.h.b16 %v2354
    %v2428 = vunpack.c.l.b16 %v2355
    %v2429 = vunpack.c.h.b16 %v2355
    %v2430 = vunpack.c.l.b16 %v2356
    %v2431 = vunpack.c.h.b16 %v2356
    %v2432 = vunpack.c.l.b16 %v2357
    %v2433 = vunpack.c.h.b16 %v2357
    %v2434 = vunpack.c.l.b16 %v2358
    %v2435 = vunpack.c.h.b16 %v2358
    %v2436 = vunpack.c.l.b16 %v2359
    %v2437 = vunpack.c.h.b16 %v2359
    %v2438 = vunpack.c.l.b16 %v2360
    %v2439 = vunpack.c.h.b16 %v2360
    %v2440 = vunpack.c.l.b16 %v2361
    %v2441 = vunpack.c.h.b16 %v2361
    %v2442 = vunpack.c.l.b16 %v2362
    %v2443 = vunpack.c.h.b16 %v2362
    %v2444 = vunpack.c.l.b16 %v2363
    %v2445 = vunpack.c.h.b16 %v2363
    %v2446 = vunpack.c.l.b16 %v2364
    %v2447 = vunpack.c.h.b16 %v2364
    %v2448 = vunpack.c.l.b16 %v2365
    %v2449 = vunpack.c.h.b16 %v2365
    %v2450 = vunpack.c.l.b16 %v2366
    %v2451 = vunpack.c.h.b16 %v2366
    %v2452 = vunpack.c.l.b16 %v2367
    %v2453 = vunpack.c.h.b16 %v2367
    %v2454 = vunpack.c.l.b16 %v2368
    %v2455 = vunpack.c.h.b16 %v2368
    %v2456 = vunpack.c.l.b16 %v2369
    %v2457 = vunpack.c.h.b16 %v2369
    %v2458 = vunpack.c.l.b16 %v2370
    %v2459 = vunpack.c.h.b16 %v2370
    %v2460 = vunpack.c.l.b16 %v2371
    %v2461 = vunpack.c.h.b16 %v2371
    %v2462 = vunpack.c.l.b16 %v2372
    %v2463 = vunpack.c.h.b16 %v2372
    %v2464 = vunpack.c.l.b16 %v2373
    %v2465 = vunpack.c.h.b16 %v2373
    %v2466 = vunpack.c.l.b16 %v2374
    %v2467 = vunpack.c.h.b16 %v2374
    %v2468 = vunpack.c.l.b16 %v2375
    %v2469 = vunpack.c.h.b16 %v2375
    %v2470 = vunpack.c.l.b16 %v2376
    %v2471 = vunpack.c.h.b16 %v2376
    %v2472 = vunpack.c.l.b16 %v2377
    %v2473 = vunpack.c.h.b16 %v2377
    %v2474 = vpack.c.b16 %v2414, %v2410
    %v2475 = vpack.c.b16 %v2415, %v2411
    %v2476 = vpack.c.b16 %v2416, %v2412
    %v2477 = vpack.c.b16 %v2417, %v2413
    %v2478 = vpack.c.b16 %v2422, %v2418
    %v2479 = vpack.c.b16 %v2423, %v2419
    %v2480 = vpack.c.b16 %v2424, %v2420
    %v2481 = vpack.c.b16 %v2425, %v2421
    %v2482 = vpack.c.b16 %v2430, %v2426
    %v2483 = vpack.c.b16 %v2431, %v2427
    %v2484 = vpack.c.b16 %v2432, %v2428
    %v2485 = vpack.c.b16 %v2433, %v2429
    %v2486 = vpack.c.b16 %v2438, %v2434
    %v2487 = vpack.c.b16 %v2439, %v2435
    %v2488 = vpack.c.b16 %v2440, %v2436
    %v2489 = vpack.c.b16 %v2441, %v2437
    %v2490 = vpack.c.b16 %v2446, %v2442
    %v2491 = vpack.c.b16 %v2447, %v2443
    %v2492 = vpack.c.b16 %v2448, %v2444
    %v2493 = vpack.c.b16 %v2449, %v2445
    %v2494 = vpack.c.b16 %v2454, %v2450
    %v2495 = vpack.c.b16 %v2455, %v2451
    %v2496 = vpack.c.b16 %v2456, %v2452
    %v2497 = vpack.c.b16 %v2457, %v2453
    %v2498 = vpack.c.b16 %v2462, %v2458
    %v2499 = vpack.c.b16 %v2463, %v2459
    %v2500 = vpack.c.b16 %v2464, %v2460
    %v2501 = vpack.c.b16 %v2465, %v2461
    %v2502 = vpack.c.b16 %v2470, %v2466
    %v2503 = vpack.c.b16 %v2471, %v2467
    %v2504 = vpack.c.b16 %v2472, %v2468
    %v2505 = vpack.c.b16 %v2473, %v2469
    %2538 = vmatprep.subr.bf16.mxu0 0
    %2539 = vmatpush1.bf16.msra.mxu0 %v546
    %2540 = vmatprep.subr.bf16.mxu0 0
    %2541 = vmatpush1.bf16.msra.mxu0 %v545
    %2542 = vmatprep.subr.bf16.mxu0 0
    %2543 = vmatpush1.bf16.msra.mxu0 %v544
    %2544 = vmatprep.subr.bf16.mxu0 0
    %2545 = vmatpush1.bf16.msra.mxu0 %v543
    %2546 = vmatprep.subr.bf16.mxu0 0
    %2547 = vmatpush1.bf16.msra.mxu0 %v542
    %2548 = vmatprep.subr.bf16.mxu0 0
    %2549 = vmatpush1.bf16.msra.mxu0 %v541
    %2550 = vmatprep.subr.bf16.mxu0 0
    %2551 = vmatpush1.bf16.msra.mxu0 %v540
    %2552 = vmatprep.subr.bf16.mxu0 0
    %2553 = vmatpush1.bf16.msra.mxu0 %v539
    %2554 = vmatprep.subr.bf16.mxu0 0
    %2555 = vmatpush2.bf16.msra.mxu0 %v554
    %2556 = vmatprep.subr.bf16.mxu0 0
    %2557 = vmatpush2.bf16.msra.mxu0 %v553
    %2558 = vmatprep.subr.bf16.mxu0 0
    %2559 = vmatpush2.bf16.msra.mxu0 %v552
    %2560 = vmatprep.subr.bf16.mxu0 0
    %2561 = vmatpush2.bf16.msra.mxu0 %v551
    %2562 = vmatprep.subr.bf16.mxu0 0
    %2563 = vmatpush2.bf16.msra.mxu0 %v550
    %2564 = vmatprep.subr.bf16.mxu0 0
    %2565 = vmatpush2.bf16.msra.mxu0 %v549
    %2566 = vmatprep.subr.bf16.mxu0 0
    %2567 = vmatpush2.bf16.msra.mxu0 %v548
    %2568 = vmatprep.subr.bf16.mxu0 0
    %2569 = vmatpush2.bf16.msra.mxu0 %v547
    %2570 = vmatprep.mubr.bf16.mxu0 %v2475
    %2571 = vmatmul.mubr.bf16.gmra.mxu0 %v2474
    %v2572 = vpop.f32.mrf.mxu0
    %v2573 = vadd.f32 0.0, %v2572
    %v2574 = vpop.f32.mrf.mxu0
    %v2575 = vpop.f32.mrf.mxu0
    %v2576 = vadd.f32 0.0, %v2575
    %v2577 = vpop.f32.mrf.mxu0
    %2578 = vmatprep.mubr.bf16.mxu0 %v2479
    %2579 = vmatmul.mubr.bf16.gmra.mxu0 %v2478
    %v2580 = vpop.f32.mrf.mxu0
    %v2581 = vadd.f32 0.0, %v2580
    %v2582 = vpop.f32.mrf.mxu0
    %v2583 = vpop.f32.mrf.mxu0
    %v2584 = vadd.f32 0.0, %v2583
    %v2585 = vpop.f32.mrf.mxu0
    %2586 = vmatprep.mubr.bf16.mxu0 %v2483
    %2587 = vmatmul.mubr.bf16.gmra.mxu0 %v2482
    %v2588 = vpop.f32.mrf.mxu0
    %v2589 = vadd.f32 0.0, %v2588
    %v2590 = vpop.f32.mrf.mxu0
    %v2591 = vpop.f32.mrf.mxu0
    %v2592 = vadd.f32 0.0, %v2591
    %v2593 = vpop.f32.mrf.mxu0
    %2594 = vmatprep.mubr.bf16.mxu0 %v2487
    %2595 = vmatmul.mubr.bf16.gmra.mxu0 %v2486
    %v2596 = vpop.f32.mrf.mxu0
    %v2597 = vadd.f32 0.0, %v2596
    %v2598 = vpop.f32.mrf.mxu0
    %v2599 = vpop.f32.mrf.mxu0
    %v2600 = vadd.f32 0.0, %v2599
    %v2601 = vpop.f32.mrf.mxu0
    %2602 = vmatprep.mubr.bf16.mxu0 %v2491
    %2603 = vmatmul.mubr.bf16.gmra.mxu0 %v2490
    %v2604 = vpop.f32.mrf.mxu0
    %v2605 = vadd.f32 0.0, %v2604
    %v2606 = vpop.f32.mrf.mxu0
    %v2607 = vpop.f32.mrf.mxu0
    %v2608 = vadd.f32 0.0, %v2607
    %v2609 = vpop.f32.mrf.mxu0
    %2610 = vmatprep.mubr.bf16.mxu0 %v2495
    %2611 = vmatmul.mubr.bf16.gmra.mxu0 %v2494
    %v2612 = vpop.f32.mrf.mxu0
    %v2613 = vadd.f32 0.0, %v2612
    %v2614 = vpop.f32.mrf.mxu0
    %v2615 = vpop.f32.mrf.mxu0
    %v2616 = vadd.f32 0.0, %v2615
    %v2617 = vpop.f32.mrf.mxu0
    %2618 = vmatprep.mubr.bf16.mxu0 %v2499
    %2619 = vmatmul.mubr.bf16.gmra.mxu0 %v2498
    %v2620 = vpop.f32.mrf.mxu0
    %v2621 = vadd.f32 0.0, %v2620
    %v2622 = vpop.f32.mrf.mxu0
    %v2623 = vpop.f32.mrf.mxu0
    %v2624 = vadd.f32 0.0, %v2623
    %v2625 = vpop.f32.mrf.mxu0
    %2626 = vmatprep.mubr.bf16.mxu0 %v2503
    %2627 = vmatmul.mubr.bf16.gmra.mxu0 %v2502
    %v2628 = vpop.f32.mrf.mxu0
    %v2629 = vadd.f32 0.0, %v2628
    %v2630 = vpop.f32.mrf.mxu0
    %v2631 = vpop.f32.mrf.mxu0
    %v2632 = vadd.f32 0.0, %v2631
    %v2633 = vpop.f32.mrf.mxu0
    %2634 = vdwg.mxu0
    %2635 = vmatprep.subr.bf16.mxu0 0
    %2636 = vmatpush1.bf16.msra.mxu0 %v562
    %2637 = vmatprep.subr.bf16.mxu0 0
    %2638 = vmatpush1.bf16.msra.mxu0 %v561
    %2639 = vmatprep.subr.bf16.mxu0 0
    %2640 = vmatpush1.bf16.msra.mxu0 %v560
    %2641 = vmatprep.subr.bf16.mxu0 0
    %2642 = vmatpush1.bf16.msra.mxu0 %v559
    %2643 = vmatprep.subr.bf16.mxu0 0
    %2644 = vmatpush1.bf16.msra.mxu0 %v558
    %2645 = vmatprep.subr.bf16.mxu0 0
    %2646 = vmatpush1.bf16.msra.mxu0 %v557
    %2647 = vmatprep.subr.bf16.mxu0 0
    %2648 = vmatpush1.bf16.msra.mxu0 %v556
    %2649 = vmatprep.subr.bf16.mxu0 0
    %2650 = vmatpush1.bf16.msra.mxu0 %v555
    %2651 = vmatprep.subr.bf16.mxu0 0
    %2652 = vmatpush2.bf16.msra.mxu0 %v570
    %2653 = vmatprep.subr.bf16.mxu0 0
    %2654 = vmatpush2.bf16.msra.mxu0 %v569
    %2655 = vmatprep.subr.bf16.mxu0 0
    %2656 = vmatpush2.bf16.msra.mxu0 %v568
    %2657 = vmatprep.subr.bf16.mxu0 0
    %2658 = vmatpush2.bf16.msra.mxu0 %v567
    %2659 = vmatprep.subr.bf16.mxu0 0
    %2660 = vmatpush2.bf16.msra.mxu0 %v566
    %2661 = vmatprep.subr.bf16.mxu0 0
    %2662 = vmatpush2.bf16.msra.mxu0 %v565
    %2663 = vmatprep.subr.bf16.mxu0 0
    %2664 = vmatpush2.bf16.msra.mxu0 %v564
    %2665 = vmatprep.subr.bf16.mxu0 0
    %2666 = vmatpush2.bf16.msra.mxu0 %v563
    %2667 = vmatprep.mubr.bf16.mxu0 %v2477
    %2668 = vmatmul.mubr.bf16.gmra.mxu0 %v2476
    %v2669 = vpop.f32.mrf.mxu0
    %v2670 = vadd.f32 %v2573, %v2669
    %v2671 = vpop.f32.mrf.mxu0
    %v2672 = vpop.f32.mrf.mxu0
    %v2673 = vadd.f32 %v2576, %v2672
    %v2674 = vpop.f32.mrf.mxu0
    %2675 = vmatprep.mubr.bf16.mxu0 %v2481
    %2676 = vmatmul.mubr.bf16.gmra.mxu0 %v2480
    %v2677 = vpop.f32.mrf.mxu0
    %v2678 = vadd.f32 %v2581, %v2677
    %v2679 = vpop.f32.mrf.mxu0
    %v2680 = vpop.f32.mrf.mxu0
    %v2681 = vadd.f32 %v2584, %v2680
    %v2682 = vpop.f32.mrf.mxu0
    %2683 = vmatprep.mubr.bf16.mxu0 %v2485
    %2684 = vmatmul.mubr.bf16.gmra.mxu0 %v2484
    %v2685 = vpop.f32.mrf.mxu0
    %v2686 = vadd.f32 %v2589, %v2685
    %v2687 = vpop.f32.mrf.mxu0
    %v2688 = vpop.f32.mrf.mxu0
    %v2689 = vadd.f32 %v2592, %v2688
    %v2690 = vpop.f32.mrf.mxu0
    %2691 = vmatprep.mubr.bf16.mxu0 %v2489
    %2692 = vmatmul.mubr.bf16.gmra.mxu0 %v2488
    %v2693 = vpop.f32.mrf.mxu0
    %v2694 = vadd.f32 %v2597, %v2693
    %v2695 = vpop.f32.mrf.mxu0
    %v2696 = vpop.f32.mrf.mxu0
    %v2697 = vadd.f32 %v2600, %v2696
    %v2698 = vpop.f32.mrf.mxu0
    %2699 = vmatprep.mubr.bf16.mxu0 %v2493
    %2700 = vmatmul.mubr.bf16.gmra.mxu0 %v2492
    %v2701 = vpop.f32.mrf.mxu0
    %v2702 = vadd.f32 %v2605, %v2701
    %v2703 = vpop.f32.mrf.mxu0
    %v2704 = vpop.f32.mrf.mxu0
    %v2705 = vadd.f32 %v2608, %v2704
    %v2706 = vpop.f32.mrf.mxu0
    %2707 = vmatprep.mubr.bf16.mxu0 %v2497
    %2708 = vmatmul.mubr.bf16.gmra.mxu0 %v2496
    %v2709 = vpop.f32.mrf.mxu0
    %v2710 = vadd.f32 %v2613, %v2709
    %v2711 = vpop.f32.mrf.mxu0
    %v2712 = vpop.f32.mrf.mxu0
    %v2713 = vadd.f32 %v2616, %v2712
    %v2714 = vpop.f32.mrf.mxu0
    %2715 = vmatprep.mubr.bf16.mxu0 %v2501
    %2716 = vmatmul.mubr.bf16.gmra.mxu0 %v2500
    %v2717 = vpop.f32.mrf.mxu0
    %v2718 = vadd.f32 %v2621, %v2717
    %v2719 = vpop.f32.mrf.mxu0
    %v2720 = vpop.f32.mrf.mxu0
    %v2721 = vadd.f32 %v2624, %v2720
    %v2722 = vpop.f32.mrf.mxu0
    %2723 = vmatprep.mubr.bf16.mxu0 %v2505
    %2724 = vmatmul.mubr.bf16.gmra.mxu0 %v2504
    %v2725 = vpop.f32.mrf.mxu0
    %v2726 = vadd.f32 %v2629, %v2725
    %v2727 = vpop.f32.mrf.mxu0
    %v2728 = vpop.f32.mrf.mxu0
    %v2729 = vadd.f32 %v2632, %v2728
    %v2730 = vpop.f32.mrf.mxu0
    %2731 = vdwg.mxu0
    %s2732 = scalar_lea.vmem [#allocation2], 1536
    %v2733 = vld [vmem:[%s2732] sm:$0xff]
    %v2734 = vld [vmem:[%s2732 + $0x8] sm:$0xff]
    %v2735 = vld [vmem:[%s2732 + $0x10] sm:$0xff]
    %v2736 = vld [vmem:[%s2732 + $0x18] sm:$0xff]
    %v2737 = vld [vmem:[%s2732 + $0x20] sm:$0xff]
    %v2738 = vld [vmem:[%s2732 + $0x28] sm:$0xff]
    %v2739 = vld [vmem:[%s2732 + $0x30] sm:$0xff]
    %v2740 = vld [vmem:[%s2732 + $0x38] sm:$0xff]
    %v2741 = vld [vmem:[%s2732 + $0x40] sm:$0xff]
    %v2742 = vld [vmem:[%s2732 + $0x48] sm:$0xff]
    %v2743 = vld [vmem:[%s2732 + $0x50] sm:$0xff]
    %v2744 = vld [vmem:[%s2732 + $0x58] sm:$0xff]
    %v2745 = vld [vmem:[%s2732 + $0x60] sm:$0xff]
    %v2746 = vld [vmem:[%s2732 + $0x68] sm:$0xff]
    %v2747 = vld [vmem:[%s2732 + $0x70] sm:$0xff]
    %v2748 = vld [vmem:[%s2732 + $0x78] sm:$0xff]
    %v2749 = vld [vmem:[%s2732 + $0x80] sm:$0xff]
    %v2750 = vld [vmem:[%s2732 + $0x88] sm:$0xff]
    %v2751 = vld [vmem:[%s2732 + $0x90] sm:$0xff]
    %v2752 = vld [vmem:[%s2732 + $0x98] sm:$0xff]
    %v2753 = vld [vmem:[%s2732 + $0xa0] sm:$0xff]
    %v2754 = vld [vmem:[%s2732 + $0xa8] sm:$0xff]
    %v2755 = vld [vmem:[%s2732 + $0xb0] sm:$0xff]
    %v2756 = vld [vmem:[%s2732 + $0xb8] sm:$0xff]
    %v2757 = vld [vmem:[%s2732 + $0xc0] sm:$0xff]
    %v2758 = vld [vmem:[%s2732 + $0xc8] sm:$0xff]
    %v2759 = vld [vmem:[%s2732 + $0xd0] sm:$0xff]
    %v2760 = vld [vmem:[%s2732 + $0xd8] sm:$0xff]
    %v2761 = vld [vmem:[%s2732 + $0xe0] sm:$0xff]
    %v2762 = vld [vmem:[%s2732 + $0xe8] sm:$0xff]
    %v2763 = vld [vmem:[%s2732 + $0xf0] sm:$0xff]
    %v2764 = vld [vmem:[%s2732 + $0xf8] sm:$0xff]
    %v2797 = vunpack.c.l.b16 %v2733
    %v2798 = vunpack.c.h.b16 %v2733
    %v2799 = vunpack.c.l.b16 %v2734
    %v2800 = vunpack.c.h.b16 %v2734
    %v2801 = vunpack.c.l.b16 %v2735
    %v2802 = vunpack.c.h.b16 %v2735
    %v2803 = vunpack.c.l.b16 %v2736
    %v2804 = vunpack.c.h.b16 %v2736
    %v2805 = vunpack.c.l.b16 %v2737
    %v2806 = vunpack.c.h.b16 %v2737
    %v2807 = vunpack.c.l.b16 %v2738
    %v2808 = vunpack.c.h.b16 %v2738
    %v2809 = vunpack.c.l.b16 %v2739
    %v2810 = vunpack.c.h.b16 %v2739
    %v2811 = vunpack.c.l.b16 %v2740
    %v2812 = vunpack.c.h.b16 %v2740
    %v2813 = vunpack.c.l.b16 %v2741
    %v2814 = vunpack.c.h.b16 %v2741
    %v2815 = vunpack.c.l.b16 %v2742
    %v2816 = vunpack.c.h.b16 %v2742
    %v2817 = vunpack.c.l.b16 %v2743
    %v2818 = vunpack.c.h.b16 %v2743
    %v2819 = vunpack.c.l.b16 %v2744
    %v2820 = vunpack.c.h.b16 %v2744
    %v2821 = vunpack.c.l.b16 %v2745
    %v2822 = vunpack.c.h.b16 %v2745
    %v2823 = vunpack.c.l.b16 %v2746
    %v2824 = vunpack.c.h.b16 %v2746
    %v2825 = vunpack.c.l.b16 %v2747
    %v2826 = vunpack.c.h.b16 %v2747
    %v2827 = vunpack.c.l.b16 %v2748
    %v2828 = vunpack.c.h.b16 %v2748
    %v2829 = vunpack.c.l.b16 %v2749
    %v2830 = vunpack.c.h.b16 %v2749
    %v2831 = vunpack.c.l.b16 %v2750
    %v2832 = vunpack.c.h.b16 %v2750
    %v2833 = vunpack.c.l.b16 %v2751
    %v2834 = vunpack.c.h.b16 %v2751
    %v2835 = vunpack.c.l.b16 %v2752
    %v2836 = vunpack.c.h.b16 %v2752
    %v2837 = vunpack.c.l.b16 %v2753
    %v2838 = vunpack.c.h.b16 %v2753
    %v2839 = vunpack.c.l.b16 %v2754
    %v2840 = vunpack.c.h.b16 %v2754
    %v2841 = vunpack.c.l.b16 %v2755
    %v2842 = vunpack.c.h.b16 %v2755
    %v2843 = vunpack.c.l.b16 %v2756
    %v2844 = vunpack.c.h.b16 %v2756
    %v2845 = vunpack.c.l.b16 %v2757
    %v2846 = vunpack.c.h.b16 %v2757
    %v2847 = vunpack.c.l.b16 %v2758
    %v2848 = vunpack.c.h.b16 %v2758
    %v2849 = vunpack.c.l.b16 %v2759
    %v2850 = vunpack.c.h.b16 %v2759
    %v2851 = vunpack.c.l.b16 %v2760
    %v2852 = vunpack.c.h.b16 %v2760
    %v2853 = vunpack.c.l.b16 %v2761
    %v2854 = vunpack.c.h.b16 %v2761
    %v2855 = vunpack.c.l.b16 %v2762
    %v2856 = vunpack.c.h.b16 %v2762
    %v2857 = vunpack.c.l.b16 %v2763
    %v2858 = vunpack.c.h.b16 %v2763
    %v2859 = vunpack.c.l.b16 %v2764
    %v2860 = vunpack.c.h.b16 %v2764
    %v2861 = vpack.c.b16 %v2801, %v2797
    %v2862 = vpack.c.b16 %v2802, %v2798
    %v2863 = vpack.c.b16 %v2803, %v2799
    %v2864 = vpack.c.b16 %v2804, %v2800
    %v2865 = vpack.c.b16 %v2809, %v2805
    %v2866 = vpack.c.b16 %v2810, %v2806
    %v2867 = vpack.c.b16 %v2811, %v2807
    %v2868 = vpack.c.b16 %v2812, %v2808
    %v2869 = vpack.c.b16 %v2817, %v2813
    %v2870 = vpack.c.b16 %v2818, %v2814
    %v2871 = vpack.c.b16 %v2819, %v2815
    %v2872 = vpack.c.b16 %v2820, %v2816
    %v2873 = vpack.c.b16 %v2825, %v2821
    %v2874 = vpack.c.b16 %v2826, %v2822
    %v2875 = vpack.c.b16 %v2827, %v2823
    %v2876 = vpack.c.b16 %v2828, %v2824
    %v2877 = vpack.c.b16 %v2833, %v2829
    %v2878 = vpack.c.b16 %v2834, %v2830
    %v2879 = vpack.c.b16 %v2835, %v2831
    %v2880 = vpack.c.b16 %v2836, %v2832
    %v2881 = vpack.c.b16 %v2841, %v2837
    %v2882 = vpack.c.b16 %v2842, %v2838
    %v2883 = vpack.c.b16 %v2843, %v2839
    %v2884 = vpack.c.b16 %v2844, %v2840
    %v2885 = vpack.c.b16 %v2849, %v2845
    %v2886 = vpack.c.b16 %v2850, %v2846
    %v2887 = vpack.c.b16 %v2851, %v2847
    %v2888 = vpack.c.b16 %v2852, %v2848
    %v2889 = vpack.c.b16 %v2857, %v2853
    %v2890 = vpack.c.b16 %v2858, %v2854
    %v2891 = vpack.c.b16 %v2859, %v2855
    %v2892 = vpack.c.b16 %v2860, %v2856
    %2925 = vmatprep.subr.bf16.mxu0 0
    %2926 = vmatpush1.bf16.msra.mxu0 %v546
    %2927 = vmatprep.subr.bf16.mxu0 0
    %2928 = vmatpush1.bf16.msra.mxu0 %v545
    %2929 = vmatprep.subr.bf16.mxu0 0
    %2930 = vmatpush1.bf16.msra.mxu0 %v544
    %2931 = vmatprep.subr.bf16.mxu0 0
    %2932 = vmatpush1.bf16.msra.mxu0 %v543
    %2933 = vmatprep.subr.bf16.mxu0 0
    %2934 = vmatpush1.bf16.msra.mxu0 %v542
    %2935 = vmatprep.subr.bf16.mxu0 0
    %2936 = vmatpush1.bf16.msra.mxu0 %v541
    %2937 = vmatprep.subr.bf16.mxu0 0
    %2938 = vmatpush1.bf16.msra.mxu0 %v540
    %2939 = vmatprep.subr.bf16.mxu0 0
    %2940 = vmatpush1.bf16.msra.mxu0 %v539
    %2941 = vmatprep.subr.bf16.mxu0 0
    %2942 = vmatpush2.bf16.msra.mxu0 %v554
    %2943 = vmatprep.subr.bf16.mxu0 0
    %2944 = vmatpush2.bf16.msra.mxu0 %v553
    %2945 = vmatprep.subr.bf16.mxu0 0
    %2946 = vmatpush2.bf16.msra.mxu0 %v552
    %2947 = vmatprep.subr.bf16.mxu0 0
    %2948 = vmatpush2.bf16.msra.mxu0 %v551
    %2949 = vmatprep.subr.bf16.mxu0 0
    %2950 = vmatpush2.bf16.msra.mxu0 %v550
    %2951 = vmatprep.subr.bf16.mxu0 0
    %2952 = vmatpush2.bf16.msra.mxu0 %v549
    %2953 = vmatprep.subr.bf16.mxu0 0
    %2954 = vmatpush2.bf16.msra.mxu0 %v548
    %2955 = vmatprep.subr.bf16.mxu0 0
    %2956 = vmatpush2.bf16.msra.mxu0 %v547
    %2957 = vmatprep.mubr.bf16.mxu0 %v2862
    %2958 = vmatmul.mubr.bf16.gmra.mxu0 %v2861
    %v2959 = vpop.f32.mrf.mxu0
    %v2960 = vadd.f32 0.0, %v2959
    %v2961 = vpop.f32.mrf.mxu0
    %v2962 = vpop.f32.mrf.mxu0
    %v2963 = vadd.f32 0.0, %v2962
    %v2964 = vpop.f32.mrf.mxu0
    %2965 = vmatprep.mubr.bf16.mxu0 %v2866
    %2966 = vmatmul.mubr.bf16.gmra.mxu0 %v2865
    %v2967 = vpop.f32.mrf.mxu0
    %v2968 = vadd.f32 0.0, %v2967
    %v2969 = vpop.f32.mrf.mxu0
    %v2970 = vpop.f32.mrf.mxu0
    %v2971 = vadd.f32 0.0, %v2970
    %v2972 = vpop.f32.mrf.mxu0
    %2973 = vmatprep.mubr.bf16.mxu0 %v2870
    %2974 = vmatmul.mubr.bf16.gmra.mxu0 %v2869
    %v2975 = vpop.f32.mrf.mxu0
    %v2976 = vadd.f32 0.0, %v2975
    %v2977 = vpop.f32.mrf.mxu0
    %v2978 = vpop.f32.mrf.mxu0
    %v2979 = vadd.f32 0.0, %v2978
    %v2980 = vpop.f32.mrf.mxu0
    %2981 = vmatprep.mubr.bf16.mxu0 %v2874
    %2982 = vmatmul.mubr.bf16.gmra.mxu0 %v2873
    %v2983 = vpop.f32.mrf.mxu0
    %v2984 = vadd.f32 0.0, %v2983
    %v2985 = vpop.f32.mrf.mxu0
    %v2986 = vpop.f32.mrf.mxu0
    %v2987 = vadd.f32 0.0, %v2986
    %v2988 = vpop.f32.mrf.mxu0
    %2989 = vmatprep.mubr.bf16.mxu0 %v2878
    %2990 = vmatmul.mubr.bf16.gmra.mxu0 %v2877
    %v2991 = vpop.f32.mrf.mxu0
    %v2992 = vadd.f32 0.0, %v2991
    %v2993 = vpop.f32.mrf.mxu0
    %v2994 = vpop.f32.mrf.mxu0
    %v2995 = vadd.f32 0.0, %v2994
    %v2996 = vpop.f32.mrf.mxu0
    %2997 = vmatprep.mubr.bf16.mxu0 %v2882
    %2998 = vmatmul.mubr.bf16.gmra.mxu0 %v2881
    %v2999 = vpop.f32.mrf.mxu0
    %v3000 = vadd.f32 0.0, %v2999
    %v3001 = vpop.f32.mrf.mxu0
    %v3002 = vpop.f32.mrf.mxu0
    %v3003 = vadd.f32 0.0, %v3002
    %v3004 = vpop.f32.mrf.mxu0
    %3005 = vmatprep.mubr.bf16.mxu0 %v2886
    %3006 = vmatmul.mubr.bf16.gmra.mxu0 %v2885
    %v3007 = vpop.f32.mrf.mxu0
    %v3008 = vadd.f32 0.0, %v3007
    %v3009 = vpop.f32.mrf.mxu0
    %v3010 = vpop.f32.mrf.mxu0
    %v3011 = vadd.f32 0.0, %v3010
    %v3012 = vpop.f32.mrf.mxu0
    %3013 = vmatprep.mubr.bf16.mxu0 %v2890
    %3014 = vmatmul.mubr.bf16.gmra.mxu0 %v2889
    %v3015 = vpop.f32.mrf.mxu0
    %v3016 = vadd.f32 0.0, %v3015
    %v3017 = vpop.f32.mrf.mxu0
    %v3018 = vpop.f32.mrf.mxu0
    %v3019 = vadd.f32 0.0, %v3018
    %v3020 = vpop.f32.mrf.mxu0
    %3021 = vdwg.mxu0
    %3022 = vmatprep.subr.bf16.mxu0 0
    %3023 = vmatpush1.bf16.msra.mxu0 %v562
    %3024 = vmatprep.subr.bf16.mxu0 0
    %3025 = vmatpush1.bf16.msra.mxu0 %v561
    %3026 = vmatprep.subr.bf16.mxu0 0
    %3027 = vmatpush1.bf16.msra.mxu0 %v560
    %3028 = vmatprep.subr.bf16.mxu0 0
    %3029 = vmatpush1.bf16.msra.mxu0 %v559
    %3030 = vmatprep.subr.bf16.mxu0 0
    %3031 = vmatpush1.bf16.msra.mxu0 %v558
    %3032 = vmatprep.subr.bf16.mxu0 0
    %3033 = vmatpush1.bf16.msra.mxu0 %v557
    %3034 = vmatprep.subr.bf16.mxu0 0
    %3035 = vmatpush1.bf16.msra.mxu0 %v556
    %3036 = vmatprep.subr.bf16.mxu0 0
    %3037 = vmatpush1.bf16.msra.mxu0 %v555
    %3038 = vmatprep.subr.bf16.mxu0 0
    %3039 = vmatpush2.bf16.msra.mxu0 %v570
    %3040 = vmatprep.subr.bf16.mxu0 0
    %3041 = vmatpush2.bf16.msra.mxu0 %v569
    %3042 = vmatprep.subr.bf16.mxu0 0
    %3043 = vmatpush2.bf16.msra.mxu0 %v568
    %3044 = vmatprep.subr.bf16.mxu0 0
    %3045 = vmatpush2.bf16.msra.mxu0 %v567
    %3046 = vmatprep.subr.bf16.mxu0 0
    %3047 = vmatpush2.bf16.msra.mxu0 %v566
    %3048 = vmatprep.subr.bf16.mxu0 0
    %3049 = vmatpush2.bf16.msra.mxu0 %v565
    %3050 = vmatprep.subr.bf16.mxu0 0
    %3051 = vmatpush2.bf16.msra.mxu0 %v564
    %3052 = vmatprep.subr.bf16.mxu0 0
    %3053 = vmatpush2.bf16.msra.mxu0 %v563
    %3054 = vmatprep.mubr.bf16.mxu0 %v2864
    %3055 = vmatmul.mubr.bf16.gmra.mxu0 %v2863
    %v3056 = vpop.f32.mrf.mxu0
    %v3057 = vadd.f32 %v2960, %v3056
    %v3058 = vpop.f32.mrf.mxu0
    %v3059 = vpop.f32.mrf.mxu0
    %v3060 = vadd.f32 %v2963, %v3059
    %v3061 = vpop.f32.mrf.mxu0
    %3062 = vmatprep.mubr.bf16.mxu0 %v2868
    %3063 = vmatmul.mubr.bf16.gmra.mxu0 %v2867
    %v3064 = vpop.f32.mrf.mxu0
    %v3065 = vadd.f32 %v2968, %v3064
    %v3066 = vpop.f32.mrf.mxu0
    %v3067 = vpop.f32.mrf.mxu0
    %v3068 = vadd.f32 %v2971, %v3067
    %v3069 = vpop.f32.mrf.mxu0
    %3070 = vmatprep.mubr.bf16.mxu0 %v2872
    %3071 = vmatmul.mubr.bf16.gmra.mxu0 %v2871
    %v3072 = vpop.f32.mrf.mxu0
    %v3073 = vadd.f32 %v2976, %v3072
    %v3074 = vpop.f32.mrf.mxu0
    %v3075 = vpop.f32.mrf.mxu0
    %v3076 = vadd.f32 %v2979, %v3075
    %v3077 = vpop.f32.mrf.mxu0
    %3078 = vmatprep.mubr.bf16.mxu0 %v2876
    %3079 = vmatmul.mubr.bf16.gmra.mxu0 %v2875
    %v3080 = vpop.f32.mrf.mxu0
    %v3081 = vadd.f32 %v2984, %v3080
    %v3082 = vpop.f32.mrf.mxu0
    %v3083 = vpop.f32.mrf.mxu0
    %v3084 = vadd.f32 %v2987, %v3083
    %v3085 = vpop.f32.mrf.mxu0
    %3086 = vmatprep.mubr.bf16.mxu0 %v2880
    %3087 = vmatmul.mubr.bf16.gmra.mxu0 %v2879
    %v3088 = vpop.f32.mrf.mxu0
    %v3089 = vadd.f32 %v2992, %v3088
    %v3090 = vpop.f32.mrf.mxu0
    %v3091 = vpop.f32.mrf.mxu0
    %v3092 = vadd.f32 %v2995, %v3091
    %v3093 = vpop.f32.mrf.mxu0
    %3094 = vmatprep.mubr.bf16.mxu0 %v2884
    %3095 = vmatmul.mubr.bf16.gmra.mxu0 %v2883
    %v3096 = vpop.f32.mrf.mxu0
    %v3097 = vadd.f32 %v3000, %v3096
    %v3098 = vpop.f32.mrf.mxu0
    %v3099 = vpop.f32.mrf.mxu0
    %v3100 = vadd.f32 %v3003, %v3099
    %v3101 = vpop.f32.mrf.mxu0
    %3102 = vmatprep.mubr.bf16.mxu0 %v2888
    %3103 = vmatmul.mubr.bf16.gmra.mxu0 %v2887
    %v3104 = vpop.f32.mrf.mxu0
    %v3105 = vadd.f32 %v3008, %v3104
    %v3106 = vpop.f32.mrf.mxu0
    %v3107 = vpop.f32.mrf.mxu0
    %v3108 = vadd.f32 %v3011, %v3107
    %v3109 = vpop.f32.mrf.mxu0
    %3110 = vmatprep.mubr.bf16.mxu0 %v2892
    %3111 = vmatmul.mubr.bf16.gmra.mxu0 %v2891
    %v3112 = vpop.f32.mrf.mxu0
    %v3113 = vadd.f32 %v3016, %v3112
    %v3114 = vpop.f32.mrf.mxu0
    %v3115 = vpop.f32.mrf.mxu0
    %v3116 = vadd.f32 %v3019, %v3115
    %v3117 = vpop.f32.mrf.mxu0
    %3118 = vdwg.mxu0
    %s3119 = scalar_lea.vmem [#allocation2], 1792
    %v3120 = vld [vmem:[%s3119] sm:$0xff]
    %v3121 = vld [vmem:[%s3119 + $0x8] sm:$0xff]
    %v3122 = vld [vmem:[%s3119 + $0x10] sm:$0xff]
    %v3123 = vld [vmem:[%s3119 + $0x18] sm:$0xff]
    %v3124 = vld [vmem:[%s3119 + $0x20] sm:$0xff]
    %v3125 = vld [vmem:[%s3119 + $0x28] sm:$0xff]
    %v3126 = vld [vmem:[%s3119 + $0x30] sm:$0xff]
    %v3127 = vld [vmem:[%s3119 + $0x38] sm:$0xff]
    %v3128 = vld [vmem:[%s3119 + $0x40] sm:$0xff]
    %v3129 = vld [vmem:[%s3119 + $0x48] sm:$0xff]
    %v3130 = vld [vmem:[%s3119 + $0x50] sm:$0xff]
    %v3131 = vld [vmem:[%s3119 + $0x58] sm:$0xff]
    %v3132 = vld [vmem:[%s3119 + $0x60] sm:$0xff]
    %v3133 = vld [vmem:[%s3119 + $0x68] sm:$0xff]
    %v3134 = vld [vmem:[%s3119 + $0x70] sm:$0xff]
    %v3135 = vld [vmem:[%s3119 + $0x78] sm:$0xff]
    %v3136 = vld [vmem:[%s3119 + $0x80] sm:$0xff]
    %v3137 = vld [vmem:[%s3119 + $0x88] sm:$0xff]
    %v3138 = vld [vmem:[%s3119 + $0x90] sm:$0xff]
    %v3139 = vld [vmem:[%s3119 + $0x98] sm:$0xff]
    %v3140 = vld [vmem:[%s3119 + $0xa0] sm:$0xff]
    %v3141 = vld [vmem:[%s3119 + $0xa8] sm:$0xff]
    %v3142 = vld [vmem:[%s3119 + $0xb0] sm:$0xff]
    %v3143 = vld [vmem:[%s3119 + $0xb8] sm:$0xff]
    %v3144 = vld [vmem:[%s3119 + $0xc0] sm:$0xff]
    %v3145 = vld [vmem:[%s3119 + $0xc8] sm:$0xff]
    %v3146 = vld [vmem:[%s3119 + $0xd0] sm:$0xff]
    %v3147 = vld [vmem:[%s3119 + $0xd8] sm:$0xff]
    %v3148 = vld [vmem:[%s3119 + $0xe0] sm:$0xff]
    %v3149 = vld [vmem:[%s3119 + $0xe8] sm:$0xff]
    %v3150 = vld [vmem:[%s3119 + $0xf0] sm:$0xff]
    %v3151 = vld [vmem:[%s3119 + $0xf8] sm:$0xff]
    %v3184 = vunpack.c.l.b16 %v3120
    %v3185 = vunpack.c.h.b16 %v3120
    %v3186 = vunpack.c.l.b16 %v3121
    %v3187 = vunpack.c.h.b16 %v3121
    %v3188 = vunpack.c.l.b16 %v3122
    %v3189 = vunpack.c.h.b16 %v3122
    %v3190 = vunpack.c.l.b16 %v3123
    %v3191 = vunpack.c.h.b16 %v3123
    %v3192 = vunpack.c.l.b16 %v3124
    %v3193 = vunpack.c.h.b16 %v3124
    %v3194 = vunpack.c.l.b16 %v3125
    %v3195 = vunpack.c.h.b16 %v3125
    %v3196 = vunpack.c.l.b16 %v3126
    %v3197 = vunpack.c.h.b16 %v3126
    %v3198 = vunpack.c.l.b16 %v3127
    %v3199 = vunpack.c.h.b16 %v3127
    %v3200 = vunpack.c.l.b16 %v3128
    %v3201 = vunpack.c.h.b16 %v3128
    %v3202 = vunpack.c.l.b16 %v3129
    %v3203 = vunpack.c.h.b16 %v3129
    %v3204 = vunpack.c.l.b16 %v3130
    %v3205 = vunpack.c.h.b16 %v3130
    %v3206 = vunpack.c.l.b16 %v3131
    %v3207 = vunpack.c.h.b16 %v3131
    %v3208 = vunpack.c.l.b16 %v3132
    %v3209 = vunpack.c.h.b16 %v3132
    %v3210 = vunpack.c.l.b16 %v3133
    %v3211 = vunpack.c.h.b16 %v3133
    %v3212 = vunpack.c.l.b16 %v3134
    %v3213 = vunpack.c.h.b16 %v3134
    %v3214 = vunpack.c.l.b16 %v3135
    %v3215 = vunpack.c.h.b16 %v3135
    %v3216 = vunpack.c.l.b16 %v3136
    %v3217 = vunpack.c.h.b16 %v3136
    %v3218 = vunpack.c.l.b16 %v3137
    %v3219 = vunpack.c.h.b16 %v3137
    %v3220 = vunpack.c.l.b16 %v3138
    %v3221 = vunpack.c.h.b16 %v3138
    %v3222 = vunpack.c.l.b16 %v3139
    %v3223 = vunpack.c.h.b16 %v3139
    %v3224 = vunpack.c.l.b16 %v3140
    %v3225 = vunpack.c.h.b16 %v3140
    %v3226 = vunpack.c.l.b16 %v3141
    %v3227 = vunpack.c.h.b16 %v3141
    %v3228 = vunpack.c.l.b16 %v3142
    %v3229 = vunpack.c.h.b16 %v3142
    %v3230 = vunpack.c.l.b16 %v3143
    %v3231 = vunpack.c.h.b16 %v3143
    %v3232 = vunpack.c.l.b16 %v3144
    %v3233 = vunpack.c.h.b16 %v3144
    %v3234 = vunpack.c.l.b16 %v3145
    %v3235 = vunpack.c.h.b16 %v3145
    %v3236 = vunpack.c.l.b16 %v3146
    %v3237 = vunpack.c.h.b16 %v3146
    %v3238 = vunpack.c.l.b16 %v3147
    %v3239 = vunpack.c.h.b16 %v3147
    %v3240 = vunpack.c.l.b16 %v3148
    %v3241 = vunpack.c.h.b16 %v3148
    %v3242 = vunpack.c.l.b16 %v3149
    %v3243 = vunpack.c.h.b16 %v3149
    %v3244 = vunpack.c.l.b16 %v3150
    %v3245 = vunpack.c.h.b16 %v3150
    %v3246 = vunpack.c.l.b16 %v3151
    %v3247 = vunpack.c.h.b16 %v3151
    %v3248 = vpack.c.b16 %v3188, %v3184
    %v3249 = vpack.c.b16 %v3189, %v3185
    %v3250 = vpack.c.b16 %v3190, %v3186
    %v3251 = vpack.c.b16 %v3191, %v3187
    %v3252 = vpack.c.b16 %v3196, %v3192
    %v3253 = vpack.c.b16 %v3197, %v3193
    %v3254 = vpack.c.b16 %v3198, %v3194
    %v3255 = vpack.c.b16 %v3199, %v3195
    %v3256 = vpack.c.b16 %v3204, %v3200
    %v3257 = vpack.c.b16 %v3205, %v3201
    %v3258 = vpack.c.b16 %v3206, %v3202
    %v3259 = vpack.c.b16 %v3207, %v3203
    %v3260 = vpack.c.b16 %v3212, %v3208
    %v3261 = vpack.c.b16 %v3213, %v3209
    %v3262 = vpack.c.b16 %v3214, %v3210
    %v3263 = vpack.c.b16 %v3215, %v3211
    %v3264 = vpack.c.b16 %v3220, %v3216
    %v3265 = vpack.c.b16 %v3221, %v3217
    %v3266 = vpack.c.b16 %v3222, %v3218
    %v3267 = vpack.c.b16 %v3223, %v3219
    %v3268 = vpack.c.b16 %v3228, %v3224
    %v3269 = vpack.c.b16 %v3229, %v3225
    %v3270 = vpack.c.b16 %v3230, %v3226
    %v3271 = vpack.c.b16 %v3231, %v3227
    %v3272 = vpack.c.b16 %v3236, %v3232
    %v3273 = vpack.c.b16 %v3237, %v3233
    %v3274 = vpack.c.b16 %v3238, %v3234
    %v3275 = vpack.c.b16 %v3239, %v3235
    %v3276 = vpack.c.b16 %v3244, %v3240
    %v3277 = vpack.c.b16 %v3245, %v3241
    %v3278 = vpack.c.b16 %v3246, %v3242
    %v3279 = vpack.c.b16 %v3247, %v3243
    %3312 = vmatprep.subr.bf16.mxu0 0
    %3313 = vmatpush1.bf16.msra.mxu0 %v546
    %3314 = vmatprep.subr.bf16.mxu0 0
    %3315 = vmatpush1.bf16.msra.mxu0 %v545
    %3316 = vmatprep.subr.bf16.mxu0 0
    %3317 = vmatpush1.bf16.msra.mxu0 %v544
    %3318 = vmatprep.subr.bf16.mxu0 0
    %3319 = vmatpush1.bf16.msra.mxu0 %v543
    %3320 = vmatprep.subr.bf16.mxu0 0
    %3321 = vmatpush1.bf16.msra.mxu0 %v542
    %3322 = vmatprep.subr.bf16.mxu0 0
    %3323 = vmatpush1.bf16.msra.mxu0 %v541
    %3324 = vmatprep.subr.bf16.mxu0 0
    %3325 = vmatpush1.bf16.msra.mxu0 %v540
    %3326 = vmatprep.subr.bf16.mxu0 0
    %3327 = vmatpush1.bf16.msra.mxu0 %v539
    %3328 = vmatprep.subr.bf16.mxu0 0
    %3329 = vmatpush2.bf16.msra.mxu0 %v554
    %3330 = vmatprep.subr.bf16.mxu0 0
    %3331 = vmatpush2.bf16.msra.mxu0 %v553
    %3332 = vmatprep.subr.bf16.mxu0 0
    %3333 = vmatpush2.bf16.msra.mxu0 %v552
    %3334 = vmatprep.subr.bf16.mxu0 0
    %3335 = vmatpush2.bf16.msra.mxu0 %v551
    %3336 = vmatprep.subr.bf16.mxu0 0
    %3337 = vmatpush2.bf16.msra.mxu0 %v550
    %3338 = vmatprep.subr.bf16.mxu0 0
    %3339 = vmatpush2.bf16.msra.mxu0 %v549
    %3340 = vmatprep.subr.bf16.mxu0 0
    %3341 = vmatpush2.bf16.msra.mxu0 %v548
    %3342 = vmatprep.subr.bf16.mxu0 0
    %3343 = vmatpush2.bf16.msra.mxu0 %v547
    %3344 = vmatprep.mubr.bf16.mxu0 %v3249
    %3345 = vmatmul.mubr.bf16.gmra.mxu0 %v3248
    %v3346 = vpop.f32.mrf.mxu0
    %v3347 = vadd.f32 0.0, %v3346
    %v3348 = vpop.f32.mrf.mxu0
    %v3349 = vpop.f32.mrf.mxu0
    %v3350 = vadd.f32 0.0, %v3349
    %v3351 = vpop.f32.mrf.mxu0
    %3352 = vmatprep.mubr.bf16.mxu0 %v3253
    %3353 = vmatmul.mubr.bf16.gmra.mxu0 %v3252
    %v3354 = vpop.f32.mrf.mxu0
    %v3355 = vadd.f32 0.0, %v3354
    %v3356 = vpop.f32.mrf.mxu0
    %v3357 = vpop.f32.mrf.mxu0
    %v3358 = vadd.f32 0.0, %v3357
    %v3359 = vpop.f32.mrf.mxu0
    %3360 = vmatprep.mubr.bf16.mxu0 %v3257
    %3361 = vmatmul.mubr.bf16.gmra.mxu0 %v3256
    %v3362 = vpop.f32.mrf.mxu0
    %v3363 = vadd.f32 0.0, %v3362
    %v3364 = vpop.f32.mrf.mxu0
    %v3365 = vpop.f32.mrf.mxu0
    %v3366 = vadd.f32 0.0, %v3365
    %v3367 = vpop.f32.mrf.mxu0
    %3368 = vmatprep.mubr.bf16.mxu0 %v3261
    %3369 = vmatmul.mubr.bf16.gmra.mxu0 %v3260
    %v3370 = vpop.f32.mrf.mxu0
    %v3371 = vadd.f32 0.0, %v3370
    %v3372 = vpop.f32.mrf.mxu0
    %v3373 = vpop.f32.mrf.mxu0
    %v3374 = vadd.f32 0.0, %v3373
    %v3375 = vpop.f32.mrf.mxu0
    %3376 = vmatprep.mubr.bf16.mxu0 %v3265
    %3377 = vmatmul.mubr.bf16.gmra.mxu0 %v3264
    %v3378 = vpop.f32.mrf.mxu0
    %v3379 = vadd.f32 0.0, %v3378
    %v3380 = vpop.f32.mrf.mxu0
    %v3381 = vpop.f32.mrf.mxu0
    %v3382 = vadd.f32 0.0, %v3381
    %v3383 = vpop.f32.mrf.mxu0
    %3384 = vmatprep.mubr.bf16.mxu0 %v3269
    %3385 = vmatmul.mubr.bf16.gmra.mxu0 %v3268
    %v3386 = vpop.f32.mrf.mxu0
    %v3387 = vadd.f32 0.0, %v3386
    %v3388 = vpop.f32.mrf.mxu0
    %v3389 = vpop.f32.mrf.mxu0
    %v3390 = vadd.f32 0.0, %v3389
    %v3391 = vpop.f32.mrf.mxu0
    %3392 = vmatprep.mubr.bf16.mxu0 %v3273
    %3393 = vmatmul.mubr.bf16.gmra.mxu0 %v3272
    %v3394 = vpop.f32.mrf.mxu0
    %v3395 = vadd.f32 0.0, %v3394
    %v3396 = vpop.f32.mrf.mxu0
    %v3397 = vpop.f32.mrf.mxu0
    %v3398 = vadd.f32 0.0, %v3397
    %v3399 = vpop.f32.mrf.mxu0
    %3400 = vmatprep.mubr.bf16.mxu0 %v3277
    %3401 = vmatmul.mubr.bf16.gmra.mxu0 %v3276
    %v3402 = vpop.f32.mrf.mxu0
    %v3403 = vadd.f32 0.0, %v3402
    %v3404 = vpop.f32.mrf.mxu0
    %v3405 = vpop.f32.mrf.mxu0
    %v3406 = vadd.f32 0.0, %v3405
    %v3407 = vpop.f32.mrf.mxu0
    %3408 = vdwg.mxu0
    %3409 = vmatprep.subr.bf16.mxu0 0
    %3410 = vmatpush1.bf16.msra.mxu0 %v562
    %3411 = vmatprep.subr.bf16.mxu0 0
    %3412 = vmatpush1.bf16.msra.mxu0 %v561
    %3413 = vmatprep.subr.bf16.mxu0 0
    %3414 = vmatpush1.bf16.msra.mxu0 %v560
    %3415 = vmatprep.subr.bf16.mxu0 0
    %3416 = vmatpush1.bf16.msra.mxu0 %v559
    %3417 = vmatprep.subr.bf16.mxu0 0
    %3418 = vmatpush1.bf16.msra.mxu0 %v558
    %3419 = vmatprep.subr.bf16.mxu0 0
    %3420 = vmatpush1.bf16.msra.mxu0 %v557
    %3421 = vmatprep.subr.bf16.mxu0 0
    %3422 = vmatpush1.bf16.msra.mxu0 %v556
    %3423 = vmatprep.subr.bf16.mxu0 0
    %3424 = vmatpush1.bf16.msra.mxu0 %v555
    %3425 = vmatprep.subr.bf16.mxu0 0
    %3426 = vmatpush2.bf16.msra.mxu0 %v570
    %3427 = vmatprep.subr.bf16.mxu0 0
    %3428 = vmatpush2.bf16.msra.mxu0 %v569
    %3429 = vmatprep.subr.bf16.mxu0 0
    %3430 = vmatpush2.bf16.msra.mxu0 %v568
    %3431 = vmatprep.subr.bf16.mxu0 0
    %3432 = vmatpush2.bf16.msra.mxu0 %v567
    %3433 = vmatprep.subr.bf16.mxu0 0
    %3434 = vmatpush2.bf16.msra.mxu0 %v566
    %3435 = vmatprep.subr.bf16.mxu0 0
    %3436 = vmatpush2.bf16.msra.mxu0 %v565
    %3437 = vmatprep.subr.bf16.mxu0 0
    %3438 = vmatpush2.bf16.msra.mxu0 %v564
    %3439 = vmatprep.subr.bf16.mxu0 0
    %3440 = vmatpush2.bf16.msra.mxu0 %v563
    %3441 = vmatprep.mubr.bf16.mxu0 %v3251
    %3442 = vmatmul.mubr.bf16.gmra.mxu0 %v3250
    %v3443 = vpop.f32.mrf.mxu0
    %v3444 = vadd.f32 %v3347, %v3443
    %v3445 = vpop.f32.mrf.mxu0
    %v3446 = vpop.f32.mrf.mxu0
    %v3447 = vadd.f32 %v3350, %v3446
    %v3448 = vpop.f32.mrf.mxu0
    %3449 = vmatprep.mubr.bf16.mxu0 %v3255
    %3450 = vmatmul.mubr.bf16.gmra.mxu0 %v3254
    %v3451 = vpop.f32.mrf.mxu0
    %v3452 = vadd.f32 %v3355, %v3451
    %v3453 = vpop.f32.mrf.mxu0
    %v3454 = vpop.f32.mrf.mxu0
    %v3455 = vadd.f32 %v3358, %v3454
    %v3456 = vpop.f32.mrf.mxu0
    %3457 = vmatprep.mubr.bf16.mxu0 %v3259
    %3458 = vmatmul.mubr.bf16.gmra.mxu0 %v3258
    %v3459 = vpop.f32.mrf.mxu0
    %v3460 = vadd.f32 %v3363, %v3459
    %v3461 = vpop.f32.mrf.mxu0
    %v3462 = vpop.f32.mrf.mxu0
    %v3463 = vadd.f32 %v3366, %v3462
    %v3464 = vpop.f32.mrf.mxu0
    %3465 = vmatprep.mubr.bf16.mxu0 %v3263
    %3466 = vmatmul.mubr.bf16.gmra.mxu0 %v3262
    %v3467 = vpop.f32.mrf.mxu0
    %v3468 = vadd.f32 %v3371, %v3467
    %v3469 = vpop.f32.mrf.mxu0
    %v3470 = vpop.f32.mrf.mxu0
    %v3471 = vadd.f32 %v3374, %v3470
    %v3472 = vpop.f32.mrf.mxu0
    %3473 = vmatprep.mubr.bf16.mxu0 %v3267
    %3474 = vmatmul.mubr.bf16.gmra.mxu0 %v3266
    %v3475 = vpop.f32.mrf.mxu0
    %v3476 = vadd.f32 %v3379, %v3475
    %v3477 = vpop.f32.mrf.mxu0
    %v3478 = vpop.f32.mrf.mxu0
    %v3479 = vadd.f32 %v3382, %v3478
    %v3480 = vpop.f32.mrf.mxu0
    %3481 = vmatprep.mubr.bf16.mxu0 %v3271
    %3482 = vmatmul.mubr.bf16.gmra.mxu0 %v3270
    %v3483 = vpop.f32.mrf.mxu0
    %v3484 = vadd.f32 %v3387, %v3483
    %v3485 = vpop.f32.mrf.mxu0
    %v3486 = vpop.f32.mrf.mxu0
    %v3487 = vadd.f32 %v3390, %v3486
    %v3488 = vpop.f32.mrf.mxu0
    %3489 = vmatprep.mubr.bf16.mxu0 %v3275
    %3490 = vmatmul.mubr.bf16.gmra.mxu0 %v3274
    %v3491 = vpop.f32.mrf.mxu0
    %v3492 = vadd.f32 %v3395, %v3491
    %v3493 = vpop.f32.mrf.mxu0
    %v3494 = vpop.f32.mrf.mxu0
    %v3495 = vadd.f32 %v3398, %v3494
    %v3496 = vpop.f32.mrf.mxu0
    %3497 = vmatprep.mubr.bf16.mxu0 %v3279
    %3498 = vmatmul.mubr.bf16.gmra.mxu0 %v3278
    %v3499 = vpop.f32.mrf.mxu0
    %v3500 = vadd.f32 %v3403, %v3499
    %v3501 = vpop.f32.mrf.mxu0
    %v3502 = vpop.f32.mrf.mxu0
    %v3503 = vadd.f32 %v3406, %v3502
    %v3504 = vpop.f32.mrf.mxu0
    %3505 = vdwg.mxu0
    %s3506 = scalar_lea.vmem [#allocation2], 2048
    %v3507 = vld [vmem:[%s3506] sm:$0xff]
    %v3508 = vld [vmem:[%s3506 + $0x8] sm:$0xff]
    %v3509 = vld [vmem:[%s3506 + $0x10] sm:$0xff]
    %v3510 = vld [vmem:[%s3506 + $0x18] sm:$0xff]
    %v3511 = vld [vmem:[%s3506 + $0x20] sm:$0xff]
    %v3512 = vld [vmem:[%s3506 + $0x28] sm:$0xff]
    %v3513 = vld [vmem:[%s3506 + $0x30] sm:$0xff]
    %v3514 = vld [vmem:[%s3506 + $0x38] sm:$0xff]
    %v3515 = vld [vmem:[%s3506 + $0x40] sm:$0xff]
    %v3516 = vld [vmem:[%s3506 + $0x48] sm:$0xff]
    %v3517 = vld [vmem:[%s3506 + $0x50] sm:$0xff]
    %v3518 = vld [vmem:[%s3506 + $0x58] sm:$0xff]
    %v3519 = vld [vmem:[%s3506 + $0x60] sm:$0xff]
    %v3520 = vld [vmem:[%s3506 + $0x68] sm:$0xff]
    %v3521 = vld [vmem:[%s3506 + $0x70] sm:$0xff]
    %v3522 = vld [vmem:[%s3506 + $0x78] sm:$0xff]
    %v3523 = vld [vmem:[%s3506 + $0x80] sm:$0xff]
    %v3524 = vld [vmem:[%s3506 + $0x88] sm:$0xff]
    %v3525 = vld [vmem:[%s3506 + $0x90] sm:$0xff]
    %v3526 = vld [vmem:[%s3506 + $0x98] sm:$0xff]
    %v3527 = vld [vmem:[%s3506 + $0xa0] sm:$0xff]
    %v3528 = vld [vmem:[%s3506 + $0xa8] sm:$0xff]
    %v3529 = vld [vmem:[%s3506 + $0xb0] sm:$0xff]
    %v3530 = vld [vmem:[%s3506 + $0xb8] sm:$0xff]
    %v3531 = vld [vmem:[%s3506 + $0xc0] sm:$0xff]
    %v3532 = vld [vmem:[%s3506 + $0xc8] sm:$0xff]
    %v3533 = vld [vmem:[%s3506 + $0xd0] sm:$0xff]
    %v3534 = vld [vmem:[%s3506 + $0xd8] sm:$0xff]
    %v3535 = vld [vmem:[%s3506 + $0xe0] sm:$0xff]
    %v3536 = vld [vmem:[%s3506 + $0xe8] sm:$0xff]
    %v3537 = vld [vmem:[%s3506 + $0xf0] sm:$0xff]
    %v3538 = vld [vmem:[%s3506 + $0xf8] sm:$0xff]
    %v3571 = vunpack.c.l.b16 %v3507
    %v3572 = vunpack.c.h.b16 %v3507
    %v3573 = vunpack.c.l.b16 %v3508
    %v3574 = vunpack.c.h.b16 %v3508
    %v3575 = vunpack.c.l.b16 %v3509
    %v3576 = vunpack.c.h.b16 %v3509
    %v3577 = vunpack.c.l.b16 %v3510
    %v3578 = vunpack.c.h.b16 %v3510
    %v3579 = vunpack.c.l.b16 %v3511
    %v3580 = vunpack.c.h.b16 %v3511
    %v3581 = vunpack.c.l.b16 %v3512
    %v3582 = vunpack.c.h.b16 %v3512
    %v3583 = vunpack.c.l.b16 %v3513
    %v3584 = vunpack.c.h.b16 %v3513
    %v3585 = vunpack.c.l.b16 %v3514
    %v3586 = vunpack.c.h.b16 %v3514
    %v3587 = vunpack.c.l.b16 %v3515
    %v3588 = vunpack.c.h.b16 %v3515
    %v3589 = vunpack.c.l.b16 %v3516
    %v3590 = vunpack.c.h.b16 %v3516
    %v3591 = vunpack.c.l.b16 %v3517
    %v3592 = vunpack.c.h.b16 %v3517
    %v3593 = vunpack.c.l.b16 %v3518
    %v3594 = vunpack.c.h.b16 %v3518
    %v3595 = vunpack.c.l.b16 %v3519
    %v3596 = vunpack.c.h.b16 %v3519
    %v3597 = vunpack.c.l.b16 %v3520
    %v3598 = vunpack.c.h.b16 %v3520
    %v3599 = vunpack.c.l.b16 %v3521
    %v3600 = vunpack.c.h.b16 %v3521
    %v3601 = vunpack.c.l.b16 %v3522
    %v3602 = vunpack.c.h.b16 %v3522
    %v3603 = vunpack.c.l.b16 %v3523
    %v3604 = vunpack.c.h.b16 %v3523
    %v3605 = vunpack.c.l.b16 %v3524
    %v3606 = vunpack.c.h.b16 %v3524
    %v3607 = vunpack.c.l.b16 %v3525
    %v3608 = vunpack.c.h.b16 %v3525
    %v3609 = vunpack.c.l.b16 %v3526
    %v3610 = vunpack.c.h.b16 %v3526
    %v3611 = vunpack.c.l.b16 %v3527
    %v3612 = vunpack.c.h.b16 %v3527
    %v3613 = vunpack.c.l.b16 %v3528
    %v3614 = vunpack.c.h.b16 %v3528
    %v3615 = vunpack.c.l.b16 %v3529
    %v3616 = vunpack.c.h.b16 %v3529
    %v3617 = vunpack.c.l.b16 %v3530
    %v3618 = vunpack.c.h.b16 %v3530
    %v3619 = vunpack.c.l.b16 %v3531
    %v3620 = vunpack.c.h.b16 %v3531
    %v3621 = vunpack.c.l.b16 %v3532
    %v3622 = vunpack.c.h.b16 %v3532
    %v3623 = vunpack.c.l.b16 %v3533
    %v3624 = vunpack.c.h.b16 %v3533
    %v3625 = vunpack.c.l.b16 %v3534
    %v3626 = vunpack.c.h.b16 %v3534
    %v3627 = vunpack.c.l.b16 %v3535
    %v3628 = vunpack.c.h.b16 %v3535
    %v3629 = vunpack.c.l.b16 %v3536
    %v3630 = vunpack.c.h.b16 %v3536
    %v3631 = vunpack.c.l.b16 %v3537
    %v3632 = vunpack.c.h.b16 %v3537
    %v3633 = vunpack.c.l.b16 %v3538
    %v3634 = vunpack.c.h.b16 %v3538
    %v3635 = vpack.c.b16 %v3575, %v3571
    %v3636 = vpack.c.b16 %v3576, %v3572
    %v3637 = vpack.c.b16 %v3577, %v3573
    %v3638 = vpack.c.b16 %v3578, %v3574
    %v3639 = vpack.c.b16 %v3583, %v3579
    %v3640 = vpack.c.b16 %v3584, %v3580
    %v3641 = vpack.c.b16 %v3585, %v3581
    %v3642 = vpack.c.b16 %v3586, %v3582
    %v3643 = vpack.c.b16 %v3591, %v3587
    %v3644 = vpack.c.b16 %v3592, %v3588
    %v3645 = vpack.c.b16 %v3593, %v3589
    %v3646 = vpack.c.b16 %v3594, %v3590
    %v3647 = vpack.c.b16 %v3599, %v3595
    %v3648 = vpack.c.b16 %v3600, %v3596
    %v3649 = vpack.c.b16 %v3601, %v3597
    %v3650 = vpack.c.b16 %v3602, %v3598
    %v3651 = vpack.c.b16 %v3607, %v3603
    %v3652 = vpack.c.b16 %v3608, %v3604
    %v3653 = vpack.c.b16 %v3609, %v3605
    %v3654 = vpack.c.b16 %v3610, %v3606
    %v3655 = vpack.c.b16 %v3615, %v3611
    %v3656 = vpack.c.b16 %v3616, %v3612
    %v3657 = vpack.c.b16 %v3617, %v3613
    %v3658 = vpack.c.b16 %v3618, %v3614
    %v3659 = vpack.c.b16 %v3623, %v3619
    %v3660 = vpack.c.b16 %v3624, %v3620
    %v3661 = vpack.c.b16 %v3625, %v3621
    %v3662 = vpack.c.b16 %v3626, %v3622
    %v3663 = vpack.c.b16 %v3631, %v3627
    %v3664 = vpack.c.b16 %v3632, %v3628
    %v3665 = vpack.c.b16 %v3633, %v3629
    %v3666 = vpack.c.b16 %v3634, %v3630
    %3699 = vmatprep.subr.bf16.mxu0 0
    %3700 = vmatpush1.bf16.msra.mxu0 %v546
    %3701 = vmatprep.subr.bf16.mxu0 0
    %3702 = vmatpush1.bf16.msra.mxu0 %v545
    %3703 = vmatprep.subr.bf16.mxu0 0
    %3704 = vmatpush1.bf16.msra.mxu0 %v544
    %3705 = vmatprep.subr.bf16.mxu0 0
    %3706 = vmatpush1.bf16.msra.mxu0 %v543
    %3707 = vmatprep.subr.bf16.mxu0 0
    %3708 = vmatpush1.bf16.msra.mxu0 %v542
    %3709 = vmatprep.subr.bf16.mxu0 0
    %3710 = vmatpush1.bf16.msra.mxu0 %v541
    %3711 = vmatprep.subr.bf16.mxu0 0
    %3712 = vmatpush1.bf16.msra.mxu0 %v540
    %3713 = vmatprep.subr.bf16.mxu0 0
    %3714 = vmatpush1.bf16.msra.mxu0 %v539
    %3715 = vmatprep.subr.bf16.mxu0 0
    %3716 = vmatpush2.bf16.msra.mxu0 %v554
    %3717 = vmatprep.subr.bf16.mxu0 0
    %3718 = vmatpush2.bf16.msra.mxu0 %v553
    %3719 = vmatprep.subr.bf16.mxu0 0
    %3720 = vmatpush2.bf16.msra.mxu0 %v552
    %3721 = vmatprep.subr.bf16.mxu0 0
    %3722 = vmatpush2.bf16.msra.mxu0 %v551
    %3723 = vmatprep.subr.bf16.mxu0 0
    %3724 = vmatpush2.bf16.msra.mxu0 %v550
    %3725 = vmatprep.subr.bf16.mxu0 0
    %3726 = vmatpush2.bf16.msra.mxu0 %v549
    %3727 = vmatprep.subr.bf16.mxu0 0
    %3728 = vmatpush2.bf16.msra.mxu0 %v548
    %3729 = vmatprep.subr.bf16.mxu0 0
    %3730 = vmatpush2.bf16.msra.mxu0 %v547
    %3731 = vmatprep.mubr.bf16.mxu0 %v3636
    %3732 = vmatmul.mubr.bf16.gmra.mxu0 %v3635
    %v3733 = vpop.f32.mrf.mxu0
    %v3734 = vadd.f32 0.0, %v3733
    %v3735 = vpop.f32.mrf.mxu0
    %v3736 = vpop.f32.mrf.mxu0
    %v3737 = vadd.f32 0.0, %v3736
    %v3738 = vpop.f32.mrf.mxu0
    %3739 = vmatprep.mubr.bf16.mxu0 %v3640
    %3740 = vmatmul.mubr.bf16.gmra.mxu0 %v3639
    %v3741 = vpop.f32.mrf.mxu0
    %v3742 = vadd.f32 0.0, %v3741
    %v3743 = vpop.f32.mrf.mxu0
    %v3744 = vpop.f32.mrf.mxu0
    %v3745 = vadd.f32 0.0, %v3744
    %v3746 = vpop.f32.mrf.mxu0
    %3747 = vmatprep.mubr.bf16.mxu0 %v3644
    %3748 = vmatmul.mubr.bf16.gmra.mxu0 %v3643
    %v3749 = vpop.f32.mrf.mxu0
    %v3750 = vadd.f32 0.0, %v3749
    %v3751 = vpop.f32.mrf.mxu0
    %v3752 = vpop.f32.mrf.mxu0
    %v3753 = vadd.f32 0.0, %v3752
    %v3754 = vpop.f32.mrf.mxu0
    %3755 = vmatprep.mubr.bf16.mxu0 %v3648
    %3756 = vmatmul.mubr.bf16.gmra.mxu0 %v3647
    %v3757 = vpop.f32.mrf.mxu0
    %v3758 = vadd.f32 0.0, %v3757
    %v3759 = vpop.f32.mrf.mxu0
    %v3760 = vpop.f32.mrf.mxu0
    %v3761 = vadd.f32 0.0, %v3760
    %v3762 = vpop.f32.mrf.mxu0
    %3763 = vmatprep.mubr.bf16.mxu0 %v3652
    %3764 = vmatmul.mubr.bf16.gmra.mxu0 %v3651
    %v3765 = vpop.f32.mrf.mxu0
    %v3766 = vadd.f32 0.0, %v3765
    %v3767 = vpop.f32.mrf.mxu0
    %v3768 = vpop.f32.mrf.mxu0
    %v3769 = vadd.f32 0.0, %v3768
    %v3770 = vpop.f32.mrf.mxu0
    %3771 = vmatprep.mubr.bf16.mxu0 %v3656
    %3772 = vmatmul.mubr.bf16.gmra.mxu0 %v3655
    %v3773 = vpop.f32.mrf.mxu0
    %v3774 = vadd.f32 0.0, %v3773
    %v3775 = vpop.f32.mrf.mxu0
    %v3776 = vpop.f32.mrf.mxu0
    %v3777 = vadd.f32 0.0, %v3776
    %v3778 = vpop.f32.mrf.mxu0
    %3779 = vmatprep.mubr.bf16.mxu0 %v3660
    %3780 = vmatmul.mubr.bf16.gmra.mxu0 %v3659
    %v3781 = vpop.f32.mrf.mxu0
    %v3782 = vadd.f32 0.0, %v3781
    %v3783 = vpop.f32.mrf.mxu0
    %v3784 = vpop.f32.mrf.mxu0
    %v3785 = vadd.f32 0.0, %v3784
    %v3786 = vpop.f32.mrf.mxu0
    %3787 = vmatprep.mubr.bf16.mxu0 %v3664
    %3788 = vmatmul.mubr.bf16.gmra.mxu0 %v3663
    %v3789 = vpop.f32.mrf.mxu0
    %v3790 = vadd.f32 0.0, %v3789
    %v3791 = vpop.f32.mrf.mxu0
    %v3792 = vpop.f32.mrf.mxu0
    %v3793 = vadd.f32 0.0, %v3792
    %v3794 = vpop.f32.mrf.mxu0
    %3795 = vdwg.mxu0
    %3796 = vmatprep.subr.bf16.mxu0 0
    %3797 = vmatpush1.bf16.msra.mxu0 %v562
    %3798 = vmatprep.subr.bf16.mxu0 0
    %3799 = vmatpush1.bf16.msra.mxu0 %v561
    %3800 = vmatprep.subr.bf16.mxu0 0
    %3801 = vmatpush1.bf16.msra.mxu0 %v560
    %3802 = vmatprep.subr.bf16.mxu0 0
    %3803 = vmatpush1.bf16.msra.mxu0 %v559
    %3804 = vmatprep.subr.bf16.mxu0 0
    %3805 = vmatpush1.bf16.msra.mxu0 %v558
    %3806 = vmatprep.subr.bf16.mxu0 0
    %3807 = vmatpush1.bf16.msra.mxu0 %v557
    %3808 = vmatprep.subr.bf16.mxu0 0
    %3809 = vmatpush1.bf16.msra.mxu0 %v556
    %3810 = vmatprep.subr.bf16.mxu0 0
    %3811 = vmatpush1.bf16.msra.mxu0 %v555
    %3812 = vmatprep.subr.bf16.mxu0 0
    %3813 = vmatpush2.bf16.msra.mxu0 %v570
    %3814 = vmatprep.subr.bf16.mxu0 0
    %3815 = vmatpush2.bf16.msra.mxu0 %v569
    %3816 = vmatprep.subr.bf16.mxu0 0
    %3817 = vmatpush2.bf16.msra.mxu0 %v568
    %3818 = vmatprep.subr.bf16.mxu0 0
    %3819 = vmatpush2.bf16.msra.mxu0 %v567
    %3820 = vmatprep.subr.bf16.mxu0 0
    %3821 = vmatpush2.bf16.msra.mxu0 %v566
    %3822 = vmatprep.subr.bf16.mxu0 0
    %3823 = vmatpush2.bf16.msra.mxu0 %v565
    %3824 = vmatprep.subr.bf16.mxu0 0
    %3825 = vmatpush2.bf16.msra.mxu0 %v564
    %3826 = vmatprep.subr.bf16.mxu0 0
    %3827 = vmatpush2.bf16.msra.mxu0 %v563
    %3828 = vmatprep.mubr.bf16.mxu0 %v3638
    %3829 = vmatmul.mubr.bf16.gmra.mxu0 %v3637
    %v3830 = vpop.f32.mrf.mxu0
    %v3831 = vadd.f32 %v3734, %v3830
    %v3832 = vpop.f32.mrf.mxu0
    %v3833 = vpop.f32.mrf.mxu0
    %v3834 = vadd.f32 %v3737, %v3833
    %v3835 = vpop.f32.mrf.mxu0
    %3836 = vmatprep.mubr.bf16.mxu0 %v3642
    %3837 = vmatmul.mubr.bf16.gmra.mxu0 %v3641
    %v3838 = vpop.f32.mrf.mxu0
    %v3839 = vadd.f32 %v3742, %v3838
    %v3840 = vpop.f32.mrf.mxu0
    %v3841 = vpop.f32.mrf.mxu0
    %v3842 = vadd.f32 %v3745, %v3841
    %v3843 = vpop.f32.mrf.mxu0
    %3844 = vmatprep.mubr.bf16.mxu0 %v3646
    %3845 = vmatmul.mubr.bf16.gmra.mxu0 %v3645
    %v3846 = vpop.f32.mrf.mxu0
    %v3847 = vadd.f32 %v3750, %v3846
    %v3848 = vpop.f32.mrf.mxu0
    %v3849 = vpop.f32.mrf.mxu0
    %v3850 = vadd.f32 %v3753, %v3849
    %v3851 = vpop.f32.mrf.mxu0
    %3852 = vmatprep.mubr.bf16.mxu0 %v3650
    %3853 = vmatmul.mubr.bf16.gmra.mxu0 %v3649
    %v3854 = vpop.f32.mrf.mxu0
    %v3855 = vadd.f32 %v3758, %v3854
    %v3856 = vpop.f32.mrf.mxu0
    %v3857 = vpop.f32.mrf.mxu0
    %v3858 = vadd.f32 %v3761, %v3857
    %v3859 = vpop.f32.mrf.mxu0
    %3860 = vmatprep.mubr.bf16.mxu0 %v3654
    %3861 = vmatmul.mubr.bf16.gmra.mxu0 %v3653
    %v3862 = vpop.f32.mrf.mxu0
    %v3863 = vadd.f32 %v3766, %v3862
    %v3864 = vpop.f32.mrf.mxu0
    %v3865 = vpop.f32.mrf.mxu0
    %v3866 = vadd.f32 %v3769, %v3865
    %v3867 = vpop.f32.mrf.mxu0
    %3868 = vmatprep.mubr.bf16.mxu0 %v3658
    %3869 = vmatmul.mubr.bf16.gmra.mxu0 %v3657
    %v3870 = vpop.f32.mrf.mxu0
    %v3871 = vadd.f32 %v3774, %v3870
    %v3872 = vpop.f32.mrf.mxu0
    %v3873 = vpop.f32.mrf.mxu0
    %v3874 = vadd.f32 %v3777, %v3873
    %v3875 = vpop.f32.mrf.mxu0
    %3876 = vmatprep.mubr.bf16.mxu0 %v3662
    %3877 = vmatmul.mubr.bf16.gmra.mxu0 %v3661
    %v3878 = vpop.f32.mrf.mxu0
    %v3879 = vadd.f32 %v3782, %v3878
    %v3880 = vpop.f32.mrf.mxu0
    %v3881 = vpop.f32.mrf.mxu0
    %v3882 = vadd.f32 %v3785, %v3881
    %v3883 = vpop.f32.mrf.mxu0
    %3884 = vmatprep.mubr.bf16.mxu0 %v3666
    %3885 = vmatmul.mubr.bf16.gmra.mxu0 %v3665
    %v3886 = vpop.f32.mrf.mxu0
    %v3887 = vadd.f32 %v3790, %v3886
    %v3888 = vpop.f32.mrf.mxu0
    %v3889 = vpop.f32.mrf.mxu0
    %v3890 = vadd.f32 %v3793, %v3889
    %v3891 = vpop.f32.mrf.mxu0
    %3892 = vdwg.mxu0
    %3909 = vrot.lane.b32.xlu0 %v1122, 3
    %v3910 = vpop.permute.xlu0 %3909
    %3911 = vrot.lane.b32.xlu0 %v1125, 3
    %v3912 = vpop.permute.xlu0 %3911
    %3913 = vrot.lane.b32.xlu0 %v1130, 3
    %v3914 = vpop.permute.xlu0 %3913
    %3915 = vrot.lane.b32.xlu0 %v1133, 3
    %v3916 = vpop.permute.xlu0 %3915
    %3917 = vrot.lane.b32.xlu0 %v1138, 3
    %v3918 = vpop.permute.xlu0 %3917
    %3919 = vrot.lane.b32.xlu0 %v1141, 3
    %v3920 = vpop.permute.xlu0 %3919
    %3921 = vrot.lane.b32.xlu0 %v1146, 3
    %v3922 = vpop.permute.xlu0 %3921
    %3923 = vrot.lane.b32.xlu0 %v1149, 3
    %v3924 = vpop.permute.xlu0 %3923
    %3925 = vrot.lane.b32.xlu0 %v1154, 3
    %v3926 = vpop.permute.xlu0 %3925
    %3927 = vrot.lane.b32.xlu0 %v1157, 3
    %v3928 = vpop.permute.xlu0 %3927
    %3929 = vrot.lane.b32.xlu0 %v1162, 3
    %v3930 = vpop.permute.xlu0 %3929
    %3931 = vrot.lane.b32.xlu0 %v1165, 3
    %v3932 = vpop.permute.xlu0 %3931
    %3933 = vrot.lane.b32.xlu0 %v1170, 3
    %v3934 = vpop.permute.xlu0 %3933
    %3935 = vrot.lane.b32.xlu0 %v1173, 3
    %v3936 = vpop.permute.xlu0 %3935
    %3937 = vrot.lane.b32.xlu0 %v1178, 3
    %v3938 = vpop.permute.xlu0 %3937
    %3939 = vrot.lane.b32.xlu0 %v1181, 3
    %v3940 = vpop.permute.xlu0 %3939
    %3973 = vrot.lane.b32.xlu0 %v1509, 6
    %v3974 = vpop.permute.xlu0 %3973
    %3975 = vrot.lane.b32.xlu0 %v1512, 6
    %v3976 = vpop.permute.xlu0 %3975
    %3977 = vrot.lane.b32.xlu0 %v1517, 6
    %v3978 = vpop.permute.xlu0 %3977
    %3979 = vrot.lane.b32.xlu0 %v1520, 6
    %v3980 = vpop.permute.xlu0 %3979
    %3981 = vrot.lane.b32.xlu0 %v1525, 6
    %v3982 = vpop.permute.xlu0 %3981
    %3983 = vrot.lane.b32.xlu0 %v1528, 6
    %v3984 = vpop.permute.xlu0 %3983
    %3985 = vrot.lane.b32.xlu0 %v1533, 6
    %v3986 = vpop.permute.xlu0 %3985
    %3987 = vrot.lane.b32.xlu0 %v1536, 6
    %v3988 = vpop.permute.xlu0 %3987
    %3989 = vrot.lane.b32.xlu0 %v1541, 6
    %v3990 = vpop.permute.xlu0 %3989
    %3991 = vrot.lane.b32.xlu0 %v1544, 6
    %v3992 = vpop.permute.xlu0 %3991
    %3993 = vrot.lane.b32.xlu0 %v1549, 6
    %v3994 = vpop.permute.xlu0 %3993
    %3995 = vrot.lane.b32.xlu0 %v1552, 6
    %v3996 = vpop.permute.xlu0 %3995
    %3997 = vrot.lane.b32.xlu0 %v1557, 6
    %v3998 = vpop.permute.xlu0 %3997
    %3999 = vrot.lane.b32.xlu0 %v1560, 6
    %v4000 = vpop.permute.xlu0 %3999
    %4001 = vrot.lane.b32.xlu0 %v1565, 6
    %v4002 = vpop.permute.xlu0 %4001
    %4003 = vrot.lane.b32.xlu0 %v1568, 6
    %v4004 = vpop.permute.xlu0 %4003
    %4037 = vrot.lane.b32.xlu0 %v1896, 9
    %v4038 = vpop.permute.xlu0 %4037
    %4039 = vrot.lane.b32.xlu0 %v1899, 9
    %v4040 = vpop.permute.xlu0 %4039
    %4041 = vrot.lane.b32.xlu0 %v1904, 9
    %v4042 = vpop.permute.xlu0 %4041
    %4043 = vrot.lane.b32.xlu0 %v1907, 9
    %v4044 = vpop.permute.xlu0 %4043
    %4045 = vrot.lane.b32.xlu0 %v1912, 9
    %v4046 = vpop.permute.xlu0 %4045
    %4047 = vrot.lane.b32.xlu0 %v1915, 9
    %v4048 = vpop.permute.xlu0 %4047
    %4049 = vrot.lane.b32.xlu0 %v1920, 9
    %v4050 = vpop.permute.xlu0 %4049
    %4051 = vrot.lane.b32.xlu0 %v1923, 9
    %v4052 = vpop.permute.xlu0 %4051
    %4053 = vrot.lane.b32.xlu0 %v1928, 9
    %v4054 = vpop.permute.xlu0 %4053
    %4055 = vrot.lane.b32.xlu0 %v1931, 9
    %v4056 = vpop.permute.xlu0 %4055
    %4057 = vrot.lane.b32.xlu0 %v1936, 9
    %v4058 = vpop.permute.xlu0 %4057
    %4059 = vrot.lane.b32.xlu0 %v1939, 9
    %v4060 = vpop.permute.xlu0 %4059
    %4061 = vrot.lane.b32.xlu0 %v1944, 9
    %v4062 = vpop.permute.xlu0 %4061
    %4063 = vrot.lane.b32.xlu0 %v1947, 9
    %v4064 = vpop.permute.xlu0 %4063
    %4065 = vrot.lane.b32.xlu0 %v1952, 9
    %v4066 = vpop.permute.xlu0 %4065
    %4067 = vrot.lane.b32.xlu0 %v1955, 9
    %v4068 = vpop.permute.xlu0 %4067
    %4101 = vrot.lane.b32.xlu0 %v2283, 12
    %v4102 = vpop.permute.xlu0 %4101
    %4103 = vrot.lane.b32.xlu0 %v2286, 12
    %v4104 = vpop.permute.xlu0 %4103
    %4105 = vrot.lane.b32.xlu0 %v2291, 12
    %v4106 = vpop.permute.xlu0 %4105
    %4107 = vrot.lane.b32.xlu0 %v2294, 12
    %v4108 = vpop.permute.xlu0 %4107
    %4109 = vrot.lane.b32.xlu0 %v2299, 12
    %v4110 = vpop.permute.xlu0 %4109
    %4111 = vrot.lane.b32.xlu0 %v2302, 12
    %v4112 = vpop.permute.xlu0 %4111
    %4113 = vrot.lane.b32.xlu0 %v2307, 12
    %v4114 = vpop.permute.xlu0 %4113
    %4115 = vrot.lane.b32.xlu0 %v2310, 12
    %v4116 = vpop.permute.xlu0 %4115
    %4117 = vrot.lane.b32.xlu0 %v2315, 12
    %v4118 = vpop.permute.xlu0 %4117
    %4119 = vrot.lane.b32.xlu0 %v2318, 12
    %v4120 = vpop.permute.xlu0 %4119
    %4121 = vrot.lane.b32.xlu0 %v2323, 12
    %v4122 = vpop.permute.xlu0 %4121
    %4123 = vrot.lane.b32.xlu0 %v2326, 12
    %v4124 = vpop.permute.xlu0 %4123
    %4125 = vrot.lane.b32.xlu0 %v2331, 12
    %v4126 = vpop.permute.xlu0 %4125
    %4127 = vrot.lane.b32.xlu0 %v2334, 12
    %v4128 = vpop.permute.xlu0 %4127
    %4129 = vrot.lane.b32.xlu0 %v2339, 12
    %v4130 = vpop.permute.xlu0 %4129
    %4131 = vrot.lane.b32.xlu0 %v2342, 12
    %v4132 = vpop.permute.xlu0 %4131
    %4165 = vrot.lane.b32.xlu0 %v2670, 15
    %v4166 = vpop.permute.xlu0 %4165
    %4167 = vrot.lane.b32.xlu0 %v2673, 15
    %v4168 = vpop.permute.xlu0 %4167
    %4169 = vrot.lane.b32.xlu0 %v2678, 15
    %v4170 = vpop.permute.xlu0 %4169
    %4171 = vrot.lane.b32.xlu0 %v2681, 15
    %v4172 = vpop.permute.xlu0 %4171
    %4173 = vrot.lane.b32.xlu0 %v2686, 15
    %v4174 = vpop.permute.xlu0 %4173
    %4175 = vrot.lane.b32.xlu0 %v2689, 15
    %v4176 = vpop.permute.xlu0 %4175
    %4177 = vrot.lane.b32.xlu0 %v2694, 15
    %v4178 = vpop.permute.xlu0 %4177
    %4179 = vrot.lane.b32.xlu0 %v2697, 15
    %v4180 = vpop.permute.xlu0 %4179
    %4181 = vrot.lane.b32.xlu0 %v2702, 15
    %v4182 = vpop.permute.xlu0 %4181
    %4183 = vrot.lane.b32.xlu0 %v2705, 15
    %v4184 = vpop.permute.xlu0 %4183
    %4185 = vrot.lane.b32.xlu0 %v2710, 15
    %v4186 = vpop.permute.xlu0 %4185
    %4187 = vrot.lane.b32.xlu0 %v2713, 15
    %v4188 = vpop.permute.xlu0 %4187
    %4189 = vrot.lane.b32.xlu0 %v2718, 15
    %v4190 = vpop.permute.xlu0 %4189
    %4191 = vrot.lane.b32.xlu0 %v2721, 15
    %v4192 = vpop.permute.xlu0 %4191
    %4193 = vrot.lane.b32.xlu0 %v2726, 15
    %v4194 = vpop.permute.xlu0 %4193
    %4195 = vrot.lane.b32.xlu0 %v2729, 15
    %v4196 = vpop.permute.xlu0 %4195
    %4229 = vrot.lane.b32.xlu0 %v3057, 18
    %v4230 = vpop.permute.xlu0 %4229
    %4231 = vrot.lane.b32.xlu0 %v3060, 18
    %v4232 = vpop.permute.xlu0 %4231
    %4233 = vrot.lane.b32.xlu0 %v3065, 18
    %v4234 = vpop.permute.xlu0 %4233
    %4235 = vrot.lane.b32.xlu0 %v3068, 18
    %v4236 = vpop.permute.xlu0 %4235
    %4237 = vrot.lane.b32.xlu0 %v3073, 18
    %v4238 = vpop.permute.xlu0 %4237
    %4239 = vrot.lane.b32.xlu0 %v3076, 18
    %v4240 = vpop.permute.xlu0 %4239
    %4241 = vrot.lane.b32.xlu0 %v3081, 18
    %v4242 = vpop.permute.xlu0 %4241
    %4243 = vrot.lane.b32.xlu0 %v3084, 18
    %v4244 = vpop.permute.xlu0 %4243
    %4245 = vrot.lane.b32.xlu0 %v3089, 18
    %v4246 = vpop.permute.xlu0 %4245
    %4247 = vrot.lane.b32.xlu0 %v3092, 18
    %v4248 = vpop.permute.xlu0 %4247
    %4249 = vrot.lane.b32.xlu0 %v3097, 18
    %v4250 = vpop.permute.xlu0 %4249
    %4251 = vrot.lane.b32.xlu0 %v3100, 18
    %v4252 = vpop.permute.xlu0 %4251
    %4253 = vrot.lane.b32.xlu0 %v3105, 18
    %v4254 = vpop.permute.xlu0 %4253
    %4255 = vrot.lane.b32.xlu0 %v3108, 18
    %v4256 = vpop.permute.xlu0 %4255
    %4257 = vrot.lane.b32.xlu0 %v3113, 18
    %v4258 = vpop.permute.xlu0 %4257
    %4259 = vrot.lane.b32.xlu0 %v3116, 18
    %v4260 = vpop.permute.xlu0 %4259
    %4293 = vrot.lane.b32.xlu0 %v3444, 21
    %v4294 = vpop.permute.xlu0 %4293
    %4295 = vrot.lane.b32.xlu0 %v3447, 21
    %v4296 = vpop.permute.xlu0 %4295
    %4297 = vrot.lane.b32.xlu0 %v3452, 21
    %v4298 = vpop.permute.xlu0 %4297
    %4299 = vrot.lane.b32.xlu0 %v3455, 21
    %v4300 = vpop.permute.xlu0 %4299
    %4301 = vrot.lane.b32.xlu0 %v3460, 21
    %v4302 = vpop.permute.xlu0 %4301
    %4303 = vrot.lane.b32.xlu0 %v3463, 21
    %v4304 = vpop.permute.xlu0 %4303
    %4305 = vrot.lane.b32.xlu0 %v3468, 21
    %v4306 = vpop.permute.xlu0 %4305
    %4307 = vrot.lane.b32.xlu0 %v3471, 21
    %v4308 = vpop.permute.xlu0 %4307
    %4309 = vrot.lane.b32.xlu0 %v3476, 21
    %v4310 = vpop.permute.xlu0 %4309
    %4311 = vrot.lane.b32.xlu0 %v3479, 21
    %v4312 = vpop.permute.xlu0 %4311
    %4313 = vrot.lane.b32.xlu0 %v3484, 21
    %v4314 = vpop.permute.xlu0 %4313
    %4315 = vrot.lane.b32.xlu0 %v3487, 21
    %v4316 = vpop.permute.xlu0 %4315
    %4317 = vrot.lane.b32.xlu0 %v3492, 21
    %v4318 = vpop.permute.xlu0 %4317
    %4319 = vrot.lane.b32.xlu0 %v3495, 21
    %v4320 = vpop.permute.xlu0 %4319
    %4321 = vrot.lane.b32.xlu0 %v3500, 21
    %v4322 = vpop.permute.xlu0 %4321
    %4323 = vrot.lane.b32.xlu0 %v3503, 21
    %v4324 = vpop.permute.xlu0 %4323
    %4357 = vrot.lane.b32.xlu0 %v3831, 24
    %v4358 = vpop.permute.xlu0 %4357
    %4359 = vrot.lane.b32.xlu0 %v3834, 24
    %v4360 = vpop.permute.xlu0 %4359
    %4361 = vrot.lane.b32.xlu0 %v3839, 24
    %v4362 = vpop.permute.xlu0 %4361
    %4363 = vrot.lane.b32.xlu0 %v3842, 24
    %v4364 = vpop.permute.xlu0 %4363
    %4365 = vrot.lane.b32.xlu0 %v3847, 24
    %v4366 = vpop.permute.xlu0 %4365
    %4367 = vrot.lane.b32.xlu0 %v3850, 24
    %v4368 = vpop.permute.xlu0 %4367
    %4369 = vrot.lane.b32.xlu0 %v3855, 24
    %v4370 = vpop.permute.xlu0 %4369
    %4371 = vrot.lane.b32.xlu0 %v3858, 24
    %v4372 = vpop.permute.xlu0 %4371
    %4373 = vrot.lane.b32.xlu0 %v3863, 24
    %v4374 = vpop.permute.xlu0 %4373
    %4375 = vrot.lane.b32.xlu0 %v3866, 24
    %v4376 = vpop.permute.xlu0 %4375
    %4377 = vrot.lane.b32.xlu0 %v3871, 24
    %v4378 = vpop.permute.xlu0 %4377
    %4379 = vrot.lane.b32.xlu0 %v3874, 24
    %v4380 = vpop.permute.xlu0 %4379
    %4381 = vrot.lane.b32.xlu0 %v3879, 24
    %v4382 = vpop.permute.xlu0 %4381
    %4383 = vrot.lane.b32.xlu0 %v3882, 24
    %v4384 = vpop.permute.xlu0 %4383
    %4385 = vrot.lane.b32.xlu0 %v3887, 24
    %v4386 = vpop.permute.xlu0 %4385
    %4387 = vrot.lane.b32.xlu0 %v3890, 24
    %v4388 = vpop.permute.xlu0 %4387
    %vm4405 = vcmask 23552
    %v4406 = vsel %vm4405, %v735, %v3910
    %v4407 = vsel %vm4405, %v738, %v3912
    %v4408 = vsel %vm4405, %v743, %v3914
    %v4409 = vsel %vm4405, %v746, %v3916
    %v4410 = vsel %vm4405, %v751, %v3918
    %v4411 = vsel %vm4405, %v754, %v3920
    %v4412 = vsel %vm4405, %v759, %v3922
    %v4413 = vsel %vm4405, %v762, %v3924
    %v4414 = vsel %vm4405, %v767, %v3926
    %v4415 = vsel %vm4405, %v770, %v3928
    %v4416 = vsel %vm4405, %v775, %v3930
    %v4417 = vsel %vm4405, %v778, %v3932
    %v4418 = vsel %vm4405, %v783, %v3934
    %v4419 = vsel %vm4405, %v786, %v3936
    %v4420 = vsel %vm4405, %v791, %v3938
    %v4421 = vsel %vm4405, %v794, %v3940
    %vm4422 = vcmask 48128
    %v4423 = vsel %vm4422, %v4406, %v3974
    %v4424 = vsel %vm4422, %v4407, %v3976
    %v4425 = vsel %vm4422, %v4408, %v3978
    %v4426 = vsel %vm4422, %v4409, %v3980
    %v4427 = vsel %vm4422, %v4410, %v3982
    %v4428 = vsel %vm4422, %v4411, %v3984
    %v4429 = vsel %vm4422, %v4412, %v3986
    %v4430 = vsel %vm4422, %v4413, %v3988
    %v4431 = vsel %vm4422, %v4414, %v3990
    %v4432 = vsel %vm4422, %v4415, %v3992
    %v4433 = vsel %vm4422, %v4416, %v3994
    %v4434 = vsel %vm4422, %v4417, %v3996
    %v4435 = vsel %vm4422, %v4418, %v3998
    %v4436 = vsel %vm4422, %v4419, %v4000
    %v4437 = vsel %vm4422, %v4420, %v4002
    %v4438 = vsel %vm4422, %v4421, %v4004
    %vm4439 = vcmask 72704
    %v4440 = vsel %vm4439, %v4423, %v4038
    %v4441 = vsel %vm4439, %v4424, %v4040
    %v4442 = vsel %vm4439, %v4425, %v4042
    %v4443 = vsel %vm4439, %v4426, %v4044
    %v4444 = vsel %vm4439, %v4427, %v4046
    %v4445 = vsel %vm4439, %v4428, %v4048
    %v4446 = vsel %vm4439, %v4429, %v4050
    %v4447 = vsel %vm4439, %v4430, %v4052
    %v4448 = vsel %vm4439, %v4431, %v4054
    %v4449 = vsel %vm4439, %v4432, %v4056
    %v4450 = vsel %vm4439, %v4433, %v4058
    %v4451 = vsel %vm4439, %v4434, %v4060
    %v4452 = vsel %vm4439, %v4435, %v4062
    %v4453 = vsel %vm4439, %v4436, %v4064
    %v4454 = vsel %vm4439, %v4437, %v4066
    %v4455 = vsel %vm4439, %v4438, %v4068
    %vm4456 = vcmask 97280
    %v4457 = vsel %vm4456, %v4440, %v4102
    %v4458 = vsel %vm4456, %v4441, %v4104
    %v4459 = vsel %vm4456, %v4442, %v4106
    %v4460 = vsel %vm4456, %v4443, %v4108
    %v4461 = vsel %vm4456, %v4444, %v4110
    %v4462 = vsel %vm4456, %v4445, %v4112
    %v4463 = vsel %vm4456, %v4446, %v4114
    %v4464 = vsel %vm4456, %v4447, %v4116
    %v4465 = vsel %vm4456, %v4448, %v4118
    %v4466 = vsel %vm4456, %v4449, %v4120
    %v4467 = vsel %vm4456, %v4450, %v4122
    %v4468 = vsel %vm4456, %v4451, %v4124
    %v4469 = vsel %vm4456, %v4452, %v4126
    %v4470 = vsel %vm4456, %v4453, %v4128
    %v4471 = vsel %vm4456, %v4454, %v4130
    %v4472 = vsel %vm4456, %v4455, %v4132
    %vm4473 = vcmask 121856
    %v4474 = vsel %vm4473, %v4457, %v4166
    %v4475 = vsel %vm4473, %v4458, %v4168
    %v4476 = vsel %vm4473, %v4459, %v4170
    %v4477 = vsel %vm4473, %v4460, %v4172
    %v4478 = vsel %vm4473, %v4461, %v4174
    %v4479 = vsel %vm4473, %v4462, %v4176
    %v4480 = vsel %vm4473, %v4463, %v4178
    %v4481 = vsel %vm4473, %v4464, %v4180
    %v4482 = vsel %vm4473, %v4465, %v4182
    %v4483 = vsel %vm4473, %v4466, %v4184
    %v4484 = vsel %vm4473, %v4467, %v4186
    %v4485 = vsel %vm4473, %v4468, %v4188
    %v4486 = vsel %vm4473, %v4469, %v4190
    %v4487 = vsel %vm4473, %v4470, %v4192
    %v4488 = vsel %vm4473, %v4471, %v4194
    %v4489 = vsel %vm4473, %v4472, %v4196
    %vm4490 = vcmask 146432
    %v4491 = vsel %vm4490, %v4474, %v4230
    %v4492 = vsel %vm4490, %v4475, %v4232
    %v4493 = vsel %vm4490, %v4476, %v4234
    %v4494 = vsel %vm4490, %v4477, %v4236
    %v4495 = vsel %vm4490, %v4478, %v4238
    %v4496 = vsel %vm4490, %v4479, %v4240
    %v4497 = vsel %vm4490, %v4480, %v4242
    %v4498 = vsel %vm4490, %v4481, %v4244
    %v4499 = vsel %vm4490, %v4482, %v4246
    %v4500 = vsel %vm4490, %v4483, %v4248
    %v4501 = vsel %vm4490, %v4484, %v4250
    %v4502 = vsel %vm4490, %v4485, %v4252
    %v4503 = vsel %vm4490, %v4486, %v4254
    %v4504 = vsel %vm4490, %v4487, %v4256
    %v4505 = vsel %vm4490, %v4488, %v4258
    %v4506 = vsel %vm4490, %v4489, %v4260
    %vm4507 = vcmask 171008
    %v4508 = vsel %vm4507, %v4491, %v4294
    %v4509 = vsel %vm4507, %v4492, %v4296
    %v4510 = vsel %vm4507, %v4493, %v4298
    %v4511 = vsel %vm4507, %v4494, %v4300
    %v4512 = vsel %vm4507, %v4495, %v4302
    %v4513 = vsel %vm4507, %v4496, %v4304
    %v4514 = vsel %vm4507, %v4497, %v4306
    %v4515 = vsel %vm4507, %v4498, %v4308
    %v4516 = vsel %vm4507, %v4499, %v4310
    %v4517 = vsel %vm4507, %v4500, %v4312
    %v4518 = vsel %vm4507, %v4501, %v4314
    %v4519 = vsel %vm4507, %v4502, %v4316
    %v4520 = vsel %vm4507, %v4503, %v4318
    %v4521 = vsel %vm4507, %v4504, %v4320
    %v4522 = vsel %vm4507, %v4505, %v4322
    %v4523 = vsel %vm4507, %v4506, %v4324
    %vm4524 = vcmask 195584
    %v4525 = vsel %vm4524, %v4508, %v4358
    %v4526 = vsel %vm4524, %v4509, %v4360
    %v4527 = vsel %vm4524, %v4510, %v4362
    %v4528 = vsel %vm4524, %v4511, %v4364
    %v4529 = vsel %vm4524, %v4512, %v4366
    %v4530 = vsel %vm4524, %v4513, %v4368
    %v4531 = vsel %vm4524, %v4514, %v4370
    %v4532 = vsel %vm4524, %v4515, %v4372
    %v4533 = vsel %vm4524, %v4516, %v4374
    %v4534 = vsel %vm4524, %v4517, %v4376
    %v4535 = vsel %vm4524, %v4518, %v4378
    %v4536 = vsel %vm4524, %v4519, %v4380
    %v4537 = vsel %vm4524, %v4520, %v4382
    %v4538 = vsel %vm4524, %v4521, %v4384
    %v4539 = vsel %vm4524, %v4522, %v4386
    %v4540 = vsel %vm4524, %v4523, %v4388
    %v4541 = vpack.c.bf16 %v4526, %v4525
    %v4542 = vpack.c.bf16 %v4528, %v4527
    %v4543 = vpack.c.bf16 %v4530, %v4529
    %v4544 = vpack.c.bf16 %v4532, %v4531
    %v4545 = vpack.c.bf16 %v4534, %v4533
    %v4546 = vpack.c.bf16 %v4536, %v4535
    %v4547 = vpack.c.bf16 %v4538, %v4537
    %v4548 = vpack.c.bf16 %v4540, %v4539
    %v4549 = vld [vmem:[#allocation4] sm:$0xf]
    %v4550 = vld [vmem:[#allocation4 + $0x4] sm:$0xf]
    %v4551 = vld [vmem:[#allocation4 + $0x8] sm:$0xf]
    %v4552 = vld [vmem:[#allocation4 + $0xc] sm:$0x3]
    %v4553 = vld [vmem:[#allocation6] sm:$0x1]
    %v4555 = vlaneseq
    %v4556 = vshrl.u32 %v4555, 7
    %v4557 = vsub.s32 0, %v4556
    %v4558 = vrot.slane %v4553, %v4557
    %v4564 = vunpack.c.l.b16 %v4549
    %v4565 = vunpack.c.l.b16 %v4550
    %v4566 = vunpack.c.l.b16 %v4551
    %v4567 = vunpack.c.l.b16 %v4552
    %v4568 = vpack.c.b16 %v4565, %v4564
    %v4569 = vpack.c.b16 %v4567, %v4566
    %vm4571 = vcmask 220160
    %v4573 = vsel %vm4571, %v4541, 0
    %v4576 = vsel %vm4571, %v4542, 0
    %v4579 = vsel %vm4571, %v4543, 0
    %v4582 = vsel %vm4571, %v4544, 0
    %v4585 = vsel %vm4571, %v4545, 0
    %v4588 = vsel %vm4571, %v4546, 0
    %v4591 = vsel %vm4571, %v4547, 0
    %v4594 = vsel %vm4571, %v4548, 0
    %vm4596 = vcmask 1044480
    %vm4597 = vcmask 1045504
    %v4598 = vsel %vm4596, 4294967295, 65535
    %v4599 = vsel %vm4597, %v4598, 0
    %v4601 = vand.u32 %v4569, %v4599
    %4603 = vmatprep.subr.bf16.mxu0 0
    %4604 = vmatpush1.bf16.msra.mxu0 0
    %4605 = vmatprep.subr.bf16.mxu0 0
    %4606 = vmatpush1.bf16.msra.mxu0 0
    %4607 = vmatprep.subr.bf16.mxu0 0
    %4608 = vmatpush1.bf16.msra.mxu0 0
    %4609 = vmatprep.subr.bf16.mxu0 0
    %4610 = vmatpush1.bf16.msra.mxu0 0
    %4611 = vmatprep.subr.bf16.mxu0 0
    %4612 = vmatpush1.bf16.msra.mxu0 0
    %4613 = vmatprep.subr.bf16.mxu0 0
    %4614 = vmatpush1.bf16.msra.mxu0 0
    %4615 = vmatprep.subr.bf16.mxu0 0
    %4616 = vmatpush1.bf16.msra.mxu0 %v4601
    %4617 = vmatprep.subr.bf16.mxu0 0
    %4618 = vmatpush1.bf16.msra.mxu0 %v4568
    %4619 = vmatprep.subr.bf16.mxu0 0
    %4620 = vmatpush2.bf16.msra.mxu0 0
    %4621 = vmatprep.subr.bf16.mxu0 0
    %4622 = vmatpush2.bf16.msra.mxu0 0
    %4623 = vmatprep.subr.bf16.mxu0 0
    %4624 = vmatpush2.bf16.msra.mxu0 0
    %4625 = vmatprep.subr.bf16.mxu0 0
    %4626 = vmatpush2.bf16.msra.mxu0 0
    %4627 = vmatprep.subr.bf16.mxu0 0
    %4628 = vmatpush2.bf16.msra.mxu0 0
    %4629 = vmatprep.subr.bf16.mxu0 0
    %4630 = vmatpush2.bf16.msra.mxu0 0
    %4631 = vmatprep.subr.bf16.mxu0 0
    %4632 = vmatpush2.bf16.msra.mxu0 0
    %4633 = vmatprep.subr.bf16.mxu0 0
    %4634 = vmatpush2.bf16.msra.mxu0 0
    %4635 = vmatprep.mubr.bf16.mxu0 0
    %4636 = vmatmul.mubr.bf16.gmra.mxu0 %v4573
    %v4637 = vpop.f32.mrf.mxu0
    %v4638 = vadd.f32 %v4558, %v4637
    %v4639 = vpop.f32.mrf.mxu0
    %v4640 = vpop.f32.mrf.mxu0
    %v4641 = vadd.f32 %v4558, %v4640
    %v4642 = vpop.f32.mrf.mxu0
    %4643 = vmatprep.mubr.bf16.mxu0 0
    %4644 = vmatmul.mubr.bf16.gmra.mxu0 %v4576
    %v4645 = vpop.f32.mrf.mxu0
    %v4646 = vadd.f32 %v4558, %v4645
    %v4647 = vpop.f32.mrf.mxu0
    %v4648 = vpop.f32.mrf.mxu0
    %v4649 = vadd.f32 %v4558, %v4648
    %v4650 = vpop.f32.mrf.mxu0
    %4651 = vmatprep.mubr.bf16.mxu0 0
    %4652 = vmatmul.mubr.bf16.gmra.mxu0 %v4579
    %v4653 = vpop.f32.mrf.mxu0
    %v4654 = vadd.f32 %v4558, %v4653
    %v4655 = vpop.f32.mrf.mxu0
    %v4656 = vpop.f32.mrf.mxu0
    %v4657 = vadd.f32 %v4558, %v4656
    %v4658 = vpop.f32.mrf.mxu0
    %4659 = vmatprep.mubr.bf16.mxu0 0
    %4660 = vmatmul.mubr.bf16.gmra.mxu0 %v4582
    %v4661 = vpop.f32.mrf.mxu0
    %v4662 = vadd.f32 %v4558, %v4661
    %v4663 = vpop.f32.mrf.mxu0
    %v4664 = vpop.f32.mrf.mxu0
    %v4665 = vadd.f32 %v4558, %v4664
    %v4666 = vpop.f32.mrf.mxu0
    %4667 = vmatprep.mubr.bf16.mxu0 0
    %4668 = vmatmul.mubr.bf16.gmra.mxu0 %v4585
    %v4669 = vpop.f32.mrf.mxu0
    %v4670 = vadd.f32 %v4558, %v4669
    %v4671 = vpop.f32.mrf.mxu0
    %v4672 = vpop.f32.mrf.mxu0
    %v4673 = vadd.f32 %v4558, %v4672
    %v4674 = vpop.f32.mrf.mxu0
    %4675 = vmatprep.mubr.bf16.mxu0 0
    %4676 = vmatmul.mubr.bf16.gmra.mxu0 %v4588
    %v4677 = vpop.f32.mrf.mxu0
    %v4678 = vadd.f32 %v4558, %v4677
    %v4679 = vpop.f32.mrf.mxu0
    %v4680 = vpop.f32.mrf.mxu0
    %v4681 = vadd.f32 %v4558, %v4680
    %v4682 = vpop.f32.mrf.mxu0
    %4683 = vmatprep.mubr.bf16.mxu0 0
    %4684 = vmatmul.mubr.bf16.gmra.mxu0 %v4591
    %v4685 = vpop.f32.mrf.mxu0
    %v4686 = vadd.f32 %v4558, %v4685
    %v4687 = vpop.f32.mrf.mxu0
    %v4688 = vpop.f32.mrf.mxu0
    %v4689 = vadd.f32 %v4558, %v4688
    %v4690 = vpop.f32.mrf.mxu0
    %4691 = vmatprep.mubr.bf16.mxu0 0
    %4692 = vmatmul.mubr.bf16.gmra.mxu0 %v4594
    %v4693 = vpop.f32.mrf.mxu0
    %v4694 = vadd.f32 %v4558, %v4693
    %v4695 = vpop.f32.mrf.mxu0
    %v4696 = vpop.f32.mrf.mxu0
    %v4697 = vadd.f32 %v4558, %v4696
    %v4698 = vpop.f32.mrf.mxu0
    %4699 = vdwg.mxu0
    %v4700 = vmax.f32 %v4638, 0.0
    %v4701 = vmax.f32 %v4641, 0.0
    %v4702 = vmax.f32 %v4646, 0.0
    %v4703 = vmax.f32 %v4649, 0.0
    %v4704 = vmax.f32 %v4654, 0.0
    %v4705 = vmax.f32 %v4657, 0.0
    %v4706 = vmax.f32 %v4662, 0.0
    %v4707 = vmax.f32 %v4665, 0.0
    %v4708 = vmax.f32 %v4670, 0.0
    %v4709 = vmax.f32 %v4673, 0.0
    %v4710 = vmax.f32 %v4678, 0.0
    %v4711 = vmax.f32 %v4681, 0.0
    %v4712 = vmax.f32 %v4686, 0.0
    %v4713 = vmax.f32 %v4689, 0.0
    %v4714 = vmax.f32 %v4694, 0.0
    %v4715 = vmax.f32 %v4697, 0.0
    %4716 = vst [vmem:[%s10] sm:$0xff] %v4700
    %4717 = vst [vmem:[%s10 + $0x8] sm:$0xff] %v4701
    %4718 = vst [vmem:[%s10 + $0x10] sm:$0xff] %v4702
    %4719 = vst [vmem:[%s10 + $0x18] sm:$0xff] %v4703
    %4720 = vst [vmem:[%s10 + $0x20] sm:$0xff] %v4704
    %4721 = vst [vmem:[%s10 + $0x28] sm:$0xff] %v4705
    %4722 = vst [vmem:[%s10 + $0x30] sm:$0xff] %v4706
    %4723 = vst [vmem:[%s10 + $0x38] sm:$0xff] %v4707
    %4724 = vst [vmem:[%s10 + $0x40] sm:$0xff] %v4708
    %4725 = vst [vmem:[%s10 + $0x48] sm:$0xff] %v4709
    %4726 = vst [vmem:[%s10 + $0x50] sm:$0xff] %v4710
    %4727 = vst [vmem:[%s10 + $0x58] sm:$0xff] %v4711
    %4728 = vst [vmem:[%s10 + $0x60] sm:$0xff] %v4712
    %4729 = vst [vmem:[%s10 + $0x68] sm:$0xff] %v4713
    %4730 = vst [vmem:[%s10 + $0x70] sm:$0xff] %v4714
    %4731 = vst [vmem:[%s10 + $0x78] sm:$0xff] %v4715
    %v4732 = vpack.c.bf16 %v4701, %v4700
    %v4733 = vpack.c.bf16 %v4703, %v4702
    %v4734 = vpack.c.bf16 %v4705, %v4704
    %v4735 = vpack.c.bf16 %v4707, %v4706
    %v4736 = vpack.c.bf16 %v4709, %v4708
    %v4737 = vpack.c.bf16 %v4711, %v4710
    %v4738 = vpack.c.bf16 %v4713, %v4712
    %v4739 = vpack.c.bf16 %v4715, %v4714
    %v4740 = vld [vmem:[#allocation7] sm:$0xf]
    %v4741 = vld [vmem:[#allocation7 + $0x4] sm:$0xf]
    %v4742 = vld [vmem:[#allocation7 + $0x8] sm:$0xf]
    %v4743 = vld [vmem:[#allocation7 + $0xc] sm:$0xf]
    %v4748 = vunpack.c.l.b16 %v4740
    %v4749 = vunpack.c.l.b16 %v4741
    %v4750 = vunpack.c.l.b16 %v4742
    %v4751 = vunpack.c.l.b16 %v4743
    %v4752 = vpack.c.b16 %v4749, %v4748
    %v4753 = vpack.c.b16 %v4751, %v4750
    %4756 = vmatprep.subr.bf16.mxu0 0
    %4757 = vmatpush1.bf16.msra.mxu0 %v4739
    %4758 = vmatprep.subr.bf16.mxu0 0
    %4759 = vmatpush1.bf16.msra.mxu0 %v4738
    %4760 = vmatprep.subr.bf16.mxu0 0
    %4761 = vmatpush1.bf16.msra.mxu0 %v4737
    %4762 = vmatprep.subr.bf16.mxu0 0
    %4763 = vmatpush1.bf16.msra.mxu0 %v4736
    %4764 = vmatprep.subr.bf16.mxu0 0
    %4765 = vmatpush1.bf16.msra.mxu0 %v4735
    %4766 = vmatprep.subr.bf16.mxu0 0
    %4767 = vmatpush1.bf16.msra.mxu0 %v4734
    %4768 = vmatprep.subr.bf16.mxu0 0
    %4769 = vmatpush1.bf16.msra.mxu0 %v4733
    %4770 = vmatprep.subr.bf16.mxu0 0
    %4771 = vmatpush1.bf16.msra.mxu0 %v4732
    %4772 = vmatprep.subr.bf16.mxu0 0
    %4773 = vmatpush2.bf16.msra.mxu0 0
    %4774 = vmatprep.subr.bf16.mxu0 0
    %4775 = vmatpush2.bf16.msra.mxu0 0
    %4776 = vmatprep.subr.bf16.mxu0 0
    %4777 = vmatpush2.bf16.msra.mxu0 0
    %4778 = vmatprep.subr.bf16.mxu0 0
    %4779 = vmatpush2.bf16.msra.mxu0 0
    %4780 = vmatprep.subr.bf16.mxu0 0
    %4781 = vmatpush2.bf16.msra.mxu0 0
    %4782 = vmatprep.subr.bf16.mxu0 0
    %4783 = vmatpush2.bf16.msra.mxu0 0
    %4784 = vmatprep.subr.bf16.mxu0 0
    %4785 = vmatpush2.bf16.msra.mxu0 0
    %4786 = vmatprep.subr.bf16.mxu0 0
    %4787 = vmatpush2.bf16.msra.mxu0 0
    %4788 = vmatprep.mubr.bf16.mxu0 0
    %4789 = vmatmul.mubr.bf16.gmra.mxu0 %v4752
    %v4790 = vpop.f32.mrf.mxu0
    %v4791 = vadd.f32 0.0, %v4790
    %v4792 = vpop.f32.mrf.mxu0
    %v4793 = vpop.f32.mrf.mxu0
    %v4794 = vadd.f32 0.0, %v4793
    %v4795 = vpop.f32.mrf.mxu0
    %4796 = vmatprep.mubr.bf16.mxu0 0
    %4797 = vmatmul.mubr.bf16.gmra.mxu0 %v4753
    %v4798 = vpop.f32.mrf.mxu0
    %v4799 = vadd.f32 0.0, %v4798
    %v4800 = vpop.f32.mrf.mxu0
    %v4801 = vpop.f32.mrf.mxu0
    %v4802 = vadd.f32 0.0, %v4801
    %v4803 = vpop.f32.mrf.mxu0
    %4804 = vdwg.mxu0
    %s4805 = scalar_lea.vmem [#allocation7], 16
    %v4806 = vld [vmem:[%s4805] sm:$0xf]
    %v4807 = vld [vmem:[%s4805 + $0x4] sm:$0xf]
    %v4808 = vld [vmem:[%s4805 + $0x8] sm:$0xf]
    %v4809 = vld [vmem:[%s4805 + $0xc] sm:$0xf]
    %v4814 = vunpack.c.l.b16 %v4806
    %v4815 = vunpack.c.l.b16 %v4807
    %v4816 = vunpack.c.l.b16 %v4808
    %v4817 = vunpack.c.l.b16 %v4809
    %v4818 = vpack.c.b16 %v4815, %v4814
    %v4819 = vpack.c.b16 %v4817, %v4816
    %4822 = vmatprep.subr.bf16.mxu0 0
    %4823 = vmatpush1.bf16.msra.mxu0 %v4739
    %4824 = vmatprep.subr.bf16.mxu0 0
    %4825 = vmatpush1.bf16.msra.mxu0 %v4738
    %4826 = vmatprep.subr.bf16.mxu0 0
    %4827 = vmatpush1.bf16.msra.mxu0 %v4737
    %4828 = vmatprep.subr.bf16.mxu0 0
    %4829 = vmatpush1.bf16.msra.mxu0 %v4736
    %4830 = vmatprep.subr.bf16.mxu0 0
    %4831 = vmatpush1.bf16.msra.mxu0 %v4735
    %4832 = vmatprep.subr.bf16.mxu0 0
    %4833 = vmatpush1.bf16.msra.mxu0 %v4734
    %4834 = vmatprep.subr.bf16.mxu0 0
    %4835 = vmatpush1.bf16.msra.mxu0 %v4733
    %4836 = vmatprep.subr.bf16.mxu0 0
    %4837 = vmatpush1.bf16.msra.mxu0 %v4732
    %4838 = vmatprep.subr.bf16.mxu0 0
    %4839 = vmatpush2.bf16.msra.mxu0 0
    %4840 = vmatprep.subr.bf16.mxu0 0
    %4841 = vmatpush2.bf16.msra.mxu0 0
    %4842 = vmatprep.subr.bf16.mxu0 0
    %4843 = vmatpush2.bf16.msra.mxu0 0
    %4844 = vmatprep.subr.bf16.mxu0 0
    %4845 = vmatpush2.bf16.msra.mxu0 0
    %4846 = vmatprep.subr.bf16.mxu0 0
    %4847 = vmatpush2.bf16.msra.mxu0 0
    %4848 = vmatprep.subr.bf16.mxu0 0
    %4849 = vmatpush2.bf16.msra.mxu0 0
    %4850 = vmatprep.subr.bf16.mxu0 0
    %4851 = vmatpush2.bf16.msra.mxu0 0
    %4852 = vmatprep.subr.bf16.mxu0 0
    %4853 = vmatpush2.bf16.msra.mxu0 0
    %4854 = vmatprep.mubr.bf16.mxu0 0
    %4855 = vmatmul.mubr.bf16.gmra.mxu0 %v4818
    %v4856 = vpop.f32.mrf.mxu0
    %v4857 = vadd.f32 0.0, %v4856
    %v4858 = vpop.f32.mrf.mxu0
    %v4859 = vpop.f32.mrf.mxu0
    %v4860 = vadd.f32 0.0, %v4859
    %v4861 = vpop.f32.mrf.mxu0
    %4862 = vmatprep.mubr.bf16.mxu0 0
    %4863 = vmatmul.mubr.bf16.gmra.mxu0 %v4819
    %v4864 = vpop.f32.mrf.mxu0
    %v4865 = vadd.f32 0.0, %v4864
    %v4866 = vpop.f32.mrf.mxu0
    %v4867 = vpop.f32.mrf.mxu0
    %v4868 = vadd.f32 0.0, %v4867
    %v4869 = vpop.f32.mrf.mxu0
    %4870 = vdwg.mxu0
    %s4871 = scalar_lea.vmem [#allocation7], 32
    %v4872 = vld [vmem:[%s4871] sm:$0xf]
    %v4873 = vld [vmem:[%s4871 + $0x4] sm:$0xf]
    %v4874 = vld [vmem:[%s4871 + $0x8] sm:$0xf]
    %v4875 = vld [vmem:[%s4871 + $0xc] sm:$0xf]
    %v4880 = vunpack.c.l.b16 %v4872
    %v4881 = vunpack.c.l.b16 %v4873
    %v4882 = vunpack.c.l.b16 %v4874
    %v4883 = vunpack.c.l.b16 %v4875
    %v4884 = vpack.c.b16 %v4881, %v4880
    %v4885 = vpack.c.b16 %v4883, %v4882
    %4888 = vmatprep.subr.bf16.mxu0 0
    %4889 = vmatpush1.bf16.msra.mxu0 %v4739
    %4890 = vmatprep.subr.bf16.mxu0 0
    %4891 = vmatpush1.bf16.msra.mxu0 %v4738
    %4892 = vmatprep.subr.bf16.mxu0 0
    %4893 = vmatpush1.bf16.msra.mxu0 %v4737
    %4894 = vmatprep.subr.bf16.mxu0 0
    %4895 = vmatpush1.bf16.msra.mxu0 %v4736
    %4896 = vmatprep.subr.bf16.mxu0 0
    %4897 = vmatpush1.bf16.msra.mxu0 %v4735
    %4898 = vmatprep.subr.bf16.mxu0 0
    %4899 = vmatpush1.bf16.msra.mxu0 %v4734
    %4900 = vmatprep.subr.bf16.mxu0 0
    %4901 = vmatpush1.bf16.msra.mxu0 %v4733
    %4902 = vmatprep.subr.bf16.mxu0 0
    %4903 = vmatpush1.bf16.msra.mxu0 %v4732
    %4904 = vmatprep.subr.bf16.mxu0 0
    %4905 = vmatpush2.bf16.msra.mxu0 0
    %4906 = vmatprep.subr.bf16.mxu0 0
    %4907 = vmatpush2.bf16.msra.mxu0 0
    %4908 = vmatprep.subr.bf16.mxu0 0
    %4909 = vmatpush2.bf16.msra.mxu0 0
    %4910 = vmatprep.subr.bf16.mxu0 0
    %4911 = vmatpush2.bf16.msra.mxu0 0
    %4912 = vmatprep.subr.bf16.mxu0 0
    %4913 = vmatpush2.bf16.msra.mxu0 0
    %4914 = vmatprep.subr.bf16.mxu0 0
    %4915 = vmatpush2.bf16.msra.mxu0 0
    %4916 = vmatprep.subr.bf16.mxu0 0
    %4917 = vmatpush2.bf16.msra.mxu0 0
    %4918 = vmatprep.subr.bf16.mxu0 0
    %4919 = vmatpush2.bf16.msra.mxu0 0
    %4920 = vmatprep.mubr.bf16.mxu0 0
    %4921 = vmatmul.mubr.bf16.gmra.mxu0 %v4884
    %v4922 = vpop.f32.mrf.mxu0
    %v4923 = vadd.f32 0.0, %v4922
    %v4924 = vpop.f32.mrf.mxu0
    %v4925 = vpop.f32.mrf.mxu0
    %v4926 = vadd.f32 0.0, %v4925
    %v4927 = vpop.f32.mrf.mxu0
    %4928 = vmatprep.mubr.bf16.mxu0 0
    %4929 = vmatmul.mubr.bf16.gmra.mxu0 %v4885
    %v4930 = vpop.f32.mrf.mxu0
    %v4931 = vadd.f32 0.0, %v4930
    %v4932 = vpop.f32.mrf.mxu0
    %v4933 = vpop.f32.mrf.mxu0
    %v4934 = vadd.f32 0.0, %v4933
    %v4935 = vpop.f32.mrf.mxu0
    %4936 = vdwg.mxu0
    %s4937 = scalar_lea.vmem [#allocation7], 48
    %v4938 = vld [vmem:[%s4937] sm:$0xf]
    %v4939 = vld [vmem:[%s4937 + $0x4] sm:$0xf]
    %v4940 = vld [vmem:[%s4937 + $0x8] sm:$0xf]
    %v4941 = vld [vmem:[%s4937 + $0xc] sm:$0xf]
    %v4946 = vunpack.c.l.b16 %v4938
    %v4947 = vunpack.c.l.b16 %v4939
    %v4948 = vunpack.c.l.b16 %v4940
    %v4949 = vunpack.c.l.b16 %v4941
    %v4950 = vpack.c.b16 %v4947, %v4946
    %v4951 = vpack.c.b16 %v4949, %v4948
    %4954 = vmatprep.subr.bf16.mxu0 0
    %4955 = vmatpush1.bf16.msra.mxu0 %v4739
    %4956 = vmatprep.subr.bf16.mxu0 0
    %4957 = vmatpush1.bf16.msra.mxu0 %v4738
    %4958 = vmatprep.subr.bf16.mxu0 0
    %4959 = vmatpush1.bf16.msra.mxu0 %v4737
    %4960 = vmatprep.subr.bf16.mxu0 0
    %4961 = vmatpush1.bf16.msra.mxu0 %v4736
    %4962 = vmatprep.subr.bf16.mxu0 0
    %4963 = vmatpush1.bf16.msra.mxu0 %v4735
    %4964 = vmatprep.subr.bf16.mxu0 0
    %4965 = vmatpush1.bf16.msra.mxu0 %v4734
    %4966 = vmatprep.subr.bf16.mxu0 0
    %4967 = vmatpush1.bf16.msra.mxu0 %v4733
    %4968 = vmatprep.subr.bf16.mxu0 0
    %4969 = vmatpush1.bf16.msra.mxu0 %v4732
    %4970 = vmatprep.subr.bf16.mxu0 0
    %4971 = vmatpush2.bf16.msra.mxu0 0
    %4972 = vmatprep.subr.bf16.mxu0 0
    %4973 = vmatpush2.bf16.msra.mxu0 0
    %4974 = vmatprep.subr.bf16.mxu0 0
    %4975 = vmatpush2.bf16.msra.mxu0 0
    %4976 = vmatprep.subr.bf16.mxu0 0
    %4977 = vmatpush2.bf16.msra.mxu0 0
    %4978 = vmatprep.subr.bf16.mxu0 0
    %4979 = vmatpush2.bf16.msra.mxu0 0
    %4980 = vmatprep.subr.bf16.mxu0 0
    %4981 = vmatpush2.bf16.msra.mxu0 0
    %4982 = vmatprep.subr.bf16.mxu0 0
    %4983 = vmatpush2.bf16.msra.mxu0 0
    %4984 = vmatprep.subr.bf16.mxu0 0
    %4985 = vmatpush2.bf16.msra.mxu0 0
    %4986 = vmatprep.mubr.bf16.mxu0 0
    %4987 = vmatmul.mubr.bf16.gmra.mxu0 %v4950
    %v4988 = vpop.f32.mrf.mxu0
    %v4989 = vadd.f32 0.0, %v4988
    %v4990 = vpop.f32.mrf.mxu0
    %v4991 = vpop.f32.mrf.mxu0
    %v4992 = vadd.f32 0.0, %v4991
    %v4993 = vpop.f32.mrf.mxu0
    %4994 = vmatprep.mubr.bf16.mxu0 0
    %4995 = vmatmul.mubr.bf16.gmra.mxu0 %v4951
    %v4996 = vpop.f32.mrf.mxu0
    %v4997 = vadd.f32 0.0, %v4996
    %v4998 = vpop.f32.mrf.mxu0
    %v4999 = vpop.f32.mrf.mxu0
    %v5000 = vadd.f32 0.0, %v4999
    %v5001 = vpop.f32.mrf.mxu0
    %5002 = vdwg.mxu0
    %s5003 = scalar_lea.vmem [#allocation7], 64
    %v5004 = vld [vmem:[%s5003] sm:$0xf]
    %v5005 = vld [vmem:[%s5003 + $0x4] sm:$0xf]
    %v5006 = vld [vmem:[%s5003 + $0x8] sm:$0xf]
    %v5007 = vld [vmem:[%s5003 + $0xc] sm:$0xf]
    %v5012 = vunpack.c.l.b16 %v5004
    %v5013 = vunpack.c.l.b16 %v5005
    %v5014 = vunpack.c.l.b16 %v5006
    %v5015 = vunpack.c.l.b16 %v5007
    %v5016 = vpack.c.b16 %v5013, %v5012
    %v5017 = vpack.c.b16 %v5015, %v5014
    %5020 = vmatprep.subr.bf16.mxu0 0
    %5021 = vmatpush1.bf16.msra.mxu0 %v4739
    %5022 = vmatprep.subr.bf16.mxu0 0
    %5023 = vmatpush1.bf16.msra.mxu0 %v4738
    %5024 = vmatprep.subr.bf16.mxu0 0
    %5025 = vmatpush1.bf16.msra.mxu0 %v4737
    %5026 = vmatprep.subr.bf16.mxu0 0
    %5027 = vmatpush1.bf16.msra.mxu0 %v4736
    %5028 = vmatprep.subr.bf16.mxu0 0
    %5029 = vmatpush1.bf16.msra.mxu0 %v4735
    %5030 = vmatprep.subr.bf16.mxu0 0
    %5031 = vmatpush1.bf16.msra.mxu0 %v4734
    %5032 = vmatprep.subr.bf16.mxu0 0
    %5033 = vmatpush1.bf16.msra.mxu0 %v4733
    %5034 = vmatprep.subr.bf16.mxu0 0
    %5035 = vmatpush1.bf16.msra.mxu0 %v4732
    %5036 = vmatprep.subr.bf16.mxu0 0
    %5037 = vmatpush2.bf16.msra.mxu0 0
    %5038 = vmatprep.subr.bf16.mxu0 0
    %5039 = vmatpush2.bf16.msra.mxu0 0
    %5040 = vmatprep.subr.bf16.mxu0 0
    %5041 = vmatpush2.bf16.msra.mxu0 0
    %5042 = vmatprep.subr.bf16.mxu0 0
    %5043 = vmatpush2.bf16.msra.mxu0 0
    %5044 = vmatprep.subr.bf16.mxu0 0
    %5045 = vmatpush2.bf16.msra.mxu0 0
    %5046 = vmatprep.subr.bf16.mxu0 0
    %5047 = vmatpush2.bf16.msra.mxu0 0
    %5048 = vmatprep.subr.bf16.mxu0 0
    %5049 = vmatpush2.bf16.msra.mxu0 0
    %5050 = vmatprep.subr.bf16.mxu0 0
    %5051 = vmatpush2.bf16.msra.mxu0 0
    %5052 = vmatprep.mubr.bf16.mxu0 0
    %5053 = vmatmul.mubr.bf16.gmra.mxu0 %v5016
    %v5054 = vpop.f32.mrf.mxu0
    %v5055 = vadd.f32 0.0, %v5054
    %v5056 = vpop.f32.mrf.mxu0
    %v5057 = vpop.f32.mrf.mxu0
    %v5058 = vadd.f32 0.0, %v5057
    %v5059 = vpop.f32.mrf.mxu0
    %5060 = vmatprep.mubr.bf16.mxu0 0
    %5061 = vmatmul.mubr.bf16.gmra.mxu0 %v5017
    %v5062 = vpop.f32.mrf.mxu0
    %v5063 = vadd.f32 0.0, %v5062
    %v5064 = vpop.f32.mrf.mxu0
    %v5065 = vpop.f32.mrf.mxu0
    %v5066 = vadd.f32 0.0, %v5065
    %v5067 = vpop.f32.mrf.mxu0
    %5068 = vdwg.mxu0
    %s5069 = scalar_lea.vmem [#allocation7], 80
    %v5070 = vld [vmem:[%s5069] sm:$0xf]
    %v5071 = vld [vmem:[%s5069 + $0x4] sm:$0xf]
    %v5072 = vld [vmem:[%s5069 + $0x8] sm:$0xf]
    %v5073 = vld [vmem:[%s5069 + $0xc] sm:$0xf]
    %v5078 = vunpack.c.l.b16 %v5070
    %v5079 = vunpack.c.l.b16 %v5071
    %v5080 = vunpack.c.l.b16 %v5072
    %v5081 = vunpack.c.l.b16 %v5073
    %v5082 = vpack.c.b16 %v5079, %v5078
    %v5083 = vpack.c.b16 %v5081, %v5080
    %5086 = vmatprep.subr.bf16.mxu0 0
    %5087 = vmatpush1.bf16.msra.mxu0 %v4739
    %5088 = vmatprep.subr.bf16.mxu0 0
    %5089 = vmatpush1.bf16.msra.mxu0 %v4738
    %5090 = vmatprep.subr.bf16.mxu0 0
    %5091 = vmatpush1.bf16.msra.mxu0 %v4737
    %5092 = vmatprep.subr.bf16.mxu0 0
    %5093 = vmatpush1.bf16.msra.mxu0 %v4736
    %5094 = vmatprep.subr.bf16.mxu0 0
    %5095 = vmatpush1.bf16.msra.mxu0 %v4735
    %5096 = vmatprep.subr.bf16.mxu0 0
    %5097 = vmatpush1.bf16.msra.mxu0 %v4734
    %5098 = vmatprep.subr.bf16.mxu0 0
    %5099 = vmatpush1.bf16.msra.mxu0 %v4733
    %5100 = vmatprep.subr.bf16.mxu0 0
    %5101 = vmatpush1.bf16.msra.mxu0 %v4732
    %5102 = vmatprep.subr.bf16.mxu0 0
    %5103 = vmatpush2.bf16.msra.mxu0 0
    %5104 = vmatprep.subr.bf16.mxu0 0
    %5105 = vmatpush2.bf16.msra.mxu0 0
    %5106 = vmatprep.subr.bf16.mxu0 0
    %5107 = vmatpush2.bf16.msra.mxu0 0
    %5108 = vmatprep.subr.bf16.mxu0 0
    %5109 = vmatpush2.bf16.msra.mxu0 0
    %5110 = vmatprep.subr.bf16.mxu0 0
    %5111 = vmatpush2.bf16.msra.mxu0 0
    %5112 = vmatprep.subr.bf16.mxu0 0
    %5113 = vmatpush2.bf16.msra.mxu0 0
    %5114 = vmatprep.subr.bf16.mxu0 0
    %5115 = vmatpush2.bf16.msra.mxu0 0
    %5116 = vmatprep.subr.bf16.mxu0 0
    %5117 = vmatpush2.bf16.msra.mxu0 0
    %5118 = vmatprep.mubr.bf16.mxu0 0
    %5119 = vmatmul.mubr.bf16.gmra.mxu0 %v5082
    %v5120 = vpop.f32.mrf.mxu0
    %v5121 = vadd.f32 0.0, %v5120
    %v5122 = vpop.f32.mrf.mxu0
    %v5123 = vpop.f32.mrf.mxu0
    %v5124 = vadd.f32 0.0, %v5123
    %v5125 = vpop.f32.mrf.mxu0
    %5126 = vmatprep.mubr.bf16.mxu0 0
    %5127 = vmatmul.mubr.bf16.gmra.mxu0 %v5083
    %v5128 = vpop.f32.mrf.mxu0
    %v5129 = vadd.f32 0.0, %v5128
    %v5130 = vpop.f32.mrf.mxu0
    %v5131 = vpop.f32.mrf.mxu0
    %v5132 = vadd.f32 0.0, %v5131
    %v5133 = vpop.f32.mrf.mxu0
    %5134 = vdwg.mxu0
    %s5135 = scalar_lea.vmem [#allocation7], 96
    %v5136 = vld [vmem:[%s5135] sm:$0xf]
    %v5137 = vld [vmem:[%s5135 + $0x4] sm:$0xf]
    %v5138 = vld [vmem:[%s5135 + $0x8] sm:$0xf]
    %v5139 = vld [vmem:[%s5135 + $0xc] sm:$0xf]
    %v5144 = vunpack.c.l.b16 %v5136
    %v5145 = vunpack.c.l.b16 %v5137
    %v5146 = vunpack.c.l.b16 %v5138
    %v5147 = vunpack.c.l.b16 %v5139
    %v5148 = vpack.c.b16 %v5145, %v5144
    %v5149 = vpack.c.b16 %v5147, %v5146
    %5152 = vmatprep.subr.bf16.mxu0 0
    %5153 = vmatpush1.bf16.msra.mxu0 %v4739
    %5154 = vmatprep.subr.bf16.mxu0 0
    %5155 = vmatpush1.bf16.msra.mxu0 %v4738
    %5156 = vmatprep.subr.bf16.mxu0 0
    %5157 = vmatpush1.bf16.msra.mxu0 %v4737
    %5158 = vmatprep.subr.bf16.mxu0 0
    %5159 = vmatpush1.bf16.msra.mxu0 %v4736
    %5160 = vmatprep.subr.bf16.mxu0 0
    %5161 = vmatpush1.bf16.msra.mxu0 %v4735
    %5162 = vmatprep.subr.bf16.mxu0 0
    %5163 = vmatpush1.bf16.msra.mxu0 %v4734
    %5164 = vmatprep.subr.bf16.mxu0 0
    %5165 = vmatpush1.bf16.msra.mxu0 %v4733
    %5166 = vmatprep.subr.bf16.mxu0 0
    %5167 = vmatpush1.bf16.msra.mxu0 %v4732
    %5168 = vmatprep.subr.bf16.mxu0 0
    %5169 = vmatpush2.bf16.msra.mxu0 0
    %5170 = vmatprep.subr.bf16.mxu0 0
    %5171 = vmatpush2.bf16.msra.mxu0 0
    %5172 = vmatprep.subr.bf16.mxu0 0
    %5173 = vmatpush2.bf16.msra.mxu0 0
    %5174 = vmatprep.subr.bf16.mxu0 0
    %5175 = vmatpush2.bf16.msra.mxu0 0
    %5176 = vmatprep.subr.bf16.mxu0 0
    %5177 = vmatpush2.bf16.msra.mxu0 0
    %5178 = vmatprep.subr.bf16.mxu0 0
    %5179 = vmatpush2.bf16.msra.mxu0 0
    %5180 = vmatprep.subr.bf16.mxu0 0
    %5181 = vmatpush2.bf16.msra.mxu0 0
    %5182 = vmatprep.subr.bf16.mxu0 0
    %5183 = vmatpush2.bf16.msra.mxu0 0
    %5184 = vmatprep.mubr.bf16.mxu0 0
    %5185 = vmatmul.mubr.bf16.gmra.mxu0 %v5148
    %v5186 = vpop.f32.mrf.mxu0
    %v5187 = vadd.f32 0.0, %v5186
    %v5188 = vpop.f32.mrf.mxu0
    %v5189 = vpop.f32.mrf.mxu0
    %v5190 = vadd.f32 0.0, %v5189
    %v5191 = vpop.f32.mrf.mxu0
    %5192 = vmatprep.mubr.bf16.mxu0 0
    %5193 = vmatmul.mubr.bf16.gmra.mxu0 %v5149
    %v5194 = vpop.f32.mrf.mxu0
    %v5195 = vadd.f32 0.0, %v5194
    %v5196 = vpop.f32.mrf.mxu0
    %v5197 = vpop.f32.mrf.mxu0
    %v5198 = vadd.f32 0.0, %v5197
    %v5199 = vpop.f32.mrf.mxu0
    %5200 = vdwg.mxu0
    %s5201 = scalar_lea.vmem [#allocation7], 112
    %v5202 = vld [vmem:[%s5201] sm:$0xf]
    %v5203 = vld [vmem:[%s5201 + $0x4] sm:$0xf]
    %v5204 = vld [vmem:[%s5201 + $0x8] sm:$0xf]
    %v5205 = vld [vmem:[%s5201 + $0xc] sm:$0xf]
    %v5210 = vunpack.c.l.b16 %v5202
    %v5211 = vunpack.c.l.b16 %v5203
    %v5212 = vunpack.c.l.b16 %v5204
    %v5213 = vunpack.c.l.b16 %v5205
    %v5214 = vpack.c.b16 %v5211, %v5210
    %v5215 = vpack.c.b16 %v5213, %v5212
    %5218 = vmatprep.subr.bf16.mxu0 0
    %5219 = vmatpush1.bf16.msra.mxu0 %v4739
    %5220 = vmatprep.subr.bf16.mxu0 0
    %5221 = vmatpush1.bf16.msra.mxu0 %v4738
    %5222 = vmatprep.subr.bf16.mxu0 0
    %5223 = vmatpush1.bf16.msra.mxu0 %v4737
    %5224 = vmatprep.subr.bf16.mxu0 0
    %5225 = vmatpush1.bf16.msra.mxu0 %v4736
    %5226 = vmatprep.subr.bf16.mxu0 0
    %5227 = vmatpush1.bf16.msra.mxu0 %v4735
    %5228 = vmatprep.subr.bf16.mxu0 0
    %5229 = vmatpush1.bf16.msra.mxu0 %v4734
    %5230 = vmatprep.subr.bf16.mxu0 0
    %5231 = vmatpush1.bf16.msra.mxu0 %v4733
    %5232 = vmatprep.subr.bf16.mxu0 0
    %5233 = vmatpush1.bf16.msra.mxu0 %v4732
    %5234 = vmatprep.subr.bf16.mxu0 0
    %5235 = vmatpush2.bf16.msra.mxu0 0
    %5236 = vmatprep.subr.bf16.mxu0 0
    %5237 = vmatpush2.bf16.msra.mxu0 0
    %5238 = vmatprep.subr.bf16.mxu0 0
    %5239 = vmatpush2.bf16.msra.mxu0 0
    %5240 = vmatprep.subr.bf16.mxu0 0
    %5241 = vmatpush2.bf16.msra.mxu0 0
    %5242 = vmatprep.subr.bf16.mxu0 0
    %5243 = vmatpush2.bf16.msra.mxu0 0
    %5244 = vmatprep.subr.bf16.mxu0 0
    %5245 = vmatpush2.bf16.msra.mxu0 0
    %5246 = vmatprep.subr.bf16.mxu0 0
    %5247 = vmatpush2.bf16.msra.mxu0 0
    %5248 = vmatprep.subr.bf16.mxu0 0
    %5249 = vmatpush2.bf16.msra.mxu0 0
    %5250 = vmatprep.mubr.bf16.mxu0 0
    %5251 = vmatmul.mubr.bf16.gmra.mxu0 %v5214
    %v5252 = vpop.f32.mrf.mxu0
    %v5253 = vadd.f32 0.0, %v5252
    %v5254 = vpop.f32.mrf.mxu0
    %v5255 = vpop.f32.mrf.mxu0
    %v5256 = vadd.f32 0.0, %v5255
    %v5257 = vpop.f32.mrf.mxu0
    %5258 = vmatprep.mubr.bf16.mxu0 0
    %5259 = vmatmul.mubr.bf16.gmra.mxu0 %v5215
    %v5260 = vpop.f32.mrf.mxu0
    %v5261 = vadd.f32 0.0, %v5260
    %v5262 = vpop.f32.mrf.mxu0
    %v5263 = vpop.f32.mrf.mxu0
    %v5264 = vadd.f32 0.0, %v5263
    %v5265 = vpop.f32.mrf.mxu0
    %5266 = vdwg.mxu0
    %s5267 = scalar_lea.vmem [#allocation7], 128
    %v5268 = vld [vmem:[%s5267] sm:$0xf]
    %v5269 = vld [vmem:[%s5267 + $0x4] sm:$0xf]
    %v5270 = vld [vmem:[%s5267 + $0x8] sm:$0xf]
    %v5271 = vld [vmem:[%s5267 + $0xc] sm:$0xf]
    %v5276 = vunpack.c.l.b16 %v5268
    %v5277 = vunpack.c.l.b16 %v5269
    %v5278 = vunpack.c.l.b16 %v5270
    %v5279 = vunpack.c.l.b16 %v5271
    %v5280 = vpack.c.b16 %v5277, %v5276
    %v5281 = vpack.c.b16 %v5279, %v5278
    %5284 = vmatprep.subr.bf16.mxu0 0
    %5285 = vmatpush1.bf16.msra.mxu0 %v4739
    %5286 = vmatprep.subr.bf16.mxu0 0
    %5287 = vmatpush1.bf16.msra.mxu0 %v4738
    %5288 = vmatprep.subr.bf16.mxu0 0
    %5289 = vmatpush1.bf16.msra.mxu0 %v4737
    %5290 = vmatprep.subr.bf16.mxu0 0
    %5291 = vmatpush1.bf16.msra.mxu0 %v4736
    %5292 = vmatprep.subr.bf16.mxu0 0
    %5293 = vmatpush1.bf16.msra.mxu0 %v4735
    %5294 = vmatprep.subr.bf16.mxu0 0
    %5295 = vmatpush1.bf16.msra.mxu0 %v4734
    %5296 = vmatprep.subr.bf16.mxu0 0
    %5297 = vmatpush1.bf16.msra.mxu0 %v4733
    %5298 = vmatprep.subr.bf16.mxu0 0
    %5299 = vmatpush1.bf16.msra.mxu0 %v4732
    %5300 = vmatprep.subr.bf16.mxu0 0
    %5301 = vmatpush2.bf16.msra.mxu0 0
    %5302 = vmatprep.subr.bf16.mxu0 0
    %5303 = vmatpush2.bf16.msra.mxu0 0
    %5304 = vmatprep.subr.bf16.mxu0 0
    %5305 = vmatpush2.bf16.msra.mxu0 0
    %5306 = vmatprep.subr.bf16.mxu0 0
    %5307 = vmatpush2.bf16.msra.mxu0 0
    %5308 = vmatprep.subr.bf16.mxu0 0
    %5309 = vmatpush2.bf16.msra.mxu0 0
    %5310 = vmatprep.subr.bf16.mxu0 0
    %5311 = vmatpush2.bf16.msra.mxu0 0
    %5312 = vmatprep.subr.bf16.mxu0 0
    %5313 = vmatpush2.bf16.msra.mxu0 0
    %5314 = vmatprep.subr.bf16.mxu0 0
    %5315 = vmatpush2.bf16.msra.mxu0 0
    %5316 = vmatprep.mubr.bf16.mxu0 0
    %5317 = vmatmul.mubr.bf16.gmra.mxu0 %v5280
    %v5318 = vpop.f32.mrf.mxu0
    %v5319 = vadd.f32 0.0, %v5318
    %v5320 = vpop.f32.mrf.mxu0
    %v5321 = vpop.f32.mrf.mxu0
    %v5322 = vadd.f32 0.0, %v5321
    %v5323 = vpop.f32.mrf.mxu0
    %5324 = vmatprep.mubr.bf16.mxu0 0
    %5325 = vmatmul.mubr.bf16.gmra.mxu0 %v5281
    %v5326 = vpop.f32.mrf.mxu0
    %v5327 = vadd.f32 0.0, %v5326
    %v5328 = vpop.f32.mrf.mxu0
    %v5329 = vpop.f32.mrf.mxu0
    %v5330 = vadd.f32 0.0, %v5329
    %v5331 = vpop.f32.mrf.mxu0
    %5332 = vdwg.mxu0
    %5337 = vrot.lane.b32.xlu0 %v4857, 16
    %v5338 = vpop.permute.xlu0 %5337
    %5339 = vrot.lane.b32.xlu0 %v4860, 16
    %v5340 = vpop.permute.xlu0 %5339
    %5341 = vrot.lane.b32.xlu0 %v4865, 16
    %v5342 = vpop.permute.xlu0 %5341
    %5343 = vrot.lane.b32.xlu0 %v4868, 16
    %v5344 = vpop.permute.xlu0 %5343
    %5353 = vrot.lane.b32.xlu0 %v4923, 32
    %v5354 = vpop.permute.xlu0 %5353
    %5355 = vrot.lane.b32.xlu0 %v4926, 32
    %v5356 = vpop.permute.xlu0 %5355
    %5357 = vrot.lane.b32.xlu0 %v4931, 32
    %v5358 = vpop.permute.xlu0 %5357
    %5359 = vrot.lane.b32.xlu0 %v4934, 32
    %v5360 = vpop.permute.xlu0 %5359
    %5369 = vrot.lane.b32.xlu0 %v4989, 48
    %v5370 = vpop.permute.xlu0 %5369
    %5371 = vrot.lane.b32.xlu0 %v4992, 48
    %v5372 = vpop.permute.xlu0 %5371
    %5373 = vrot.lane.b32.xlu0 %v4997, 48
    %v5374 = vpop.permute.xlu0 %5373
    %5375 = vrot.lane.b32.xlu0 %v5000, 48
    %v5376 = vpop.permute.xlu0 %5375
    %5385 = vrot.lane.b32.xlu0 %v5055, 64
    %v5386 = vpop.permute.xlu0 %5385
    %5387 = vrot.lane.b32.xlu0 %v5058, 64
    %v5388 = vpop.permute.xlu0 %5387
    %5389 = vrot.lane.b32.xlu0 %v5063, 64
    %v5390 = vpop.permute.xlu0 %5389
    %5391 = vrot.lane.b32.xlu0 %v5066, 64
    %v5392 = vpop.permute.xlu0 %5391
    %5401 = vrot.lane.b32.xlu0 %v5121, 80
    %v5402 = vpop.permute.xlu0 %5401
    %5403 = vrot.lane.b32.xlu0 %v5124, 80
    %v5404 = vpop.permute.xlu0 %5403
    %5405 = vrot.lane.b32.xlu0 %v5129, 80
    %v5406 = vpop.permute.xlu0 %5405
    %5407 = vrot.lane.b32.xlu0 %v5132, 80
    %v5408 = vpop.permute.xlu0 %5407
    %5417 = vrot.lane.b32.xlu0 %v5187, 96
    %v5418 = vpop.permute.xlu0 %5417
    %5419 = vrot.lane.b32.xlu0 %v5190, 96
    %v5420 = vpop.permute.xlu0 %5419
    %5421 = vrot.lane.b32.xlu0 %v5195, 96
    %v5422 = vpop.permute.xlu0 %5421
    %5423 = vrot.lane.b32.xlu0 %v5198, 96
    %v5424 = vpop.permute.xlu0 %5423
    %5433 = vrot.lane.b32.xlu0 %v5253, 112
    %v5434 = vpop.permute.xlu0 %5433
    %5435 = vrot.lane.b32.xlu0 %v5256, 112
    %v5436 = vpop.permute.xlu0 %5435
    %5437 = vrot.lane.b32.xlu0 %v5261, 112
    %v5438 = vpop.permute.xlu0 %5437
    %5439 = vrot.lane.b32.xlu0 %v5264, 112
    %v5440 = vpop.permute.xlu0 %5439
    %vm5445 = vcmask 130048
    %v5446 = vsel %vm5445, %v4791, %v5338
    %v5447 = vsel %vm5445, %v4794, %v5340
    %v5448 = vsel %vm5445, %v4799, %v5342
    %v5449 = vsel %vm5445, %v4802, %v5344
    %vm5450 = vcmask 261120
    %v5451 = vsel %vm5450, %v5446, %v5354
    %v5452 = vsel %vm5450, %v5447, %v5356
    %v5453 = vsel %vm5450, %v5448, %v5358
    %v5454 = vsel %vm5450, %v5449, %v5360
    %vm5455 = vcmask 392192
    %v5456 = vsel %vm5455, %v5451, %v5370
    %v5457 = vsel %vm5455, %v5452, %v5372
    %v5458 = vsel %vm5455, %v5453, %v5374
    %v5459 = vsel %vm5455, %v5454, %v5376
    %vm5460 = vcmask 523264
    %v5461 = vsel %vm5460, %v5456, %v5386
    %v5462 = vsel %vm5460, %v5457, %v5388
    %v5463 = vsel %vm5460, %v5458, %v5390
    %v5464 = vsel %vm5460, %v5459, %v5392
    %vm5465 = vcmask 654336
    %v5466 = vsel %vm5465, %v5461, %v5402
    %v5467 = vsel %vm5465, %v5462, %v5404
    %v5468 = vsel %vm5465, %v5463, %v5406
    %v5469 = vsel %vm5465, %v5464, %v5408
    %vm5470 = vcmask 785408
    %v5471 = vsel %vm5470, %v5466, %v5418
    %v5472 = vsel %vm5470, %v5467, %v5420
    %v5473 = vsel %vm5470, %v5468, %v5422
    %v5474 = vsel %vm5470, %v5469, %v5424
    %vm5475 = vcmask 916480
    %v5476 = vsel %vm5475, %v5471, %v5434
    %v5477 = vsel %vm5475, %v5472, %v5436
    %v5478 = vsel %vm5475, %v5473, %v5438
    %v5479 = vsel %vm5475, %v5474, %v5440
    %v5480 = vpack.c.bf16 %v5477, %v5476
    %v5481 = vpack.c.bf16 %v5322, %v5319
    %v5482 = vpack.c.bf16 %v5479, %v5478
    %v5483 = vpack.c.bf16 %v5330, %v5327
    %v5484 = vld [vmem:[#allocation9] sm:$0xf]
    %v5485 = vld [vmem:[#allocation9 + $0x4] sm:$0xf]
    %v5486 = vld [vmem:[#allocation9 + $0x8] sm:$0xf]
    %v5487 = vld [vmem:[#allocation9 + $0xc] sm:$0xf]
    %v5488 = vld [vmem:[#allocation9 + $0x10] sm:$0xf]
    %v5489 = vld [vmem:[#allocation9 + $0x14] sm:$0xf]
    %v5490 = vld [vmem:[#allocation9 + $0x18] sm:$0xf]
    %v5491 = vld [vmem:[#allocation9 + $0x1c] sm:$0xf]
    %v5492 = vld [vmem:[#allocation9 + $0x20] sm:$0xf]
    %v5493 = vld [vmem:[#allocation9 + $0x24] sm:$0xf]
    %v5494 = vld [vmem:[#allocation9 + $0x28] sm:$0xf]
    %v5495 = vld [vmem:[#allocation9 + $0x2c] sm:$0xf]
    %v5496 = vld [vmem:[#allocation9 + $0x30] sm:$0xf]
    %v5497 = vld [vmem:[#allocation9 + $0x34] sm:$0xf]
    %v5498 = vld [vmem:[#allocation9 + $0x38] sm:$0xf]
    %v5499 = vld [vmem:[#allocation9 + $0x3c] sm:$0xf]
    %v5500 = vld [vmem:[#allocation9 + $0x40] sm:$0xf]
    %v5501 = vld [vmem:[#allocation9 + $0x44] sm:$0xf]
    %v5502 = vld [vmem:[#allocation10] sm:$0x1]
    %v5504 = vlaneseq
    %v5505 = vshrl.u32 %v5504, 7
    %v5506 = vsub.s32 0, %v5505
    %v5507 = vrot.slane %v5502, %v5506
    %v5527 = vunpack.c.l.b16 %v5484
    %v5528 = vunpack.c.l.b16 %v5485
    %v5529 = vunpack.c.l.b16 %v5486
    %v5530 = vunpack.c.l.b16 %v5487
    %v5531 = vunpack.c.l.b16 %v5488
    %v5532 = vunpack.c.l.b16 %v5489
    %v5533 = vunpack.c.l.b16 %v5490
    %v5534 = vunpack.c.l.b16 %v5491
    %v5535 = vunpack.c.l.b16 %v5492
    %v5536 = vunpack.c.l.b16 %v5493
    %v5537 = vunpack.c.l.b16 %v5494
    %v5538 = vunpack.c.l.b16 %v5495
    %v5539 = vunpack.c.l.b16 %v5496
    %v5540 = vunpack.c.l.b16 %v5497
    %v5541 = vunpack.c.l.b16 %v5498
    %v5542 = vunpack.c.l.b16 %v5499
    %v5543 = vunpack.c.l.b16 %v5500
    %v5544 = vunpack.c.l.b16 %v5501
    %v5545 = vpack.c.b16 %v5528, %v5527
    %v5546 = vpack.c.b16 %v5530, %v5529
    %v5547 = vpack.c.b16 %v5532, %v5531
    %v5548 = vpack.c.b16 %v5534, %v5533
    %v5549 = vpack.c.b16 %v5536, %v5535
    %v5550 = vpack.c.b16 %v5538, %v5537
    %v5551 = vpack.c.b16 %v5540, %v5539
    %v5552 = vpack.c.b16 %v5542, %v5541
    %v5553 = vpack.c.b16 %v5544, %v5543
    %v5564 = vsel %vm5445, %v5481, 0
    %v5567 = vsel %vm5445, %v5483, 0
    %5569 = vmatprep.subr.bf16.mxu0 0
    %5570 = vmatpush1.bf16.msra.mxu0 %v5552
    %5571 = vmatprep.subr.bf16.mxu0 0
    %5572 = vmatpush1.bf16.msra.mxu0 %v5551
    %5573 = vmatprep.subr.bf16.mxu0 0
    %5574 = vmatpush1.bf16.msra.mxu0 %v5550
    %5575 = vmatprep.subr.bf16.mxu0 0
    %5576 = vmatpush1.bf16.msra.mxu0 %v5549
    %5577 = vmatprep.subr.bf16.mxu0 0
    %5578 = vmatpush1.bf16.msra.mxu0 %v5548
    %5579 = vmatprep.subr.bf16.mxu0 0
    %5580 = vmatpush1.bf16.msra.mxu0 %v5547
    %5581 = vmatprep.subr.bf16.mxu0 0
    %5582 = vmatpush1.bf16.msra.mxu0 %v5546
    %5583 = vmatprep.subr.bf16.mxu0 0
    %5584 = vmatpush1.bf16.msra.mxu0 %v5545
    %5585 = vmatprep.subr.bf16.mxu0 0
    %5586 = vmatpush2.bf16.msra.mxu0 0
    %5587 = vmatprep.subr.bf16.mxu0 0
    %5588 = vmatpush2.bf16.msra.mxu0 0
    %5589 = vmatprep.subr.bf16.mxu0 0
    %5590 = vmatpush2.bf16.msra.mxu0 0
    %5591 = vmatprep.subr.bf16.mxu0 0
    %5592 = vmatpush2.bf16.msra.mxu0 0
    %5593 = vmatprep.subr.bf16.mxu0 0
    %5594 = vmatpush2.bf16.msra.mxu0 0
    %5595 = vmatprep.subr.bf16.mxu0 0
    %5596 = vmatpush2.bf16.msra.mxu0 0
    %5597 = vmatprep.subr.bf16.mxu0 0
    %5598 = vmatpush2.bf16.msra.mxu0 0
    %5599 = vmatprep.subr.bf16.mxu0 0
    %5600 = vmatpush2.bf16.msra.mxu0 %v5553
    %5601 = vmatprep.mubr.bf16.mxu0 %v5564
    %5602 = vmatmul.mubr.bf16.gmra.mxu0 %v5480
    %v5603 = vpop.f32.mrf.mxu0
    %v5604 = vadd.f32 %v5507, %v5603
    %v5605 = vpop.f32.mrf.mxu0
    %v5606 = vpop.f32.mrf.mxu0
    %v5607 = vadd.f32 %v5507, %v5606
    %v5608 = vpop.f32.mrf.mxu0
    %5609 = vmatprep.mubr.bf16.mxu0 %v5567
    %5610 = vmatmul.mubr.bf16.gmra.mxu0 %v5482
    %v5611 = vpop.f32.mrf.mxu0
    %v5612 = vadd.f32 %v5507, %v5611
    %v5613 = vpop.f32.mrf.mxu0
    %v5614 = vpop.f32.mrf.mxu0
    %v5615 = vadd.f32 %v5507, %v5614
    %v5616 = vpop.f32.mrf.mxu0
    %5617 = vdwg.mxu0
    %v5618 = vmax.f32 %v5604, 0.0
    %v5619 = vmax.f32 %v5607, 0.0
    %v5620 = vmax.f32 %v5612, 0.0
    %v5621 = vmax.f32 %v5615, 0.0
    %5622 = vst [vmem:[%s11] sm:$0xff] %v5618
    %5623 = vst [vmem:[%s11 + $0x8] sm:$0xff] %v5619
    %5624 = vst [vmem:[%s11 + $0x10] sm:$0xff] %v5620
    %5625 = vst [vmem:[%s11 + $0x18] sm:$0xff] %v5621
    %v5626 = vpack.c.bf16 %v5619, %v5618
    %v5627 = vpack.c.bf16 %v5621, %v5620
    %v5628 = vld [vmem:[#allocation12] sm:$0xf]
    %v5630 = vsel %vm5450, %v5628, 0
    %5632 = vmatprep.subr.bf16.mxu0 0
    %5633 = vmatpush1.bf16.msra.mxu0 0
    %5634 = vmatprep.subr.bf16.mxu0 0
    %5635 = vmatpush1.bf16.msra.mxu0 0
    %5636 = vmatprep.subr.bf16.mxu0 0
    %5637 = vmatpush1.bf16.msra.mxu0 0
    %5638 = vmatprep.subr.bf16.mxu0 0
    %5639 = vmatpush1.bf16.msra.mxu0 0
    %5640 = vmatprep.subr.bf16.mxu0 0
    %5641 = vmatpush1.bf16.msra.mxu0 0
    %5642 = vmatprep.subr.bf16.mxu0 0
    %5643 = vmatpush1.bf16.msra.mxu0 0
    %5644 = vmatprep.subr.bf16.mxu0 0
    %5645 = vmatpush1.bf16.msra.mxu0 %v5627
    %5646 = vmatprep.subr.bf16.mxu0 0
    %5647 = vmatpush1.bf16.msra.mxu0 %v5626
    %5648 = vmatprep.subr.bf16.mxu0 0
    %5649 = vmatpush2.bf16.msra.mxu0 0
    %5650 = vmatprep.subr.bf16.mxu0 0
    %5651 = vmatpush2.bf16.msra.mxu0 0
    %5652 = vmatprep.subr.bf16.mxu0 0
    %5653 = vmatpush2.bf16.msra.mxu0 0
    %5654 = vmatprep.subr.bf16.mxu0 0
    %5655 = vmatpush2.bf16.msra.mxu0 0
    %5656 = vmatprep.subr.bf16.mxu0 0
    %5657 = vmatpush2.bf16.msra.mxu0 0
    %5658 = vmatprep.subr.bf16.mxu0 0
    %5659 = vmatpush2.bf16.msra.mxu0 0
    %5660 = vmatprep.subr.bf16.mxu0 0
    %5661 = vmatpush2.bf16.msra.mxu0 0
    %5662 = vmatprep.subr.bf16.mxu0 0
    %5663 = vmatpush2.bf16.msra.mxu0 0
    %5664 = vmatprep.mubr.bf16.mxu0 0
    %5665 = vmatmul.mubr.bf16.gmra.mxu0 %v5630
    %v5666 = vpop.f32.mrf.mxu0
    %v5667 = vadd.f32 0.0, %v5666
    %v5668 = vpop.f32.mrf.mxu0
    %v5669 = vpop.f32.mrf.mxu0
    %v5670 = vpop.f32.mrf.mxu0
    %5671 = vdwg.mxu0
    %s5672 = scalar_lea.vmem [#allocation12], 4
    %v5673 = vld [vmem:[%s5672] sm:$0xf]
    %v5675 = vsel %vm5450, %v5673, 0
    %5677 = vmatprep.subr.bf16.mxu0 0
    %5678 = vmatpush1.bf16.msra.mxu0 0
    %5679 = vmatprep.subr.bf16.mxu0 0
    %5680 = vmatpush1.bf16.msra.mxu0 0
    %5681 = vmatprep.subr.bf16.mxu0 0
    %5682 = vmatpush1.bf16.msra.mxu0 0
    %5683 = vmatprep.subr.bf16.mxu0 0
    %5684 = vmatpush1.bf16.msra.mxu0 0
    %5685 = vmatprep.subr.bf16.mxu0 0
    %5686 = vmatpush1.bf16.msra.mxu0 0
    %5687 = vmatprep.subr.bf16.mxu0 0
    %5688 = vmatpush1.bf16.msra.mxu0 0
    %5689 = vmatprep.subr.bf16.mxu0 0
    %5690 = vmatpush1.bf16.msra.mxu0 %v5627
    %5691 = vmatprep.subr.bf16.mxu0 0
    %5692 = vmatpush1.bf16.msra.mxu0 %v5626
    %5693 = vmatprep.subr.bf16.mxu0 0
    %5694 = vmatpush2.bf16.msra.mxu0 0
    %5695 = vmatprep.subr.bf16.mxu0 0
    %5696 = vmatpush2.bf16.msra.mxu0 0
    %5697 = vmatprep.subr.bf16.mxu0 0
    %5698 = vmatpush2.bf16.msra.mxu0 0
    %5699 = vmatprep.subr.bf16.mxu0 0
    %5700 = vmatpush2.bf16.msra.mxu0 0
    %5701 = vmatprep.subr.bf16.mxu0 0
    %5702 = vmatpush2.bf16.msra.mxu0 0
    %5703 = vmatprep.subr.bf16.mxu0 0
    %5704 = vmatpush2.bf16.msra.mxu0 0
    %5705 = vmatprep.subr.bf16.mxu0 0
    %5706 = vmatpush2.bf16.msra.mxu0 0
    %5707 = vmatprep.subr.bf16.mxu0 0
    %5708 = vmatpush2.bf16.msra.mxu0 0
    %5709 = vmatprep.mubr.bf16.mxu0 0
    %5710 = vmatmul.mubr.bf16.gmra.mxu0 %v5675
    %v5711 = vpop.f32.mrf.mxu0
    %v5712 = vadd.f32 0.0, %v5711
    %v5713 = vpop.f32.mrf.mxu0
    %v5714 = vpop.f32.mrf.mxu0
    %v5715 = vpop.f32.mrf.mxu0
    %5716 = vdwg.mxu0
    %s5717 = scalar_lea.vmem [#allocation12], 8
    %v5718 = vld [vmem:[%s5717] sm:$0xf]
    %v5720 = vsel %vm5450, %v5718, 0
    %5722 = vmatprep.subr.bf16.mxu0 0
    %5723 = vmatpush1.bf16.msra.mxu0 0
    %5724 = vmatprep.subr.bf16.mxu0 0
    %5725 = vmatpush1.bf16.msra.mxu0 0
    %5726 = vmatprep.subr.bf16.mxu0 0
    %5727 = vmatpush1.bf16.msra.mxu0 0
    %5728 = vmatprep.subr.bf16.mxu0 0
    %5729 = vmatpush1.bf16.msra.mxu0 0
    %5730 = vmatprep.subr.bf16.mxu0 0
    %5731 = vmatpush1.bf16.msra.mxu0 0
    %5732 = vmatprep.subr.bf16.mxu0 0
    %5733 = vmatpush1.bf16.msra.mxu0 0
    %5734 = vmatprep.subr.bf16.mxu0 0
    %5735 = vmatpush1.bf16.msra.mxu0 %v5627
    %5736 = vmatprep.subr.bf16.mxu0 0
    %5737 = vmatpush1.bf16.msra.mxu0 %v5626
    %5738 = vmatprep.subr.bf16.mxu0 0
    %5739 = vmatpush2.bf16.msra.mxu0 0
    %5740 = vmatprep.subr.bf16.mxu0 0
    %5741 = vmatpush2.bf16.msra.mxu0 0
    %5742 = vmatprep.subr.bf16.mxu0 0
    %5743 = vmatpush2.bf16.msra.mxu0 0
    %5744 = vmatprep.subr.bf16.mxu0 0
    %5745 = vmatpush2.bf16.msra.mxu0 0
    %5746 = vmatprep.subr.bf16.mxu0 0
    %5747 = vmatpush2.bf16.msra.mxu0 0
    %5748 = vmatprep.subr.bf16.mxu0 0
    %5749 = vmatpush2.bf16.msra.mxu0 0
    %5750 = vmatprep.subr.bf16.mxu0 0
    %5751 = vmatpush2.bf16.msra.mxu0 0
    %5752 = vmatprep.subr.bf16.mxu0 0
    %5753 = vmatpush2.bf16.msra.mxu0 0
    %5754 = vmatprep.mubr.bf16.mxu0 0
    %5755 = vmatmul.mubr.bf16.gmra.mxu0 %v5720
    %v5756 = vpop.f32.mrf.mxu0
    %v5757 = vadd.f32 0.0, %v5756
    %v5758 = vpop.f32.mrf.mxu0
    %v5759 = vpop.f32.mrf.mxu0
    %v5760 = vpop.f32.mrf.mxu0
    %5761 = vdwg.mxu0
    %s5762 = scalar_lea.vmem [#allocation12], 12
    %v5763 = vld [vmem:[%s5762] sm:$0xf]
    %v5765 = vsel %vm5450, %v5763, 0
    %5767 = vmatprep.subr.bf16.mxu0 0
    %5768 = vmatpush1.bf16.msra.mxu0 0
    %5769 = vmatprep.subr.bf16.mxu0 0
    %5770 = vmatpush1.bf16.msra.mxu0 0
    %5771 = vmatprep.subr.bf16.mxu0 0
    %5772 = vmatpush1.bf16.msra.mxu0 0
    %5773 = vmatprep.subr.bf16.mxu0 0
    %5774 = vmatpush1.bf16.msra.mxu0 0
    %5775 = vmatprep.subr.bf16.mxu0 0
    %5776 = vmatpush1.bf16.msra.mxu0 0
    %5777 = vmatprep.subr.bf16.mxu0 0
    %5778 = vmatpush1.bf16.msra.mxu0 0
    %5779 = vmatprep.subr.bf16.mxu0 0
    %5780 = vmatpush1.bf16.msra.mxu0 %v5627
    %5781 = vmatprep.subr.bf16.mxu0 0
    %5782 = vmatpush1.bf16.msra.mxu0 %v5626
    %5783 = vmatprep.subr.bf16.mxu0 0
    %5784 = vmatpush2.bf16.msra.mxu0 0
    %5785 = vmatprep.subr.bf16.mxu0 0
    %5786 = vmatpush2.bf16.msra.mxu0 0
    %5787 = vmatprep.subr.bf16.mxu0 0
    %5788 = vmatpush2.bf16.msra.mxu0 0
    %5789 = vmatprep.subr.bf16.mxu0 0
    %5790 = vmatpush2.bf16.msra.mxu0 0
    %5791 = vmatprep.subr.bf16.mxu0 0
    %5792 = vmatpush2.bf16.msra.mxu0 0
    %5793 = vmatprep.subr.bf16.mxu0 0
    %5794 = vmatpush2.bf16.msra.mxu0 0
    %5795 = vmatprep.subr.bf16.mxu0 0
    %5796 = vmatpush2.bf16.msra.mxu0 0
    %5797 = vmatprep.subr.bf16.mxu0 0
    %5798 = vmatpush2.bf16.msra.mxu0 0
    %5799 = vmatprep.mubr.bf16.mxu0 0
    %5800 = vmatmul.mubr.bf16.gmra.mxu0 %v5765
    %v5801 = vpop.f32.mrf.mxu0
    %v5802 = vadd.f32 0.0, %v5801
    %v5803 = vpop.f32.mrf.mxu0
    %v5804 = vpop.f32.mrf.mxu0
    %v5805 = vpop.f32.mrf.mxu0
    %5806 = vdwg.mxu0
    %s5807 = scalar_lea.vmem [#allocation12], 16
    %v5808 = vld [vmem:[%s5807] sm:$0xf]
    %v5810 = vsel %vm5450, %v5808, 0
    %5812 = vmatprep.subr.bf16.mxu0 0
    %5813 = vmatpush1.bf16.msra.mxu0 0
    %5814 = vmatprep.subr.bf16.mxu0 0
    %5815 = vmatpush1.bf16.msra.mxu0 0
    %5816 = vmatprep.subr.bf16.mxu0 0
    %5817 = vmatpush1.bf16.msra.mxu0 0
    %5818 = vmatprep.subr.bf16.mxu0 0
    %5819 = vmatpush1.bf16.msra.mxu0 0
    %5820 = vmatprep.subr.bf16.mxu0 0
    %5821 = vmatpush1.bf16.msra.mxu0 0
    %5822 = vmatprep.subr.bf16.mxu0 0
    %5823 = vmatpush1.bf16.msra.mxu0 0
    %5824 = vmatprep.subr.bf16.mxu0 0
    %5825 = vmatpush1.bf16.msra.mxu0 %v5627
    %5826 = vmatprep.subr.bf16.mxu0 0
    %5827 = vmatpush1.bf16.msra.mxu0 %v5626
    %5828 = vmatprep.subr.bf16.mxu0 0
    %5829 = vmatpush2.bf16.msra.mxu0 0
    %5830 = vmatprep.subr.bf16.mxu0 0
    %5831 = vmatpush2.bf16.msra.mxu0 0
    %5832 = vmatprep.subr.bf16.mxu0 0
    %5833 = vmatpush2.bf16.msra.mxu0 0
    %5834 = vmatprep.subr.bf16.mxu0 0
    %5835 = vmatpush2.bf16.msra.mxu0 0
    %5836 = vmatprep.subr.bf16.mxu0 0
    %5837 = vmatpush2.bf16.msra.mxu0 0
    %5838 = vmatprep.subr.bf16.mxu0 0
    %5839 = vmatpush2.bf16.msra.mxu0 0
    %5840 = vmatprep.subr.bf16.mxu0 0
    %5841 = vmatpush2.bf16.msra.mxu0 0
    %5842 = vmatprep.subr.bf16.mxu0 0
    %5843 = vmatpush2.bf16.msra.mxu0 0
    %5844 = vmatprep.mubr.bf16.mxu0 0
    %5845 = vmatmul.mubr.bf16.gmra.mxu0 %v5810
    %v5846 = vpop.f32.mrf.mxu0
    %v5847 = vadd.f32 0.0, %v5846
    %v5848 = vpop.f32.mrf.mxu0
    %v5849 = vpop.f32.mrf.mxu0
    %v5850 = vpop.f32.mrf.mxu0
    %5851 = vdwg.mxu0
    %s5852 = scalar_lea.vmem [#allocation12], 20
    %v5853 = vld [vmem:[%s5852] sm:$0xf]
    %v5855 = vsel %vm5450, %v5853, 0
    %5857 = vmatprep.subr.bf16.mxu0 0
    %5858 = vmatpush1.bf16.msra.mxu0 0
    %5859 = vmatprep.subr.bf16.mxu0 0
    %5860 = vmatpush1.bf16.msra.mxu0 0
    %5861 = vmatprep.subr.bf16.mxu0 0
    %5862 = vmatpush1.bf16.msra.mxu0 0
    %5863 = vmatprep.subr.bf16.mxu0 0
    %5864 = vmatpush1.bf16.msra.mxu0 0
    %5865 = vmatprep.subr.bf16.mxu0 0
    %5866 = vmatpush1.bf16.msra.mxu0 0
    %5867 = vmatprep.subr.bf16.mxu0 0
    %5868 = vmatpush1.bf16.msra.mxu0 0
    %5869 = vmatprep.subr.bf16.mxu0 0
    %5870 = vmatpush1.bf16.msra.mxu0 %v5627
    %5871 = vmatprep.subr.bf16.mxu0 0
    %5872 = vmatpush1.bf16.msra.mxu0 %v5626
    %5873 = vmatprep.subr.bf16.mxu0 0
    %5874 = vmatpush2.bf16.msra.mxu0 0
    %5875 = vmatprep.subr.bf16.mxu0 0
    %5876 = vmatpush2.bf16.msra.mxu0 0
    %5877 = vmatprep.subr.bf16.mxu0 0
    %5878 = vmatpush2.bf16.msra.mxu0 0
    %5879 = vmatprep.subr.bf16.mxu0 0
    %5880 = vmatpush2.bf16.msra.mxu0 0
    %5881 = vmatprep.subr.bf16.mxu0 0
    %5882 = vmatpush2.bf16.msra.mxu0 0
    %5883 = vmatprep.subr.bf16.mxu0 0
    %5884 = vmatpush2.bf16.msra.mxu0 0
    %5885 = vmatprep.subr.bf16.mxu0 0
    %5886 = vmatpush2.bf16.msra.mxu0 0
    %5887 = vmatprep.subr.bf16.mxu0 0
    %5888 = vmatpush2.bf16.msra.mxu0 0
    %5889 = vmatprep.mubr.bf16.mxu0 0
    %5890 = vmatmul.mubr.bf16.gmra.mxu0 %v5855
    %v5891 = vpop.f32.mrf.mxu0
    %v5892 = vadd.f32 0.0, %v5891
    %v5893 = vpop.f32.mrf.mxu0
    %v5894 = vpop.f32.mrf.mxu0
    %v5895 = vpop.f32.mrf.mxu0
    %5896 = vdwg.mxu0
    %s5897 = scalar_lea.vmem [#allocation12], 24
    %v5898 = vld [vmem:[%s5897] sm:$0xf]
    %v5900 = vsel %vm5450, %v5898, 0
    %5902 = vmatprep.subr.bf16.mxu0 0
    %5903 = vmatpush1.bf16.msra.mxu0 0
    %5904 = vmatprep.subr.bf16.mxu0 0
    %5905 = vmatpush1.bf16.msra.mxu0 0
    %5906 = vmatprep.subr.bf16.mxu0 0
    %5907 = vmatpush1.bf16.msra.mxu0 0
    %5908 = vmatprep.subr.bf16.mxu0 0
    %5909 = vmatpush1.bf16.msra.mxu0 0
    %5910 = vmatprep.subr.bf16.mxu0 0
    %5911 = vmatpush1.bf16.msra.mxu0 0
    %5912 = vmatprep.subr.bf16.mxu0 0
    %5913 = vmatpush1.bf16.msra.mxu0 0
    %5914 = vmatprep.subr.bf16.mxu0 0
    %5915 = vmatpush1.bf16.msra.mxu0 %v5627
    %5916 = vmatprep.subr.bf16.mxu0 0
    %5917 = vmatpush1.bf16.msra.mxu0 %v5626
    %5918 = vmatprep.subr.bf16.mxu0 0
    %5919 = vmatpush2.bf16.msra.mxu0 0
    %5920 = vmatprep.subr.bf16.mxu0 0
    %5921 = vmatpush2.bf16.msra.mxu0 0
    %5922 = vmatprep.subr.bf16.mxu0 0
    %5923 = vmatpush2.bf16.msra.mxu0 0
    %5924 = vmatprep.subr.bf16.mxu0 0
    %5925 = vmatpush2.bf16.msra.mxu0 0
    %5926 = vmatprep.subr.bf16.mxu0 0
    %5927 = vmatpush2.bf16.msra.mxu0 0
    %5928 = vmatprep.subr.bf16.mxu0 0
    %5929 = vmatpush2.bf16.msra.mxu0 0
    %5930 = vmatprep.subr.bf16.mxu0 0
    %5931 = vmatpush2.bf16.msra.mxu0 0
    %5932 = vmatprep.subr.bf16.mxu0 0
    %5933 = vmatpush2.bf16.msra.mxu0 0
    %5934 = vmatprep.mubr.bf16.mxu0 0
    %5935 = vmatmul.mubr.bf16.gmra.mxu0 %v5900
    %v5936 = vpop.f32.mrf.mxu0
    %v5937 = vadd.f32 0.0, %v5936
    %v5938 = vpop.f32.mrf.mxu0
    %v5939 = vpop.f32.mrf.mxu0
    %v5940 = vpop.f32.mrf.mxu0
    %5941 = vdwg.mxu0
    %s5942 = scalar_lea.vmem [#allocation12], 28
    %v5943 = vld [vmem:[%s5942] sm:$0xf]
    %v5945 = vsel %vm5450, %v5943, 0
    %5947 = vmatprep.subr.bf16.mxu0 0
    %5948 = vmatpush1.bf16.msra.mxu0 0
    %5949 = vmatprep.subr.bf16.mxu0 0
    %5950 = vmatpush1.bf16.msra.mxu0 0
    %5951 = vmatprep.subr.bf16.mxu0 0
    %5952 = vmatpush1.bf16.msra.mxu0 0
    %5953 = vmatprep.subr.bf16.mxu0 0
    %5954 = vmatpush1.bf16.msra.mxu0 0
    %5955 = vmatprep.subr.bf16.mxu0 0
    %5956 = vmatpush1.bf16.msra.mxu0 0
    %5957 = vmatprep.subr.bf16.mxu0 0
    %5958 = vmatpush1.bf16.msra.mxu0 0
    %5959 = vmatprep.subr.bf16.mxu0 0
    %5960 = vmatpush1.bf16.msra.mxu0 %v5627
    %5961 = vmatprep.subr.bf16.mxu0 0
    %5962 = vmatpush1.bf16.msra.mxu0 %v5626
    %5963 = vmatprep.subr.bf16.mxu0 0
    %5964 = vmatpush2.bf16.msra.mxu0 0
    %5965 = vmatprep.subr.bf16.mxu0 0
    %5966 = vmatpush2.bf16.msra.mxu0 0
    %5967 = vmatprep.subr.bf16.mxu0 0
    %5968 = vmatpush2.bf16.msra.mxu0 0
    %5969 = vmatprep.subr.bf16.mxu0 0
    %5970 = vmatpush2.bf16.msra.mxu0 0
    %5971 = vmatprep.subr.bf16.mxu0 0
    %5972 = vmatpush2.bf16.msra.mxu0 0
    %5973 = vmatprep.subr.bf16.mxu0 0
    %5974 = vmatpush2.bf16.msra.mxu0 0
    %5975 = vmatprep.subr.bf16.mxu0 0
    %5976 = vmatpush2.bf16.msra.mxu0 0
    %5977 = vmatprep.subr.bf16.mxu0 0
    %5978 = vmatpush2.bf16.msra.mxu0 0
    %5979 = vmatprep.mubr.bf16.mxu0 0
    %5980 = vmatmul.mubr.bf16.gmra.mxu0 %v5945
    %v5981 = vpop.f32.mrf.mxu0
    %v5982 = vadd.f32 0.0, %v5981
    %v5983 = vpop.f32.mrf.mxu0
    %v5984 = vpop.f32.mrf.mxu0
    %v5985 = vpop.f32.mrf.mxu0
    %5986 = vdwg.mxu0
    %s5987 = scalar_lea.vmem [#allocation12], 32
    %v5988 = vld [vmem:[%s5987] sm:$0xf]
    %v5990 = vsel %vm5450, %v5988, 0
    %5992 = vmatprep.subr.bf16.mxu0 0
    %5993 = vmatpush1.bf16.msra.mxu0 0
    %5994 = vmatprep.subr.bf16.mxu0 0
    %5995 = vmatpush1.bf16.msra.mxu0 0
    %5996 = vmatprep.subr.bf16.mxu0 0
    %5997 = vmatpush1.bf16.msra.mxu0 0
    %5998 = vmatprep.subr.bf16.mxu0 0
    %5999 = vmatpush1.bf16.msra.mxu0 0
    %6000 = vmatprep.subr.bf16.mxu0 0
    %6001 = vmatpush1.bf16.msra.mxu0 0
    %6002 = vmatprep.subr.bf16.mxu0 0
    %6003 = vmatpush1.bf16.msra.mxu0 0
    %6004 = vmatprep.subr.bf16.mxu0 0
    %6005 = vmatpush1.bf16.msra.mxu0 %v5627
    %6006 = vmatprep.subr.bf16.mxu0 0
    %6007 = vmatpush1.bf16.msra.mxu0 %v5626
    %6008 = vmatprep.subr.bf16.mxu0 0
    %6009 = vmatpush2.bf16.msra.mxu0 0
    %6010 = vmatprep.subr.bf16.mxu0 0
    %6011 = vmatpush2.bf16.msra.mxu0 0
    %6012 = vmatprep.subr.bf16.mxu0 0
    %6013 = vmatpush2.bf16.msra.mxu0 0
    %6014 = vmatprep.subr.bf16.mxu0 0
    %6015 = vmatpush2.bf16.msra.mxu0 0
    %6016 = vmatprep.subr.bf16.mxu0 0
    %6017 = vmatpush2.bf16.msra.mxu0 0
    %6018 = vmatprep.subr.bf16.mxu0 0
    %6019 = vmatpush2.bf16.msra.mxu0 0
    %6020 = vmatprep.subr.bf16.mxu0 0
    %6021 = vmatpush2.bf16.msra.mxu0 0
    %6022 = vmatprep.subr.bf16.mxu0 0
    %6023 = vmatpush2.bf16.msra.mxu0 0
    %6024 = vmatprep.mubr.bf16.mxu0 0
    %6025 = vmatmul.mubr.bf16.gmra.mxu0 %v5990
    %v6026 = vpop.f32.mrf.mxu0
    %v6027 = vadd.f32 0.0, %v6026
    %v6028 = vpop.f32.mrf.mxu0
    %v6029 = vpop.f32.mrf.mxu0
    %v6030 = vpop.f32.mrf.mxu0
    %6031 = vdwg.mxu0
    %6033 = vrot.lane.b32.xlu0 %v5712, 32
    %v6034 = vpop.permute.xlu0 %6033
    %6037 = vrot.lane.b32.xlu0 %v5757, 64
    %v6038 = vpop.permute.xlu0 %6037
    %6041 = vrot.lane.b32.xlu0 %v5802, 96
    %v6042 = vpop.permute.xlu0 %6041
    %6045 = vrot.lane.b32.xlu0 %v5892, 32
    %v6046 = vpop.permute.xlu0 %6045
    %6049 = vrot.lane.b32.xlu0 %v5937, 64
    %v6050 = vpop.permute.xlu0 %6049
    %6053 = vrot.lane.b32.xlu0 %v5982, 96
    %v6054 = vpop.permute.xlu0 %6053
    %v6056 = vsel %vm5450, %v5667, %v6034
    %v6057 = vsel %vm5460, %v6056, %v6038
    %v6058 = vsel %vm5470, %v6057, %v6042
    %v6059 = vsel %vm5450, %v5847, %v6046
    %v6060 = vsel %vm5460, %v6059, %v6050
    %v6061 = vsel %vm5470, %v6060, %v6054
    %v6062 = vpack.c.bf16 %v6058, %v6058
    %v6063 = vpack.c.bf16 %v6061, %v6061
    %v6064 = vpack.c.bf16 %v6027, %v6027
    %v6065 = vld [vmem:[#allocation13] sm:$0xf]
    %v6066 = vld [vmem:[#allocation13 + $0x4] sm:$0xf]
    %v6067 = vld [vmem:[#allocation13 + $0x8] sm:$0xf]
    %v6068 = vld [vmem:[#allocation13 + $0xc] sm:$0xf]
    %v6069 = vld [vmem:[#allocation13 + $0x10] sm:$0xf]
    %v6070 = vld [vmem:[#allocation13 + $0x14] sm:$0xf]
    %v6071 = vld [vmem:[#allocation13 + $0x18] sm:$0xf]
    %v6072 = vld [vmem:[#allocation13 + $0x1c] sm:$0xf]
    %v6073 = vld [vmem:[#allocation13 + $0x20] sm:$0xf]
    %v6074 = vld [vmem:[#allocation13 + $0x24] sm:$0xf]
    %v6075 = vld [vmem:[#allocation13 + $0x28] sm:$0xf]
    %v6076 = vld [vmem:[#allocation13 + $0x2c] sm:$0xf]
    %v6077 = vld [vmem:[#allocation13 + $0x30] sm:$0xf]
    %v6078 = vld [vmem:[#allocation13 + $0x34] sm:$0xf]
    %v6079 = vld [vmem:[#allocation13 + $0x38] sm:$0xf]
    %v6080 = vld [vmem:[#allocation13 + $0x3c] sm:$0xf]
    %v6081 = vld [vmem:[#allocation13 + $0x40] sm:$0xf]
    %v6082 = vld [vmem:[#allocation13 + $0x44] sm:$0xf]
    %v6083 = vld [vmem:[#allocation13 + $0x48] sm:$0xf]
    %v6084 = vld [vmem:[#allocation13 + $0x4c] sm:$0xf]
    %v6085 = vld [vmem:[#allocation13 + $0x50] sm:$0xf]
    %v6086 = vld [vmem:[#allocation13 + $0x54] sm:$0xf]
    %v6087 = vld [vmem:[#allocation13 + $0x58] sm:$0xf]
    %v6088 = vld [vmem:[#allocation13 + $0x5c] sm:$0xf]
    %v6089 = vld [vmem:[#allocation13 + $0x60] sm:$0xf]
    %v6090 = vld [vmem:[#allocation13 + $0x64] sm:$0xf]
    %v6091 = vld [vmem:[#allocation13 + $0x68] sm:$0xf]
    %v6092 = vld [vmem:[#allocation13 + $0x6c] sm:$0xf]
    %v6093 = vld [vmem:[#allocation13 + $0x70] sm:$0xf]
    %v6094 = vld [vmem:[#allocation13 + $0x74] sm:$0xf]
    %v6095 = vld [vmem:[#allocation13 + $0x78] sm:$0xf]
    %v6096 = vld [vmem:[#allocation13 + $0x7c] sm:$0xf]
    %v6097 = vld [vmem:[#allocation13 + $0x80] sm:$0xf]
    %v6098 = vld [vmem:[#allocation13 + $0x84] sm:$0xf]
    %v6099 = vld [vmem:[#allocation13 + $0x88] sm:$0xf]
    %v6100 = vld [vmem:[#allocation13 + $0x8c] sm:$0xf]
    %v6101 = vld [vmem:[#allocation15] sm:$0x1]
    %v6103 = vlaneseq
    %v6104 = vshrl.u32 %v6103, 7
    %v6105 = vsub.s32 0, %v6104
    %v6106 = vrot.slane %v6101, %v6105
    %v6144 = vunpack.c.l.b16 %v6065
    %v6145 = vunpack.c.l.b16 %v6066
    %v6146 = vunpack.c.l.b16 %v6067
    %v6147 = vunpack.c.l.b16 %v6068
    %v6148 = vunpack.c.l.b16 %v6069
    %v6149 = vunpack.c.l.b16 %v6070
    %v6150 = vunpack.c.l.b16 %v6071
    %v6151 = vunpack.c.l.b16 %v6072
    %v6152 = vunpack.c.l.b16 %v6073
    %v6153 = vunpack.c.l.b16 %v6074
    %v6154 = vunpack.c.l.b16 %v6075
    %v6155 = vunpack.c.l.b16 %v6076
    %v6156 = vunpack.c.l.b16 %v6077
    %v6157 = vunpack.c.l.b16 %v6078
    %v6158 = vunpack.c.l.b16 %v6079
    %v6159 = vunpack.c.l.b16 %v6080
    %v6160 = vunpack.c.l.b16 %v6081
    %v6161 = vunpack.c.l.b16 %v6082
    %v6162 = vunpack.c.l.b16 %v6083
    %v6163 = vunpack.c.l.b16 %v6084
    %v6164 = vunpack.c.l.b16 %v6085
    %v6165 = vunpack.c.l.b16 %v6086
    %v6166 = vunpack.c.l.b16 %v6087
    %v6167 = vunpack.c.l.b16 %v6088
    %v6168 = vunpack.c.l.b16 %v6089
    %v6169 = vunpack.c.l.b16 %v6090
    %v6170 = vunpack.c.l.b16 %v6091
    %v6171 = vunpack.c.l.b16 %v6092
    %v6172 = vunpack.c.l.b16 %v6093
    %v6173 = vunpack.c.l.b16 %v6094
    %v6174 = vunpack.c.l.b16 %v6095
    %v6175 = vunpack.c.l.b16 %v6096
    %v6176 = vunpack.c.l.b16 %v6097
    %v6177 = vunpack.c.l.b16 %v6098
    %v6178 = vunpack.c.l.b16 %v6099
    %v6179 = vunpack.c.l.b16 %v6100
    %v6180 = vpack.c.b16 %v6145, %v6144
    %v6181 = vpack.c.b16 %v6147, %v6146
    %v6182 = vpack.c.b16 %v6149, %v6148
    %v6183 = vpack.c.b16 %v6151, %v6150
    %v6184 = vpack.c.b16 %v6153, %v6152
    %v6185 = vpack.c.b16 %v6155, %v6154
    %v6186 = vpack.c.b16 %v6157, %v6156
    %v6187 = vpack.c.b16 %v6159, %v6158
    %v6188 = vpack.c.b16 %v6161, %v6160
    %v6189 = vpack.c.b16 %v6163, %v6162
    %v6190 = vpack.c.b16 %v6165, %v6164
    %v6191 = vpack.c.b16 %v6167, %v6166
    %v6192 = vpack.c.b16 %v6169, %v6168
    %v6193 = vpack.c.b16 %v6171, %v6170
    %v6194 = vpack.c.b16 %v6173, %v6172
    %v6195 = vpack.c.b16 %v6175, %v6174
    %v6196 = vpack.c.b16 %v6177, %v6176
    %v6197 = vpack.c.b16 %v6179, %v6178
    %v6217 = vsel %vm5450, %v6064, 0
    %6219 = vmatprep.subr.bf16.mxu0 0
    %6220 = vmatpush1.bf16.msra.mxu0 %v6187
    %6221 = vmatprep.subr.bf16.mxu0 0
    %6222 = vmatpush1.bf16.msra.mxu0 %v6186
    %6223 = vmatprep.subr.bf16.mxu0 0
    %6224 = vmatpush1.bf16.msra.mxu0 %v6185
    %6225 = vmatprep.subr.bf16.mxu0 0
    %6226 = vmatpush1.bf16.msra.mxu0 %v6184
    %6227 = vmatprep.subr.bf16.mxu0 0
    %6228 = vmatpush1.bf16.msra.mxu0 %v6183
    %6229 = vmatprep.subr.bf16.mxu0 0
    %6230 = vmatpush1.bf16.msra.mxu0 %v6182
    %6231 = vmatprep.subr.bf16.mxu0 0
    %6232 = vmatpush1.bf16.msra.mxu0 %v6181
    %6233 = vmatprep.subr.bf16.mxu0 0
    %6234 = vmatpush1.bf16.msra.mxu0 %v6180
    %6235 = vmatprep.subr.bf16.mxu0 0
    %6236 = vmatpush2.bf16.msra.mxu0 %v6195
    %6237 = vmatprep.subr.bf16.mxu0 0
    %6238 = vmatpush2.bf16.msra.mxu0 %v6194
    %6239 = vmatprep.subr.bf16.mxu0 0
    %6240 = vmatpush2.bf16.msra.mxu0 %v6193
    %6241 = vmatprep.subr.bf16.mxu0 0
    %6242 = vmatpush2.bf16.msra.mxu0 %v6192
    %6243 = vmatprep.subr.bf16.mxu0 0
    %6244 = vmatpush2.bf16.msra.mxu0 %v6191
    %6245 = vmatprep.subr.bf16.mxu0 0
    %6246 = vmatpush2.bf16.msra.mxu0 %v6190
    %6247 = vmatprep.subr.bf16.mxu0 0
    %6248 = vmatpush2.bf16.msra.mxu0 %v6189
    %6249 = vmatprep.subr.bf16.mxu0 0
    %6250 = vmatpush2.bf16.msra.mxu0 %v6188
    %6251 = vmatprep.mubr.bf16.mxu0 %v6063
    %6252 = vmatmul.mubr.bf16.gmra.mxu0 %v6062
    %v6253 = vpop.f32.mrf.mxu0
    %v6254 = vadd.f32 %v6106, %v6253
    %v6255 = vpop.f32.mrf.mxu0
    %v6256 = vpop.f32.mrf.mxu0
    %v6257 = vpop.f32.mrf.mxu0
    %6258 = vdwg.mxu0
    %6259 = vmatprep.subr.bf16.mxu0 0
    %6260 = vmatpush1.bf16.msra.mxu0 0
    %6261 = vmatprep.subr.bf16.mxu0 0
    %6262 = vmatpush1.bf16.msra.mxu0 0
    %6263 = vmatprep.subr.bf16.mxu0 0
    %6264 = vmatpush1.bf16.msra.mxu0 0
    %6265 = vmatprep.subr.bf16.mxu0 0
    %6266 = vmatpush1.bf16.msra.mxu0 0
    %6267 = vmatprep.subr.bf16.mxu0 0
    %6268 = vmatpush1.bf16.msra.mxu0 0
    %6269 = vmatprep.subr.bf16.mxu0 0
    %6270 = vmatpush1.bf16.msra.mxu0 0
    %6271 = vmatprep.subr.bf16.mxu0 0
    %6272 = vmatpush1.bf16.msra.mxu0 %v6197
    %6273 = vmatprep.subr.bf16.mxu0 0
    %6274 = vmatpush1.bf16.msra.mxu0 %v6196
    %6275 = vmatprep.subr.bf16.mxu0 0
    %6276 = vmatpush2.bf16.msra.mxu0 0
    %6277 = vmatprep.subr.bf16.mxu0 0
    %6278 = vmatpush2.bf16.msra.mxu0 0
    %6279 = vmatprep.subr.bf16.mxu0 0
    %6280 = vmatpush2.bf16.msra.mxu0 0
    %6281 = vmatprep.subr.bf16.mxu0 0
    %6282 = vmatpush2.bf16.msra.mxu0 0
    %6283 = vmatprep.subr.bf16.mxu0 0
    %6284 = vmatpush2.bf16.msra.mxu0 0
    %6285 = vmatprep.subr.bf16.mxu0 0
    %6286 = vmatpush2.bf16.msra.mxu0 0
    %6287 = vmatprep.subr.bf16.mxu0 0
    %6288 = vmatpush2.bf16.msra.mxu0 0
    %6289 = vmatprep.subr.bf16.mxu0 0
    %6290 = vmatpush2.bf16.msra.mxu0 0
    %6291 = vmatprep.mubr.bf16.mxu0 0
    %6292 = vmatmul.mubr.bf16.gmra.mxu0 %v6217
    %v6293 = vpop.f32.mrf.mxu0
    %v6294 = vadd.f32 %v6254, %v6293
    %v6295 = vpop.f32.mrf.mxu0
    %v6296 = vpop.f32.mrf.mxu0
    %v6297 = vpop.f32.mrf.mxu0
    %6298 = vdwg.mxu0
    %v6299 = vmax.f32 %v6294, 0.0
    %6300 = vst [vmem:[%s12] sm:$0xff] %v6299
    // Predicated region
    $region78: #{timm_wrapper_forward.1} parent=1 // pred_check
      _
    $region79: #{timm_wrapper_forward.1} parent=1 // pred_check_branch
      %6302 = sbr.rel (0) target = $region81
    $region80: #{timm_wrapper_forward.1} parent=1 // pred_region
      _
    $region81: #{timm_wrapper_forward.1} parent=1 // pred_fallthru
      _
    // Predicated region
    $region82: #{timm_wrapper_forward.1} parent=1 // pred_check
      _
    $region83: #{timm_wrapper_forward.1} parent=1 // pred_check_branch
      %6304 = sbr.rel (0) target = $region85
    $region84: #{timm_wrapper_forward.1} parent=1 // pred_region
      _
    $region85: #{timm_wrapper_forward.1} parent=1 // pred_fallthru
      _
    // Predicated region
    $region86: #{timm_wrapper_forward.1} parent=1 // pred_check
      _
    $region87: #{timm_wrapper_forward.1} parent=1 // pred_check_branch
      %6306 = sbr.rel (0) target = $region89
    $region88: #{timm_wrapper_forward.1} parent=1 // pred_region
      _
    $region89: #{timm_wrapper_forward.1} parent=1 // pred_fallthru
      _
    // Predicated region
    $region90: #{timm_wrapper_forward.1} parent=1 // pred_check
      _
    $region91: #{timm_wrapper_forward.1} parent=1 // pred_check_branch
      %6308 = sbr.rel (0) target = $region93
    $region92: #{timm_wrapper_forward.1} parent=1 // pred_region
      _
    $region93: #{timm_wrapper_forward.1} parent=1 // pred_fallthru
      _
    // Predicated region
    $region94: #{timm_wrapper_forward.1} parent=1 // pred_check
      _
    $region95: #{timm_wrapper_forward.1} parent=1 // pred_check_branch
      %6310 = sbr.rel (0) target = $region97
    $region96: #{timm_wrapper_forward.1} parent=1 // pred_region
      _
    $region97: #{timm_wrapper_forward.1} parent=1 // pred_fallthru
      _
    // Predicated region
    $region98: #{timm_wrapper_forward.1} parent=1 // pred_check
      _
    $region99: #{timm_wrapper_forward.1} parent=1 // pred_check_branch
      %6312 = sbr.rel (0) target = $region101
    $region100: #{timm_wrapper_forward.1} parent=1 // pred_region
      _
    $region101: #{timm_wrapper_forward.1} parent=1 // pred_fallthru
      _
    %6313 = vsyncpa [#allocation3], 1
    %6314 = vsyncpa [#allocation5], 1
    %6315 = vsyncpa [#allocation8], 1
    %6316 = vsyncpa [#allocation11], 1
    %6317 = vsyncpa [#allocation14], 1

</llo_original>
